<compile_context>
chip_gen: v7x
topology: tpu7x:2x2x1
jax: 0.10.0
libtpu: 0.0.40
codegen_flags: <defaults>
</compile_context>

<pallas_src>
import math
import functools

import jax
import jax.numpy as jnp
from jax.experimental import pallas as pl
from jax.experimental import pallas as _pl_unused  # noqa: F401
from jax.experimental.pallas import tpu as pltpu   # noqa: F401  (TPU backend)

VOCAB = 64
VOCAB_PAD = 128          # lane-dense logits store (pad 64 -> 128 lanes)
EMBED = 32
LAYERS = 2
HEADS = 4
HEAD_DIM = EMBED // HEADS
FF_H = 64
MAX_LEN = 16
BATCH = 2
SEQ = 8
EPS = 1e-5               # PyTorch nn.LayerNorm default


# ----------------------------- kernel helpers -------------------------------
def _layer_norm(x, gamma, beta):
    mu = jnp.mean(x, axis=-1, keepdims=True)
    var = jnp.mean(jnp.square(x - mu), axis=-1, keepdims=True)
    return (x - mu) * jax.lax.rsqrt(var + EPS) * gamma + beta


# ----------------------- fully fused forward kernel -------------------------
def gpt2_fused_kernel(tok_ref, pe_ref, emb_ref,
                      wqkv_ref, bqkv_ref, wo_ref, bo_ref,
                      ln1g_ref, ln1b_ref, ln2g_ref, ln2b_ref,
                      w1_ref, b1_ref, w2_ref, b2_ref,
                      fcw_ref, fcb_ref, o_ref,
                      *, layers, heads, batch, seq):
    rows = batch * seq                       # batch folded onto the row axis
    vocab = emb_ref.shape[0]
    embed = emb_ref.shape[1]
    dh = embed // heads
    scale = 1.0 / math.sqrt(dh)

    # --- embedding: one-hot gather on the MXU + sinusoidal positional enc. --
    tok = tok_ref[...]                                            # (rows, 1) i32
    lane_ids = jax.lax.broadcasted_iota(jnp.int32, (rows, vocab), 1)
    onehot = (lane_ids == tok).astype(jnp.float32)                # (rows, V)
    x = jnp.dot(onehot, emb_ref[...], preferred_element_type=jnp.float32)
    x = x + pe_ref[...]                                           # (rows, E)
    # dropout (eval mode) -> identity

    # --- transformer blocks: weights resident in VMEM, static layer loop ----
    for l in range(layers):
        # fused QKV projection: one (rows, E) x (E, 3E) MXU matmul
        qkv = jnp.dot(x, wqkv_ref[l],
                      preferred_element_type=jnp.float32) + bqkv_ref[l]
        qkv3 = qkv.reshape(batch, seq, 3 * embed)       # leading-dim split only

        attn = jnp.zeros((rows, embed), dtype=jnp.float32)
        for h in range(heads):                          # static unrolled loop
            qh = qkv3[:, :, h * dh:(h + 1) * dh]                  # (B, S, dh)
            kh = qkv3[:, :, embed + h * dh:embed + (h + 1) * dh]
            vh = qkv3[:, :, 2 * embed + h * dh:2 * embed + (h + 1) * dh]
            s = jnp.einsum('bqd,bkd->bqk', qh, kh,
                           preferred_element_type=jnp.float32) * scale
            # TODO(synk): apply (causal / user-provided) mask here when given
            s = s - jnp.max(s, axis=-1, keepdims=True)
            p = jnp.exp(s)
            p = p * pl.reciprocal(jnp.sum(p, axis=-1, keepdims=True),
                                  approx=True)
            oh = jnp.einsum('bqk,bkd->bqd', p, vh,
                            preferred_element_type=jnp.float32)   # (B, S, dh)
            # project straight through this head's Wo slice: no concatenate
            attn = attn + jnp.dot(oh.reshape(rows, dh), wo_ref[l, h],
                                  preferred_element_type=jnp.float32)
        attn = attn + bo_ref[l]

        h1 = _layer_norm(attn + x, ln1g_ref[l], ln1b_ref[l])

        ff = jnp.dot(h1, w1_ref[l],
                     preferred_element_type=jnp.float32) + b1_ref[l]
        ff = jnp.maximum(ff, 0.0)
        ff = jnp.dot(ff, w2_ref[l],
                     preferred_element_type=jnp.float32) + b2_ref[l]
        x = _layer_norm(ff + h1, ln2g_ref[l], ln2b_ref[l])

    # --- fc_out: lane-dense (rows, 128) store (VOCAB padded to 128) ---------
    o_ref[...] = jnp.dot(x, fcw_ref[...],
                         preferred_element_type=jnp.float32) + fcb_ref[...]


# ------------------------------- forward pass --------------------------------
def gpt2_forward(tokens, params):
    B, S = tokens.shape
    rows = B * S
    tok2 = tokens.reshape(rows, 1).astype(jnp.int32)
    pe_rows = jnp.tile(params["pe"][:S], (B, 1))                  # (rows, E)

    args = (tok2, pe_rows, params["tok_emb"],
            params["wqkv"], params["bqkv"], params["wo"], params["bo"],
            params["ln1g"], params["ln1b"], params["ln2g"], params["ln2b"],
            params["w1"], params["b1"], params["w2"], params["b2"],
            params["fc_out_w"], params["fc_out_b"])

    flops = 2 * rows * (
        VOCAB * EMBED + VOCAB_PAD * EMBED
        + LAYERS * (3 * EMBED * EMBED + EMBED * EMBED
                    + 2 * SEQ * EMBED + 2 * EMBED * FF_H))
    transcendentals = LAYERS * HEADS * rows * SEQ
    bytes_accessed = (sum(int(a.size) * a.dtype.itemsize for a in args)
                      + rows * VOCAB_PAD * 4)

    logits_pad = pl.pallas_call(
        functools.partial(gpt2_fused_kernel, layers=LAYERS, heads=HEADS,
                          batch=B, seq=S),
        out_shape=jax.ShapeDtypeStruct((rows, VOCAB_PAD), jnp.float32),
        cost_estimate=pl.CostEstimate(flops=flops,
                                      transcendentals=transcendentals,
                                      bytes_accessed=bytes_accessed),
    )(*args)

    return logits_pad.reshape(B, S, VOCAB_PAD)[:, :, :VOCAB]


# ----------------------------- parameter setup -------------------------------
def sinusoidal_pe(max_len, d):
    pos = jnp.arange(max_len, dtype=jnp.float32)[:, None]
    div = jnp.exp(jnp.arange(0, d, 2, dtype=jnp.float32) *
                  (-math.log(10000.0) / d))
    pe = jnp.zeros((max_len, d), dtype=jnp.float32)
    pe = pe.at[:, 0::2].set(jnp.sin(pos * div))
    pe = pe.at[:, 1::2].set(jnp.cos(pos * div))
    return pe


def init_params(key):
    def nrm(k, shape, scale=0.02):
        return (scale * jax.random.normal(k, shape)).astype(jnp.float32)

    keys = jax.random.split(key, 2 + LAYERS)
    wqkv, bqkv, wo, bo = [], [], [], []
    ln1g, ln1b, ln2g, ln2b = [], [], [], []
    w1, b1, w2, b2 = [], [], [], []
    for l in range(LAYERS):
        ks = jax.random.split(keys[2 + l], 6)
        wq = nrm(ks[0], (EMBED, EMBED))
        wk = nrm(ks[1], (EMBED, EMBED))
        wv = nrm(ks[2], (EMBED, EMBED))
        wqkv.append(jnp.concatenate([wq, wk, wv], axis=1))          # (E, 3E)
        bqkv.append(jnp.zeros((1, 3 * EMBED), jnp.float32))
        wo.append(nrm(ks[3], (EMBED, EMBED)).reshape(HEADS, HEAD_DIM, EMBED))
        bo.append(jnp.zeros((1, EMBED), jnp.float32))
        ln1g.append(jnp.ones((1, EMBED), jnp.float32))
        ln1b.append(jnp.zeros((1, EMBED), jnp.float32))
        ln2g.append(jnp.ones((1, EMBED), jnp.float32))
        ln2b.append(jnp.zeros((1, EMBED), jnp.float32))
        w1.append(nrm(ks[4], (EMBED, FF_H)))
        b1.append(jnp.zeros((1, FF_H), jnp.float32))
        w2.append(nrm(ks[5], (FF_H, EMBED)))
        b2.append(jnp.zeros((1, EMBED), jnp.float32))

    fc_w = nrm(keys[1], (EMBED, VOCAB))                 # pre-transposed (in, out)
    fc_w_pad = jnp.zeros((EMBED, VOCAB_PAD), jnp.float32).at[:, :VOCAB].set(fc_w)
    fc_b_pad = jnp.zeros((1, VOCAB_PAD), jnp.float32)

    return {
        "tok_emb": nrm(keys[0], (VOCAB, EMBED)),
        "pe": sinusoidal_pe(MAX_LEN, EMBED),
        "wqkv": jnp.stack(wqkv), "bqkv": jnp.stack(bqkv),
        "wo": jnp.stack(wo), "bo": jnp.stack(bo),
        "ln1g": jnp.stack(ln1g), "ln1b": jnp.stack(ln1b),
        "ln2g": jnp.stack(ln2g), "ln2b": jnp.stack(ln2b),
        "w1": jnp.stack(w1), "b1": jnp.stack(b1),
        "w2": jnp.stack(w2), "b2": jnp.stack(b2),
        "fc_out_w": fc_w_pad, "fc_out_b": fc_b_pad,
    }


if __name__ == "__main__":
    key = jax.random.PRNGKey(0)
    k_tok, k_par = jax.random.split(key)
    tokens = jax.random.randint(k_tok, (BATCH, SEQ), 0, VOCAB, dtype=jnp.int32)
    params = init_params(k_par)

    logits = gpt2_forward(tokens, params)
    jax.block_until_ready(logits)
    assert logits.shape == (BATCH, SEQ, VOCAB)
    assert bool(jnp.all(jnp.isfinite(logits)))
    print("KERNEL_OK")
</pallas_src>

<mosaic_0001>
module attributes {stable_mosaic.version = 11 : i64} {
  func.func @gpt2_fused_kernel(%arg0: memref<16x1xi32, #tpu.memory_space<vmem>>, %arg1: memref<16x32xf32, #tpu.memory_space<vmem>>, %arg2: memref<64x32xf32, #tpu.memory_space<vmem>>, %arg3: memref<2x32x96xf32, #tpu.memory_space<vmem>>, %arg4: memref<2x1x96xf32, #tpu.memory_space<vmem>>, %arg5: memref<2x4x8x32xf32, #tpu.memory_space<vmem>>, %arg6: memref<2x1x32xf32, #tpu.memory_space<vmem>>, %arg7: memref<2x1x32xf32, #tpu.memory_space<vmem>>, %arg8: memref<2x1x32xf32, #tpu.memory_space<vmem>>, %arg9: memref<2x1x32xf32, #tpu.memory_space<vmem>>, %arg10: memref<2x1x32xf32, #tpu.memory_space<vmem>>, %arg11: memref<2x32x64xf32, #tpu.memory_space<vmem>>, %arg12: memref<2x1x64xf32, #tpu.memory_space<vmem>>, %arg13: memref<2x64x32xf32, #tpu.memory_space<vmem>>, %arg14: memref<2x1x32xf32, #tpu.memory_space<vmem>>, %arg15: memref<32x128xf32, #tpu.memory_space<vmem>>, %arg16: memref<1x128xf32, #tpu.memory_space<vmem>>, %arg17: memref<16x128xf32, #tpu.memory_space<vmem>>) attributes {dimension_semantics = [], scalar_prefetch = 0 : i64, scratch_operands = 0 : i64, tpu.core_type = #tpu.core_type<tc>} {
    %c0 = arith.constant 0 : index
    %c0_0 = arith.constant 0 : index
    %0 = vector.load %arg0[%c0, %c0_0] : memref<16x1xi32, #tpu.memory_space<vmem>>, vector<16x1xi32>
    %1 = tpu.iota {dimensions = array<i32: 1>} : vector<16x64xi32>
    %2 = vector.broadcast %0 : vector<16x1xi32> to vector<16x64xi32>
    %3 = arith.cmpi eq, %1, %2 : vector<16x64xi32>
    %4 = arith.extui %3 : vector<16x64xi1> to vector<16x64xi32>
    %5 = arith.sitofp %4 : vector<16x64xi32> to vector<16x64xf32>
    %c0_1 = arith.constant 0 : index
    %c0_2 = arith.constant 0 : index
    %6 = vector.load %arg2[%c0_1, %c0_2] : memref<64x32xf32, #tpu.memory_space<vmem>>, vector<64x32xf32>
    %cst = arith.constant dense<0.000000e+00> : vector<16x32xf32>
    %7 = tpu.matmul %5, %6, %cst {dimension_numbers = #tpu.dot_dimension_numbers<[1], [0], [0], [1], [0, 0, 1, 1], [], []>} : vector<16x64xf32>, vector<64x32xf32>, vector<16x32xf32> -> vector<16x32xf32>
    %c0_3 = arith.constant 0 : index
    %c0_4 = arith.constant 0 : index
    %8 = vector.load %arg1[%c0_3, %c0_4] : memref<16x32xf32, #tpu.memory_space<vmem>>, vector<16x32xf32>
    %9 = arith.addf %7, %8 : vector<16x32xf32>
    %c0_5 = arith.constant 0 : index
    %c0_6 = arith.constant 0 : index
    %c0_7 = arith.constant 0 : index
    %10 = vector.load %arg3[%c0_5, %c0_6, %c0_7] : memref<2x32x96xf32, #tpu.memory_space<vmem>>, vector<1x32x96xf32>
    %11 = vector.shape_cast %10 : vector<1x32x96xf32> to vector<32x96xf32>
    %cst_8 = arith.constant dense<0.000000e+00> : vector<16x96xf32>
    %12 = tpu.matmul %9, %11, %cst_8 {dimension_numbers = #tpu.dot_dimension_numbers<[1], [0], [0], [1], [0, 0, 1, 1], [], []>} : vector<16x32xf32>, vector<32x96xf32>, vector<16x96xf32> -> vector<16x96xf32>
    %c0_9 = arith.constant 0 : index
    %c0_10 = arith.constant 0 : index
    %c0_11 = arith.constant 0 : index
    %13 = vector.load %arg4[%c0_9, %c0_10, %c0_11] : memref<2x1x96xf32, #tpu.memory_space<vmem>>, vector<1x1x96xf32>
    %14 = vector.shape_cast %13 : vector<1x1x96xf32> to vector<1x96xf32>
    %15 = vector.broadcast %14 : vector<1x96xf32> to vector<16x96xf32>
    %16 = arith.addf %12, %15 : vector<16x96xf32>
    %17 = vector.shape_cast %16 : vector<16x96xf32> to vector<2x8x96xf32>
    %cst_12 = arith.constant 0.000000e+00 : f32
    %18 = vector.broadcast %cst_12 : f32 to vector<16x32xf32>
    %19 = vector.extract_strided_slice %17 {offsets = [0, 0, 0], sizes = [2, 8, 8], strides = [1, 1, 1]} : vector<2x8x96xf32> to vector<2x8x8xf32>
    %20 = vector.extract_strided_slice %17 {offsets = [0, 0, 32], sizes = [2, 8, 8], strides = [1, 1, 1]} : vector<2x8x96xf32> to vector<2x8x8xf32>
    %21 = vector.extract_strided_slice %17 {offsets = [0, 0, 64], sizes = [2, 8, 8], strides = [1, 1, 1]} : vector<2x8x96xf32> to vector<2x8x8xf32>
    "tpu.trace_start"() <{level = 10 : i32, message = "bqd,bkd->bqk"}> : () -> ()
    %cst_13 = arith.constant dense<0.000000e+00> : vector<2x8x8xf32>
    %22 = tpu.matmul %19, %20, %cst_13 {dimension_numbers = #tpu.dot_dimension_numbers<[2], [2], [1], [1], [0, 0, 0, 1, 1, 1], [0], [0]>} : vector<2x8x8xf32>, vector<2x8x8xf32>, vector<2x8x8xf32> -> vector<2x8x8xf32>
    "tpu.trace_stop"() : () -> ()
    %cst_14 = arith.constant 0.353553385 : f32
    %23 = vector.broadcast %cst_14 : f32 to vector<2x8x8xf32>
    %24 = arith.mulf %22, %23 : vector<2x8x8xf32>
    %cst_15 = arith.constant dense<0xFF800000> : vector<2x8xf32>
    %25 = vector.multi_reduction <maximumf>, %24, %cst_15 [2] : vector<2x8x8xf32> to vector<2x8xf32>
    %26 = vector.shape_cast %25 : vector<2x8xf32> to vector<2x8x1xf32>
    %27 = vector.broadcast %26 : vector<2x8x1xf32> to vector<2x8x8xf32>
    %28 = arith.subf %24, %27 : vector<2x8x8xf32>
    %29 = math.exp %28 : vector<2x8x8xf32>
    %cst_16 = arith.constant dense<0.000000e+00> : vector<2x8xf32>
    %30 = vector.multi_reduction <add>, %29, %cst_16 [2] : vector<2x8x8xf32> to vector<2x8xf32>
    %31 = vector.shape_cast %30 : vector<2x8xf32> to vector<2x8x1xf32>
    %32 = tpu.reciprocal %31 {approx = true} : vector<2x8x1xf32> -> vector<2x8x1xf32>
    %33 = vector.broadcast %32 : vector<2x8x1xf32> to vector<2x8x8xf32>
    %34 = arith.mulf %29, %33 : vector<2x8x8xf32>
    "tpu.trace_start"() <{level = 10 : i32, message = "bqk,bkd->bqd"}> : () -> ()
    %cst_17 = arith.constant dense<0.000000e+00> : vector<2x8x8xf32>
    %35 = tpu.matmul %34, %21, %cst_17 {dimension_numbers = #tpu.dot_dimension_numbers<[2], [1], [1], [2], [0, 0, 0, 1, 1, 2], [0], [0]>} : vector<2x8x8xf32>, vector<2x8x8xf32>, vector<2x8x8xf32> -> vector<2x8x8xf32>
    "tpu.trace_stop"() : () -> ()
    %36 = vector.shape_cast %35 : vector<2x8x8xf32> to vector<16x8xf32>
    %c0_18 = arith.constant 0 : index
    %c0_19 = arith.constant 0 : index
    %c0_20 = arith.constant 0 : index
    %c0_21 = arith.constant 0 : index
    %37 = vector.load %arg5[%c0_18, %c0_19, %c0_20, %c0_21] : memref<2x4x8x32xf32, #tpu.memory_space<vmem>>, vector<1x1x8x32xf32>
    %38 = vector.shape_cast %37 : vector<1x1x8x32xf32> to vector<8x32xf32>
    %cst_22 = arith.constant dense<0.000000e+00> : vector<16x32xf32>
    %39 = tpu.matmul %36, %38, %cst_22 {dimension_numbers = #tpu.dot_dimension_numbers<[1], [0], [0], [1], [0, 0, 1, 1], [], []>} : vector<16x8xf32>, vector<8x32xf32>, vector<16x32xf32> -> vector<16x32xf32>
    %40 = arith.addf %18, %39 : vector<16x32xf32>
    %41 = vector.extract_strided_slice %17 {offsets = [0, 0, 8], sizes = [2, 8, 8], strides = [1, 1, 1]} : vector<2x8x96xf32> to vector<2x8x8xf32>
    %42 = vector.extract_strided_slice %17 {offsets = [0, 0, 40], sizes = [2, 8, 8], strides = [1, 1, 1]} : vector<2x8x96xf32> to vector<2x8x8xf32>
    %43 = vector.extract_strided_slice %17 {offsets = [0, 0, 72], sizes = [2, 8, 8], strides = [1, 1, 1]} : vector<2x8x96xf32> to vector<2x8x8xf32>
    "tpu.trace_start"() <{level = 10 : i32, message = "bqd,bkd->bqk"}> : () -> ()
    %cst_23 = arith.constant dense<0.000000e+00> : vector<2x8x8xf32>
    %44 = tpu.matmul %41, %42, %cst_23 {dimension_numbers = #tpu.dot_dimension_numbers<[2], [2], [1], [1], [0, 0, 0, 1, 1, 1], [0], [0]>} : vector<2x8x8xf32>, vector<2x8x8xf32>, vector<2x8x8xf32> -> vector<2x8x8xf32>
    "tpu.trace_stop"() : () -> ()
    %cst_24 = arith.constant 0.353553385 : f32
    %45 = vector.broadcast %cst_24 : f32 to vector<2x8x8xf32>
    %46 = arith.mulf %44, %45 : vector<2x8x8xf32>
    %cst_25 = arith.constant dense<0xFF800000> : vector<2x8xf32>
    %47 = vector.multi_reduction <maximumf>, %46, %cst_25 [2] : vector<2x8x8xf32> to vector<2x8xf32>
    %48 = vector.shape_cast %47 : vector<2x8xf32> to vector<2x8x1xf32>
    %49 = vector.broadcast %48 : vector<2x8x1xf32> to vector<2x8x8xf32>
    %50 = arith.subf %46, %49 : vector<2x8x8xf32>
    %51 = math.exp %50 : vector<2x8x8xf32>
    %cst_26 = arith.constant dense<0.000000e+00> : vector<2x8xf32>
    %52 = vector.multi_reduction <add>, %51, %cst_26 [2] : vector<2x8x8xf32> to vector<2x8xf32>
    %53 = vector.shape_cast %52 : vector<2x8xf32> to vector<2x8x1xf32>
    %54 = tpu.reciprocal %53 {approx = true} : vector<2x8x1xf32> -> vector<2x8x1xf32>
    %55 = vector.broadcast %54 : vector<2x8x1xf32> to vector<2x8x8xf32>
    %56 = arith.mulf %51, %55 : vector<2x8x8xf32>
    "tpu.trace_start"() <{level = 10 : i32, message = "bqk,bkd->bqd"}> : () -> ()
    %cst_27 = arith.constant dense<0.000000e+00> : vector<2x8x8xf32>
    %57 = tpu.matmul %56, %43, %cst_27 {dimension_numbers = #tpu.dot_dimension_numbers<[2], [1], [1], [2], [0, 0, 0, 1, 1, 2], [0], [0]>} : vector<2x8x8xf32>, vector<2x8x8xf32>, vector<2x8x8xf32> -> vector<2x8x8xf32>
    "tpu.trace_stop"() : () -> ()
    %58 = vector.shape_cast %57 : vector<2x8x8xf32> to vector<16x8xf32>
    %c0_28 = arith.constant 0 : index
    %c1 = arith.constant 1 : index
    %c0_29 = arith.constant 0 : index
    %c0_30 = arith.constant 0 : index
    %59 = vector.load %arg5[%c0_28, %c1, %c0_29, %c0_30] : memref<2x4x8x32xf32, #tpu.memory_space<vmem>>, vector<1x1x8x32xf32>
    %60 = vector.shape_cast %59 : vector<1x1x8x32xf32> to vector<8x32xf32>
    %cst_31 = arith.constant dense<0.000000e+00> : vector<16x32xf32>
    %61 = tpu.matmul %58, %60, %cst_31 {dimension_numbers = #tpu.dot_dimension_numbers<[1], [0], [0], [1], [0, 0, 1, 1], [], []>} : vector<16x8xf32>, vector<8x32xf32>, vector<16x32xf32> -> vector<16x32xf32>
    %62 = arith.addf %40, %61 : vector<16x32xf32>
    %63 = vector.extract_strided_slice %17 {offsets = [0, 0, 16], sizes = [2, 8, 8], strides = [1, 1, 1]} : vector<2x8x96xf32> to vector<2x8x8xf32>
    %64 = vector.extract_strided_slice %17 {offsets = [0, 0, 48], sizes = [2, 8, 8], strides = [1, 1, 1]} : vector<2x8x96xf32> to vector<2x8x8xf32>
    %65 = vector.extract_strided_slice %17 {offsets = [0, 0, 80], sizes = [2, 8, 8], strides = [1, 1, 1]} : vector<2x8x96xf32> to vector<2x8x8xf32>
    "tpu.trace_start"() <{level = 10 : i32, message = "bqd,bkd->bqk"}> : () -> ()
    %cst_32 = arith.constant dense<0.000000e+00> : vector<2x8x8xf32>
    %66 = tpu.matmul %63, %64, %cst_32 {dimension_numbers = #tpu.dot_dimension_numbers<[2], [2], [1], [1], [0, 0, 0, 1, 1, 1], [0], [0]>} : vector<2x8x8xf32>, vector<2x8x8xf32>, vector<2x8x8xf32> -> vector<2x8x8xf32>
    "tpu.trace_stop"() : () -> ()
    %cst_33 = arith.constant 0.353553385 : f32
    %67 = vector.broadcast %cst_33 : f32 to vector<2x8x8xf32>
    %68 = arith.mulf %66, %67 : vector<2x8x8xf32>
    %cst_34 = arith.constant dense<0xFF800000> : vector<2x8xf32>
    %69 = vector.multi_reduction <maximumf>, %68, %cst_34 [2] : vector<2x8x8xf32> to vector<2x8xf32>
    %70 = vector.shape_cast %69 : vector<2x8xf32> to vector<2x8x1xf32>
    %71 = vector.broadcast %70 : vector<2x8x1xf32> to vector<2x8x8xf32>
    %72 = arith.subf %68, %71 : vector<2x8x8xf32>
    %73 = math.exp %72 : vector<2x8x8xf32>
    %cst_35 = arith.constant dense<0.000000e+00> : vector<2x8xf32>
    %74 = vector.multi_reduction <add>, %73, %cst_35 [2] : vector<2x8x8xf32> to vector<2x8xf32>
    %75 = vector.shape_cast %74 : vector<2x8xf32> to vector<2x8x1xf32>
    %76 = tpu.reciprocal %75 {approx = true} : vector<2x8x1xf32> -> vector<2x8x1xf32>
    %77 = vector.broadcast %76 : vector<2x8x1xf32> to vector<2x8x8xf32>
    %78 = arith.mulf %73, %77 : vector<2x8x8xf32>
    "tpu.trace_start"() <{level = 10 : i32, message = "bqk,bkd->bqd"}> : () -> ()
    %cst_36 = arith.constant dense<0.000000e+00> : vector<2x8x8xf32>
    %79 = tpu.matmul %78, %65, %cst_36 {dimension_numbers = #tpu.dot_dimension_numbers<[2], [1], [1], [2], [0, 0, 0, 1, 1, 2], [0], [0]>} : vector<2x8x8xf32>, vector<2x8x8xf32>, vector<2x8x8xf32> -> vector<2x8x8xf32>
    "tpu.trace_stop"() : () -> ()
    %80 = vector.shape_cast %79 : vector<2x8x8xf32> to vector<16x8xf32>
    %c0_37 = arith.constant 0 : index
    %c2 = arith.constant 2 : index
    %c0_38 = arith.constant 0 : index
    %c0_39 = arith.constant 0 : index
    %81 = vector.load %arg5[%c0_37, %c2, %c0_38, %c0_39] : memref<2x4x8x32xf32, #tpu.memory_space<vmem>>, vector<1x1x8x32xf32>
    %82 = vector.shape_cast %81 : vector<1x1x8x32xf32> to vector<8x32xf32>
    %cst_40 = arith.constant dense<0.000000e+00> : vector<16x32xf32>
    %83 = tpu.matmul %80, %82, %cst_40 {dimension_numbers = #tpu.dot_dimension_numbers<[1], [0], [0], [1], [0, 0, 1, 1], [], []>} : vector<16x8xf32>, vector<8x32xf32>, vector<16x32xf32> -> vector<16x32xf32>
    %84 = arith.addf %62, %83 : vector<16x32xf32>
    %85 = vector.extract_strided_slice %17 {offsets = [0, 0, 24], sizes = [2, 8, 8], strides = [1, 1, 1]} : vector<2x8x96xf32> to vector<2x8x8xf32>
    %86 = vector.extract_strided_slice %17 {offsets = [0, 0, 56], sizes = [2, 8, 8], strides = [1, 1, 1]} : vector<2x8x96xf32> to vector<2x8x8xf32>
    %87 = vector.extract_strided_slice %17 {offsets = [0, 0, 88], sizes = [2, 8, 8], strides = [1, 1, 1]} : vector<2x8x96xf32> to vector<2x8x8xf32>
    "tpu.trace_start"() <{level = 10 : i32, message = "bqd,bkd->bqk"}> : () -> ()
    %cst_41 = arith.constant dense<0.000000e+00> : vector<2x8x8xf32>
    %88 = tpu.matmul %85, %86, %cst_41 {dimension_numbers = #tpu.dot_dimension_numbers<[2], [2], [1], [1], [0, 0, 0, 1, 1, 1], [0], [0]>} : vector<2x8x8xf32>, vector<2x8x8xf32>, vector<2x8x8xf32> -> vector<2x8x8xf32>
    "tpu.trace_stop"() : () -> ()
    %cst_42 = arith.constant 0.353553385 : f32
    %89 = vector.broadcast %cst_42 : f32 to vector<2x8x8xf32>
    %90 = arith.mulf %88, %89 : vector<2x8x8xf32>
    %cst_43 = arith.constant dense<0xFF800000> : vector<2x8xf32>
    %91 = vector.multi_reduction <maximumf>, %90, %cst_43 [2] : vector<2x8x8xf32> to vector<2x8xf32>
    %92 = vector.shape_cast %91 : vector<2x8xf32> to vector<2x8x1xf32>
    %93 = vector.broadcast %92 : vector<2x8x1xf32> to vector<2x8x8xf32>
    %94 = arith.subf %90, %93 : vector<2x8x8xf32>
    %95 = math.exp %94 : vector<2x8x8xf32>
    %cst_44 = arith.constant dense<0.000000e+00> : vector<2x8xf32>
    %96 = vector.multi_reduction <add>, %95, %cst_44 [2] : vector<2x8x8xf32> to vector<2x8xf32>
    %97 = vector.shape_cast %96 : vector<2x8xf32> to vector<2x8x1xf32>
    %98 = tpu.reciprocal %97 {approx = true} : vector<2x8x1xf32> -> vector<2x8x1xf32>
    %99 = vector.broadcast %98 : vector<2x8x1xf32> to vector<2x8x8xf32>
    %100 = arith.mulf %95, %99 : vector<2x8x8xf32>
    "tpu.trace_start"() <{level = 10 : i32, message = "bqk,bkd->bqd"}> : () -> ()
    %cst_45 = arith.constant dense<0.000000e+00> : vector<2x8x8xf32>
    %101 = tpu.matmul %100, %87, %cst_45 {dimension_numbers = #tpu.dot_dimension_numbers<[2], [1], [1], [2], [0, 0, 0, 1, 1, 2], [0], [0]>} : vector<2x8x8xf32>, vector<2x8x8xf32>, vector<2x8x8xf32> -> vector<2x8x8xf32>
    "tpu.trace_stop"() : () -> ()
    %102 = vector.shape_cast %101 : vector<2x8x8xf32> to vector<16x8xf32>
    %c0_46 = arith.constant 0 : index
    %c3 = arith.constant 3 : index
    %c0_47 = arith.constant 0 : index
    %c0_48 = arith.constant 0 : index
    %103 = vector.load %arg5[%c0_46, %c3, %c0_47, %c0_48] : memref<2x4x8x32xf32, #tpu.memory_space<vmem>>, vector<1x1x8x32xf32>
    %104 = vector.shape_cast %103 : vector<1x1x8x32xf32> to vector<8x32xf32>
    %cst_49 = arith.constant dense<0.000000e+00> : vector<16x32xf32>
    %105 = tpu.matmul %102, %104, %cst_49 {dimension_numbers = #tpu.dot_dimension_numbers<[1], [0], [0], [1], [0, 0, 1, 1], [], []>} : vector<16x8xf32>, vector<8x32xf32>, vector<16x32xf32> -> vector<16x32xf32>
    %106 = arith.addf %84, %105 : vector<16x32xf32>
    %c0_50 = arith.constant 0 : index
    %c0_51 = arith.constant 0 : index
    %c0_52 = arith.constant 0 : index
    %107 = vector.load %arg6[%c0_50, %c0_51, %c0_52] : memref<2x1x32xf32, #tpu.memory_space<vmem>>, vector<1x1x32xf32>
    %108 = vector.shape_cast %107 : vector<1x1x32xf32> to vector<1x32xf32>
    %109 = vector.broadcast %108 : vector<1x32xf32> to vector<16x32xf32>
    %110 = arith.addf %106, %109 : vector<16x32xf32>
    %111 = arith.addf %110, %9 : vector<16x32xf32>
    %c0_53 = arith.constant 0 : index
    %c0_54 = arith.constant 0 : index
    %c0_55 = arith.constant 0 : index
    %112 = vector.load %arg7[%c0_53, %c0_54, %c0_55] : memref<2x1x32xf32, #tpu.memory_space<vmem>>, vector<1x1x32xf32>
    %113 = vector.shape_cast %112 : vector<1x1x32xf32> to vector<1x32xf32>
    %c0_56 = arith.constant 0 : index
    %c0_57 = arith.constant 0 : index
    %c0_58 = arith.constant 0 : index
    %114 = vector.load %arg8[%c0_56, %c0_57, %c0_58] : memref<2x1x32xf32, #tpu.memory_space<vmem>>, vector<1x1x32xf32>
    %115 = vector.shape_cast %114 : vector<1x1x32xf32> to vector<1x32xf32>
    %cst_59 = arith.constant dense<0.000000e+00> : vector<16xf32>
    %116 = vector.multi_reduction <add>, %111, %cst_59 [1] : vector<16x32xf32> to vector<16xf32>
    %117 = vector.shape_cast %116 : vector<16xf32> to vector<16x1xf32>
    %cst_60 = arith.constant 3.200000e+01 : f32
    %118 = vector.broadcast %cst_60 : f32 to vector<16x1xf32>
    %119 = arith.divf %117, %118 : vector<16x1xf32>
    %120 = vector.broadcast %119 : vector<16x1xf32> to vector<16x32xf32>
    %121 = arith.subf %111, %120 : vector<16x32xf32>
    %122 = arith.mulf %121, %121 : vector<16x32xf32>
    %cst_61 = arith.constant dense<0.000000e+00> : vector<16xf32>
    %123 = vector.multi_reduction <add>, %122, %cst_61 [1] : vector<16x32xf32> to vector<16xf32>
    %124 = vector.shape_cast %123 : vector<16xf32> to vector<16x1xf32>
    %cst_62 = arith.constant 3.200000e+01 : f32
    %125 = vector.broadcast %cst_62 : f32 to vector<16x1xf32>
    %126 = arith.divf %124, %125 : vector<16x1xf32>
    %127 = vector.broadcast %119 : vector<16x1xf32> to vector<16x32xf32>
    %128 = arith.subf %111, %127 : vector<16x32xf32>
    %cst_63 = arith.constant 9.99999974E-6 : f32
    %129 = vector.broadcast %cst_63 : f32 to vector<16x1xf32>
    %130 = arith.addf %126, %129 : vector<16x1xf32>
    %131 = math.rsqrt %130 : vector<16x1xf32>
    %132 = vector.broadcast %131 : vector<16x1xf32> to vector<16x32xf32>
    %133 = arith.mulf %128, %132 : vector<16x32xf32>
    %134 = vector.broadcast %113 : vector<1x32xf32> to vector<16x32xf32>
    %135 = arith.mulf %133, %134 : vector<16x32xf32>
    %136 = vector.broadcast %115 : vector<1x32xf32> to vector<16x32xf32>
    %137 = arith.addf %135, %136 : vector<16x32xf32>
    %c0_64 = arith.constant 0 : index
    %c0_65 = arith.constant 0 : index
    %c0_66 = arith.constant 0 : index
    %138 = vector.load %arg11[%c0_64, %c0_65, %c0_66] : memref<2x32x64xf32, #tpu.memory_space<vmem>>, vector<1x32x64xf32>
    %139 = vector.shape_cast %138 : vector<1x32x64xf32> to vector<32x64xf32>
    %cst_67 = arith.constant dense<0.000000e+00> : vector<16x64xf32>
    %140 = tpu.matmul %137, %139, %cst_67 {dimension_numbers = #tpu.dot_dimension_numbers<[1], [0], [0], [1], [0, 0, 1, 1], [], []>} : vector<16x32xf32>, vector<32x64xf32>, vector<16x64xf32> -> vector<16x64xf32>
    %c0_68 = arith.constant 0 : index
    %c0_69 = arith.constant 0 : index
    %c0_70 = arith.constant 0 : index
    %141 = vector.load %arg12[%c0_68, %c0_69, %c0_70] : memref<2x1x64xf32, #tpu.memory_space<vmem>>, vector<1x1x64xf32>
    %142 = vector.shape_cast %141 : vector<1x1x64xf32> to vector<1x64xf32>
    %143 = vector.broadcast %142 : vector<1x64xf32> to vector<16x64xf32>
    %144 = arith.addf %140, %143 : vector<16x64xf32>
    %cst_71 = arith.constant 0.000000e+00 : f32
    %145 = vector.broadcast %cst_71 : f32 to vector<16x64xf32>
    %146 = arith.maximumf %144, %145 : vector<16x64xf32>
    %c0_72 = arith.constant 0 : index
    %c0_73 = arith.constant 0 : index
    %c0_74 = arith.constant 0 : index
    %147 = vector.load %arg13[%c0_72, %c0_73, %c0_74] : memref<2x64x32xf32, #tpu.memory_space<vmem>>, vector<1x64x32xf32>
    %148 = vector.shape_cast %147 : vector<1x64x32xf32> to vector<64x32xf32>
    %cst_75 = arith.constant dense<0.000000e+00> : vector<16x32xf32>
    %149 = tpu.matmul %146, %148, %cst_75 {dimension_numbers = #tpu.dot_dimension_numbers<[1], [0], [0], [1], [0, 0, 1, 1], [], []>} : vector<16x64xf32>, vector<64x32xf32>, vector<16x32xf32> -> vector<16x32xf32>
    %c0_76 = arith.constant 0 : index
    %c0_77 = arith.constant 0 : index
    %c0_78 = arith.constant 0 : index
    %150 = vector.load %arg14[%c0_76, %c0_77, %c0_78] : memref<2x1x32xf32, #tpu.memory_space<vmem>>, vector<1x1x32xf32>
    %151 = vector.shape_cast %150 : vector<1x1x32xf32> to vector<1x32xf32>
    %152 = vector.broadcast %151 : vector<1x32xf32> to vector<16x32xf32>
    %153 = arith.addf %149, %152 : vector<16x32xf32>
    %154 = arith.addf %153, %137 : vector<16x32xf32>
    %c0_79 = arith.constant 0 : index
    %c0_80 = arith.constant 0 : index
    %c0_81 = arith.constant 0 : index
    %155 = vector.load %arg9[%c0_79, %c0_80, %c0_81] : memref<2x1x32xf32, #tpu.memory_space<vmem>>, vector<1x1x32xf32>
    %156 = vector.shape_cast %155 : vector<1x1x32xf32> to vector<1x32xf32>
    %c0_82 = arith.constant 0 : index
    %c0_83 = arith.constant 0 : index
    %c0_84 = arith.constant 0 : index
    %157 = vector.load %arg10[%c0_82, %c0_83, %c0_84] : memref<2x1x32xf32, #tpu.memory_space<vmem>>, vector<1x1x32xf32>
    %158 = vector.shape_cast %157 : vector<1x1x32xf32> to vector<1x32xf32>
    %cst_85 = arith.constant dense<0.000000e+00> : vector<16xf32>
    %159 = vector.multi_reduction <add>, %154, %cst_85 [1] : vector<16x32xf32> to vector<16xf32>
    %160 = vector.shape_cast %159 : vector<16xf32> to vector<16x1xf32>
    %cst_86 = arith.constant 3.200000e+01 : f32
    %161 = vector.broadcast %cst_86 : f32 to vector<16x1xf32>
    %162 = arith.divf %160, %161 : vector<16x1xf32>
    %163 = vector.broadcast %162 : vector<16x1xf32> to vector<16x32xf32>
    %164 = arith.subf %154, %163 : vector<16x32xf32>
    %165 = arith.mulf %164, %164 : vector<16x32xf32>
    %cst_87 = arith.constant dense<0.000000e+00> : vector<16xf32>
    %166 = vector.multi_reduction <add>, %165, %cst_87 [1] : vector<16x32xf32> to vector<16xf32>
    %167 = vector.shape_cast %166 : vector<16xf32> to vector<16x1xf32>
    %cst_88 = arith.constant 3.200000e+01 : f32
    %168 = vector.broadcast %cst_88 : f32 to vector<16x1xf32>
    %169 = arith.divf %167, %168 : vector<16x1xf32>
    %170 = vector.broadcast %162 : vector<16x1xf32> to vector<16x32xf32>
    %171 = arith.subf %154, %170 : vector<16x32xf32>
    %cst_89 = arith.constant 9.99999974E-6 : f32
    %172 = vector.broadcast %cst_89 : f32 to vector<16x1xf32>
    %173 = arith.addf %169, %172 : vector<16x1xf32>
    %174 = math.rsqrt %173 : vector<16x1xf32>
    %175 = vector.broadcast %174 : vector<16x1xf32> to vector<16x32xf32>
    %176 = arith.mulf %171, %175 : vector<16x32xf32>
    %177 = vector.broadcast %156 : vector<1x32xf32> to vector<16x32xf32>
    %178 = arith.mulf %176, %177 : vector<16x32xf32>
    %179 = vector.broadcast %158 : vector<1x32xf32> to vector<16x32xf32>
    %180 = arith.addf %178, %179 : vector<16x32xf32>
    %c1_90 = arith.constant 1 : index
    %c0_91 = arith.constant 0 : index
    %c0_92 = arith.constant 0 : index
    %181 = vector.load %arg3[%c1_90, %c0_91, %c0_92] : memref<2x32x96xf32, #tpu.memory_space<vmem>>, vector<1x32x96xf32>
    %182 = vector.shape_cast %181 : vector<1x32x96xf32> to vector<32x96xf32>
    %cst_93 = arith.constant dense<0.000000e+00> : vector<16x96xf32>
    %183 = tpu.matmul %180, %182, %cst_93 {dimension_numbers = #tpu.dot_dimension_numbers<[1], [0], [0], [1], [0, 0, 1, 1], [], []>} : vector<16x32xf32>, vector<32x96xf32>, vector<16x96xf32> -> vector<16x96xf32>
    %c1_94 = arith.constant 1 : index
    %c0_95 = arith.constant 0 : index
    %c0_96 = arith.constant 0 : index
    %184 = vector.load %arg4[%c1_94, %c0_95, %c0_96] : memref<2x1x96xf32, #tpu.memory_space<vmem>>, vector<1x1x96xf32>
    %185 = vector.shape_cast %184 : vector<1x1x96xf32> to vector<1x96xf32>
    %186 = vector.broadcast %185 : vector<1x96xf32> to vector<16x96xf32>
    %187 = arith.addf %183, %186 : vector<16x96xf32>
    %188 = vector.shape_cast %187 : vector<16x96xf32> to vector<2x8x96xf32>
    %cst_97 = arith.constant 0.000000e+00 : f32
    %189 = vector.broadcast %cst_97 : f32 to vector<16x32xf32>
    %190 = vector.extract_strided_slice %188 {offsets = [0, 0, 0], sizes = [2, 8, 8], strides = [1, 1, 1]} : vector<2x8x96xf32> to vector<2x8x8xf32>
    %191 = vector.extract_strided_slice %188 {offsets = [0, 0, 32], sizes = [2, 8, 8], strides = [1, 1, 1]} : vector<2x8x96xf32> to vector<2x8x8xf32>
    %192 = vector.extract_strided_slice %188 {offsets = [0, 0, 64], sizes = [2, 8, 8], strides = [1, 1, 1]} : vector<2x8x96xf32> to vector<2x8x8xf32>
    "tpu.trace_start"() <{level = 10 : i32, message = "bqd,bkd->bqk"}> : () -> ()
    %cst_98 = arith.constant dense<0.000000e+00> : vector<2x8x8xf32>
    %193 = tpu.matmul %190, %191, %cst_98 {dimension_numbers = #tpu.dot_dimension_numbers<[2], [2], [1], [1], [0, 0, 0, 1, 1, 1], [0], [0]>} : vector<2x8x8xf32>, vector<2x8x8xf32>, vector<2x8x8xf32> -> vector<2x8x8xf32>
    "tpu.trace_stop"() : () -> ()
    %cst_99 = arith.constant 0.353553385 : f32
    %194 = vector.broadcast %cst_99 : f32 to vector<2x8x8xf32>
    %195 = arith.mulf %193, %194 : vector<2x8x8xf32>
    %cst_100 = arith.constant dense<0xFF800000> : vector<2x8xf32>
    %196 = vector.multi_reduction <maximumf>, %195, %cst_100 [2] : vector<2x8x8xf32> to vector<2x8xf32>
    %197 = vector.shape_cast %196 : vector<2x8xf32> to vector<2x8x1xf32>
    %198 = vector.broadcast %197 : vector<2x8x1xf32> to vector<2x8x8xf32>
    %199 = arith.subf %195, %198 : vector<2x8x8xf32>
    %200 = math.exp %199 : vector<2x8x8xf32>
    %cst_101 = arith.constant dense<0.000000e+00> : vector<2x8xf32>
    %201 = vector.multi_reduction <add>, %200, %cst_101 [2] : vector<2x8x8xf32> to vector<2x8xf32>
    %202 = vector.shape_cast %201 : vector<2x8xf32> to vector<2x8x1xf32>
    %203 = tpu.reciprocal %202 {approx = true} : vector<2x8x1xf32> -> vector<2x8x1xf32>
    %204 = vector.broadcast %203 : vector<2x8x1xf32> to vector<2x8x8xf32>
    %205 = arith.mulf %200, %204 : vector<2x8x8xf32>
    "tpu.trace_start"() <{level = 10 : i32, message = "bqk,bkd->bqd"}> : () -> ()
    %cst_102 = arith.constant dense<0.000000e+00> : vector<2x8x8xf32>
    %206 = tpu.matmul %205, %192, %cst_102 {dimension_numbers = #tpu.dot_dimension_numbers<[2], [1], [1], [2], [0, 0, 0, 1, 1, 2], [0], [0]>} : vector<2x8x8xf32>, vector<2x8x8xf32>, vector<2x8x8xf32> -> vector<2x8x8xf32>
    "tpu.trace_stop"() : () -> ()
    %207 = vector.shape_cast %206 : vector<2x8x8xf32> to vector<16x8xf32>
    %c1_103 = arith.constant 1 : index
    %c0_104 = arith.constant 0 : index
    %c0_105 = arith.constant 0 : index
    %c0_106 = arith.constant 0 : index
    %208 = vector.load %arg5[%c1_103, %c0_104, %c0_105, %c0_106] : memref<2x4x8x32xf32, #tpu.memory_space<vmem>>, vector<1x1x8x32xf32>
    %209 = vector.shape_cast %208 : vector<1x1x8x32xf32> to vector<8x32xf32>
    %cst_107 = arith.constant dense<0.000000e+00> : vector<16x32xf32>
    %210 = tpu.matmul %207, %209, %cst_107 {dimension_numbers = #tpu.dot_dimension_numbers<[1], [0], [0], [1], [0, 0, 1, 1], [], []>} : vector<16x8xf32>, vector<8x32xf32>, vector<16x32xf32> -> vector<16x32xf32>
    %211 = arith.addf %189, %210 : vector<16x32xf32>
    %212 = vector.extract_strided_slice %188 {offsets = [0, 0, 8], sizes = [2, 8, 8], strides = [1, 1, 1]} : vector<2x8x96xf32> to vector<2x8x8xf32>
    %213 = vector.extract_strided_slice %188 {offsets = [0, 0, 40], sizes = [2, 8, 8], strides = [1, 1, 1]} : vector<2x8x96xf32> to vector<2x8x8xf32>
    %214 = vector.extract_strided_slice %188 {offsets = [0, 0, 72], sizes = [2, 8, 8], strides = [1, 1, 1]} : vector<2x8x96xf32> to vector<2x8x8xf32>
    "tpu.trace_start"() <{level = 10 : i32, message = "bqd,bkd->bqk"}> : () -> ()
    %cst_108 = arith.constant dense<0.000000e+00> : vector<2x8x8xf32>
    %215 = tpu.matmul %212, %213, %cst_108 {dimension_numbers = #tpu.dot_dimension_numbers<[2], [2], [1], [1], [0, 0, 0, 1, 1, 1], [0], [0]>} : vector<2x8x8xf32>, vector<2x8x8xf32>, vector<2x8x8xf32> -> vector<2x8x8xf32>
    "tpu.trace_stop"() : () -> ()
    %cst_109 = arith.constant 0.353553385 : f32
    %216 = vector.broadcast %cst_109 : f32 to vector<2x8x8xf32>
    %217 = arith.mulf %215, %216 : vector<2x8x8xf32>
    %cst_110 = arith.constant dense<0xFF800000> : vector<2x8xf32>
    %218 = vector.multi_reduction <maximumf>, %217, %cst_110 [2] : vector<2x8x8xf32> to vector<2x8xf32>
    %219 = vector.shape_cast %218 : vector<2x8xf32> to vector<2x8x1xf32>
    %220 = vector.broadcast %219 : vector<2x8x1xf32> to vector<2x8x8xf32>
    %221 = arith.subf %217, %220 : vector<2x8x8xf32>
    %222 = math.exp %221 : vector<2x8x8xf32>
    %cst_111 = arith.constant dense<0.000000e+00> : vector<2x8xf32>
    %223 = vector.multi_reduction <add>, %222, %cst_111 [2] : vector<2x8x8xf32> to vector<2x8xf32>
    %224 = vector.shape_cast %223 : vector<2x8xf32> to vector<2x8x1xf32>
    %225 = tpu.reciprocal %224 {approx = true} : vector<2x8x1xf32> -> vector<2x8x1xf32>
    %226 = vector.broadcast %225 : vector<2x8x1xf32> to vector<2x8x8xf32>
    %227 = arith.mulf %222, %226 : vector<2x8x8xf32>
    "tpu.trace_start"() <{level = 10 : i32, message = "bqk,bkd->bqd"}> : () -> ()
    %cst_112 = arith.constant dense<0.000000e+00> : vector<2x8x8xf32>
    %228 = tpu.matmul %227, %214, %cst_112 {dimension_numbers = #tpu.dot_dimension_numbers<[2], [1], [1], [2], [0, 0, 0, 1, 1, 2], [0], [0]>} : vector<2x8x8xf32>, vector<2x8x8xf32>, vector<2x8x8xf32> -> vector<2x8x8xf32>
    "tpu.trace_stop"() : () -> ()
    %229 = vector.shape_cast %228 : vector<2x8x8xf32> to vector<16x8xf32>
    %c1_113 = arith.constant 1 : index
    %c1_114 = arith.constant 1 : index
    %c0_115 = arith.constant 0 : index
    %c0_116 = arith.constant 0 : index
    %230 = vector.load %arg5[%c1_113, %c1_114, %c0_115, %c0_116] : memref<2x4x8x32xf32, #tpu.memory_space<vmem>>, vector<1x1x8x32xf32>
    %231 = vector.shape_cast %230 : vector<1x1x8x32xf32> to vector<8x32xf32>
    %cst_117 = arith.constant dense<0.000000e+00> : vector<16x32xf32>
    %232 = tpu.matmul %229, %231, %cst_117 {dimension_numbers = #tpu.dot_dimension_numbers<[1], [0], [0], [1], [0, 0, 1, 1], [], []>} : vector<16x8xf32>, vector<8x32xf32>, vector<16x32xf32> -> vector<16x32xf32>
    %233 = arith.addf %211, %232 : vector<16x32xf32>
    %234 = vector.extract_strided_slice %188 {offsets = [0, 0, 16], sizes = [2, 8, 8], strides = [1, 1, 1]} : vector<2x8x96xf32> to vector<2x8x8xf32>
    %235 = vector.extract_strided_slice %188 {offsets = [0, 0, 48], sizes = [2, 8, 8], strides = [1, 1, 1]} : vector<2x8x96xf32> to vector<2x8x8xf32>
    %236 = vector.extract_strided_slice %188 {offsets = [0, 0, 80], sizes = [2, 8, 8], strides = [1, 1, 1]} : vector<2x8x96xf32> to vector<2x8x8xf32>
    "tpu.trace_start"() <{level = 10 : i32, message = "bqd,bkd->bqk"}> : () -> ()
    %cst_118 = arith.constant dense<0.000000e+00> : vector<2x8x8xf32>
    %237 = tpu.matmul %234, %235, %cst_118 {dimension_numbers = #tpu.dot_dimension_numbers<[2], [2], [1], [1], [0, 0, 0, 1, 1, 1], [0], [0]>} : vector<2x8x8xf32>, vector<2x8x8xf32>, vector<2x8x8xf32> -> vector<2x8x8xf32>
    "tpu.trace_stop"() : () -> ()
    %cst_119 = arith.constant 0.353553385 : f32
    %238 = vector.broadcast %cst_119 : f32 to vector<2x8x8xf32>
    %239 = arith.mulf %237, %238 : vector<2x8x8xf32>
    %cst_120 = arith.constant dense<0xFF800000> : vector<2x8xf32>
    %240 = vector.multi_reduction <maximumf>, %239, %cst_120 [2] : vector<2x8x8xf32> to vector<2x8xf32>
    %241 = vector.shape_cast %240 : vector<2x8xf32> to vector<2x8x1xf32>
    %242 = vector.broadcast %241 : vector<2x8x1xf32> to vector<2x8x8xf32>
    %243 = arith.subf %239, %242 : vector<2x8x8xf32>
    %244 = math.exp %243 : vector<2x8x8xf32>
    %cst_121 = arith.constant dense<0.000000e+00> : vector<2x8xf32>
    %245 = vector.multi_reduction <add>, %244, %cst_121 [2] : vector<2x8x8xf32> to vector<2x8xf32>
    %246 = vector.shape_cast %245 : vector<2x8xf32> to vector<2x8x1xf32>
    %247 = tpu.reciprocal %246 {approx = true} : vector<2x8x1xf32> -> vector<2x8x1xf32>
    %248 = vector.broadcast %247 : vector<2x8x1xf32> to vector<2x8x8xf32>
    %249 = arith.mulf %244, %248 : vector<2x8x8xf32>
    "tpu.trace_start"() <{level = 10 : i32, message = "bqk,bkd->bqd"}> : () -> ()
    %cst_122 = arith.constant dense<0.000000e+00> : vector<2x8x8xf32>
    %250 = tpu.matmul %249, %236, %cst_122 {dimension_numbers = #tpu.dot_dimension_numbers<[2], [1], [1], [2], [0, 0, 0, 1, 1, 2], [0], [0]>} : vector<2x8x8xf32>, vector<2x8x8xf32>, vector<2x8x8xf32> -> vector<2x8x8xf32>
    "tpu.trace_stop"() : () -> ()
    %251 = vector.shape_cast %250 : vector<2x8x8xf32> to vector<16x8xf32>
    %c1_123 = arith.constant 1 : index
    %c2_124 = arith.constant 2 : index
    %c0_125 = arith.constant 0 : index
    %c0_126 = arith.constant 0 : index
    %252 = vector.load %arg5[%c1_123, %c2_124, %c0_125, %c0_126] : memref<2x4x8x32xf32, #tpu.memory_space<vmem>>, vector<1x1x8x32xf32>
    %253 = vector.shape_cast %252 : vector<1x1x8x32xf32> to vector<8x32xf32>
    %cst_127 = arith.constant dense<0.000000e+00> : vector<16x32xf32>
    %254 = tpu.matmul %251, %253, %cst_127 {dimension_numbers = #tpu.dot_dimension_numbers<[1], [0], [0], [1], [0, 0, 1, 1], [], []>} : vector<16x8xf32>, vector<8x32xf32>, vector<16x32xf32> -> vector<16x32xf32>
    %255 = arith.addf %233, %254 : vector<16x32xf32>
    %256 = vector.extract_strided_slice %188 {offsets = [0, 0, 24], sizes = [2, 8, 8], strides = [1, 1, 1]} : vector<2x8x96xf32> to vector<2x8x8xf32>
    %257 = vector.extract_strided_slice %188 {offsets = [0, 0, 56], sizes = [2, 8, 8], strides = [1, 1, 1]} : vector<2x8x96xf32> to vector<2x8x8xf32>
    %258 = vector.extract_strided_slice %188 {offsets = [0, 0, 88], sizes = [2, 8, 8], strides = [1, 1, 1]} : vector<2x8x96xf32> to vector<2x8x8xf32>
    "tpu.trace_start"() <{level = 10 : i32, message = "bqd,bkd->bqk"}> : () -> ()
    %cst_128 = arith.constant dense<0.000000e+00> : vector<2x8x8xf32>
    %259 = tpu.matmul %256, %257, %cst_128 {dimension_numbers = #tpu.dot_dimension_numbers<[2], [2], [1], [1], [0, 0, 0, 1, 1, 1], [0], [0]>} : vector<2x8x8xf32>, vector<2x8x8xf32>, vector<2x8x8xf32> -> vector<2x8x8xf32>
    "tpu.trace_stop"() : () -> ()
    %cst_129 = arith.constant 0.353553385 : f32
    %260 = vector.broadcast %cst_129 : f32 to vector<2x8x8xf32>
    %261 = arith.mulf %259, %260 : vector<2x8x8xf32>
    %cst_130 = arith.constant dense<0xFF800000> : vector<2x8xf32>
    %262 = vector.multi_reduction <maximumf>, %261, %cst_130 [2] : vector<2x8x8xf32> to vector<2x8xf32>
    %263 = vector.shape_cast %262 : vector<2x8xf32> to vector<2x8x1xf32>
    %264 = vector.broadcast %263 : vector<2x8x1xf32> to vector<2x8x8xf32>
    %265 = arith.subf %261, %264 : vector<2x8x8xf32>
    %266 = math.exp %265 : vector<2x8x8xf32>
    %cst_131 = arith.constant dense<0.000000e+00> : vector<2x8xf32>
    %267 = vector.multi_reduction <add>, %266, %cst_131 [2] : vector<2x8x8xf32> to vector<2x8xf32>
    %268 = vector.shape_cast %267 : vector<2x8xf32> to vector<2x8x1xf32>
    %269 = tpu.reciprocal %268 {approx = true} : vector<2x8x1xf32> -> vector<2x8x1xf32>
    %270 = vector.broadcast %269 : vector<2x8x1xf32> to vector<2x8x8xf32>
    %271 = arith.mulf %266, %270 : vector<2x8x8xf32>
    "tpu.trace_start"() <{level = 10 : i32, message = "bqk,bkd->bqd"}> : () -> ()
    %cst_132 = arith.constant dense<0.000000e+00> : vector<2x8x8xf32>
    %272 = tpu.matmul %271, %258, %cst_132 {dimension_numbers = #tpu.dot_dimension_numbers<[2], [1], [1], [2], [0, 0, 0, 1, 1, 2], [0], [0]>} : vector<2x8x8xf32>, vector<2x8x8xf32>, vector<2x8x8xf32> -> vector<2x8x8xf32>
    "tpu.trace_stop"() : () -> ()
    %273 = vector.shape_cast %272 : vector<2x8x8xf32> to vector<16x8xf32>
    %c1_133 = arith.constant 1 : index
    %c3_134 = arith.constant 3 : index
    %c0_135 = arith.constant 0 : index
    %c0_136 = arith.constant 0 : index
    %274 = vector.load %arg5[%c1_133, %c3_134, %c0_135, %c0_136] : memref<2x4x8x32xf32, #tpu.memory_space<vmem>>, vector<1x1x8x32xf32>
    %275 = vector.shape_cast %274 : vector<1x1x8x32xf32> to vector<8x32xf32>
    %cst_137 = arith.constant dense<0.000000e+00> : vector<16x32xf32>
    %276 = tpu.matmul %273, %275, %cst_137 {dimension_numbers = #tpu.dot_dimension_numbers<[1], [0], [0], [1], [0, 0, 1, 1], [], []>} : vector<16x8xf32>, vector<8x32xf32>, vector<16x32xf32> -> vector<16x32xf32>
    %277 = arith.addf %255, %276 : vector<16x32xf32>
    %c1_138 = arith.constant 1 : index
    %c0_139 = arith.constant 0 : index
    %c0_140 = arith.constant 0 : index
    %278 = vector.load %arg6[%c1_138, %c0_139, %c0_140] : memref<2x1x32xf32, #tpu.memory_space<vmem>>, vector<1x1x32xf32>
    %279 = vector.shape_cast %278 : vector<1x1x32xf32> to vector<1x32xf32>
    %280 = vector.broadcast %279 : vector<1x32xf32> to vector<16x32xf32>
    %281 = arith.addf %277, %280 : vector<16x32xf32>
    %282 = arith.addf %281, %180 : vector<16x32xf32>
    %c1_141 = arith.constant 1 : index
    %c0_142 = arith.constant 0 : index
    %c0_143 = arith.constant 0 : index
    %283 = vector.load %arg7[%c1_141, %c0_142, %c0_143] : memref<2x1x32xf32, #tpu.memory_space<vmem>>, vector<1x1x32xf32>
    %284 = vector.shape_cast %283 : vector<1x1x32xf32> to vector<1x32xf32>
    %c1_144 = arith.constant 1 : index
    %c0_145 = arith.constant 0 : index
    %c0_146 = arith.constant 0 : index
    %285 = vector.load %arg8[%c1_144, %c0_145, %c0_146] : memref<2x1x32xf32, #tpu.memory_space<vmem>>, vector<1x1x32xf32>
    %286 = vector.shape_cast %285 : vector<1x1x32xf32> to vector<1x32xf32>
    %cst_147 = arith.constant dense<0.000000e+00> : vector<16xf32>
    %287 = vector.multi_reduction <add>, %282, %cst_147 [1] : vector<16x32xf32> to vector<16xf32>
    %288 = vector.shape_cast %287 : vector<16xf32> to vector<16x1xf32>
    %cst_148 = arith.constant 3.200000e+01 : f32
    %289 = vector.broadcast %cst_148 : f32 to vector<16x1xf32>
    %290 = arith.divf %288, %289 : vector<16x1xf32>
    %291 = vector.broadcast %290 : vector<16x1xf32> to vector<16x32xf32>
    %292 = arith.subf %282, %291 : vector<16x32xf32>
    %293 = arith.mulf %292, %292 : vector<16x32xf32>
    %cst_149 = arith.constant dense<0.000000e+00> : vector<16xf32>
    %294 = vector.multi_reduction <add>, %293, %cst_149 [1] : vector<16x32xf32> to vector<16xf32>
    %295 = vector.shape_cast %294 : vector<16xf32> to vector<16x1xf32>
    %cst_150 = arith.constant 3.200000e+01 : f32
    %296 = vector.broadcast %cst_150 : f32 to vector<16x1xf32>
    %297 = arith.divf %295, %296 : vector<16x1xf32>
    %298 = vector.broadcast %290 : vector<16x1xf32> to vector<16x32xf32>
    %299 = arith.subf %282, %298 : vector<16x32xf32>
    %cst_151 = arith.constant 9.99999974E-6 : f32
    %300 = vector.broadcast %cst_151 : f32 to vector<16x1xf32>
    %301 = arith.addf %297, %300 : vector<16x1xf32>
    %302 = math.rsqrt %301 : vector<16x1xf32>
    %303 = vector.broadcast %302 : vector<16x1xf32> to vector<16x32xf32>
    %304 = arith.mulf %299, %303 : vector<16x32xf32>
    %305 = vector.broadcast %284 : vector<1x32xf32> to vector<16x32xf32>
    %306 = arith.mulf %304, %305 : vector<16x32xf32>
    %307 = vector.broadcast %286 : vector<1x32xf32> to vector<16x32xf32>
    %308 = arith.addf %306, %307 : vector<16x32xf32>
    %c1_152 = arith.constant 1 : index
    %c0_153 = arith.constant 0 : index
    %c0_154 = arith.constant 0 : index
    %309 = vector.load %arg11[%c1_152, %c0_153, %c0_154] : memref<2x32x64xf32, #tpu.memory_space<vmem>>, vector<1x32x64xf32>
    %310 = vector.shape_cast %309 : vector<1x32x64xf32> to vector<32x64xf32>
    %cst_155 = arith.constant dense<0.000000e+00> : vector<16x64xf32>
    %311 = tpu.matmul %308, %310, %cst_155 {dimension_numbers = #tpu.dot_dimension_numbers<[1], [0], [0], [1], [0, 0, 1, 1], [], []>} : vector<16x32xf32>, vector<32x64xf32>, vector<16x64xf32> -> vector<16x64xf32>
    %c1_156 = arith.constant 1 : index
    %c0_157 = arith.constant 0 : index
    %c0_158 = arith.constant 0 : index
    %312 = vector.load %arg12[%c1_156, %c0_157, %c0_158] : memref<2x1x64xf32, #tpu.memory_space<vmem>>, vector<1x1x64xf32>
    %313 = vector.shape_cast %312 : vector<1x1x64xf32> to vector<1x64xf32>
    %314 = vector.broadcast %313 : vector<1x64xf32> to vector<16x64xf32>
    %315 = arith.addf %311, %314 : vector<16x64xf32>
    %cst_159 = arith.constant 0.000000e+00 : f32
    %316 = vector.broadcast %cst_159 : f32 to vector<16x64xf32>
    %317 = arith.maximumf %315, %316 : vector<16x64xf32>
    %c1_160 = arith.constant 1 : index
    %c0_161 = arith.constant 0 : index
    %c0_162 = arith.constant 0 : index
    %318 = vector.load %arg13[%c1_160, %c0_161, %c0_162] : memref<2x64x32xf32, #tpu.memory_space<vmem>>, vector<1x64x32xf32>
    %319 = vector.shape_cast %318 : vector<1x64x32xf32> to vector<64x32xf32>
    %cst_163 = arith.constant dense<0.000000e+00> : vector<16x32xf32>
    %320 = tpu.matmul %317, %319, %cst_163 {dimension_numbers = #tpu.dot_dimension_numbers<[1], [0], [0], [1], [0, 0, 1, 1], [], []>} : vector<16x64xf32>, vector<64x32xf32>, vector<16x32xf32> -> vector<16x32xf32>
    %c1_164 = arith.constant 1 : index
    %c0_165 = arith.constant 0 : index
    %c0_166 = arith.constant 0 : index
    %321 = vector.load %arg14[%c1_164, %c0_165, %c0_166] : memref<2x1x32xf32, #tpu.memory_space<vmem>>, vector<1x1x32xf32>
    %322 = vector.shape_cast %321 : vector<1x1x32xf32> to vector<1x32xf32>
    %323 = vector.broadcast %322 : vector<1x32xf32> to vector<16x32xf32>
    %324 = arith.addf %320, %323 : vector<16x32xf32>
    %325 = arith.addf %324, %308 : vector<16x32xf32>
    %c1_167 = arith.constant 1 : index
    %c0_168 = arith.constant 0 : index
    %c0_169 = arith.constant 0 : index
    %326 = vector.load %arg9[%c1_167, %c0_168, %c0_169] : memref<2x1x32xf32, #tpu.memory_space<vmem>>, vector<1x1x32xf32>
    %327 = vector.shape_cast %326 : vector<1x1x32xf32> to vector<1x32xf32>
    %c1_170 = arith.constant 1 : index
    %c0_171 = arith.constant 0 : index
    %c0_172 = arith.constant 0 : index
    %328 = vector.load %arg10[%c1_170, %c0_171, %c0_172] : memref<2x1x32xf32, #tpu.memory_space<vmem>>, vector<1x1x32xf32>
    %329 = vector.shape_cast %328 : vector<1x1x32xf32> to vector<1x32xf32>
    %cst_173 = arith.constant dense<0.000000e+00> : vector<16xf32>
    %330 = vector.multi_reduction <add>, %325, %cst_173 [1] : vector<16x32xf32> to vector<16xf32>
    %331 = vector.shape_cast %330 : vector<16xf32> to vector<16x1xf32>
    %cst_174 = arith.constant 3.200000e+01 : f32
    %332 = vector.broadcast %cst_174 : f32 to vector<16x1xf32>
    %333 = arith.divf %331, %332 : vector<16x1xf32>
    %334 = vector.broadcast %333 : vector<16x1xf32> to vector<16x32xf32>
    %335 = arith.subf %325, %334 : vector<16x32xf32>
    %336 = arith.mulf %335, %335 : vector<16x32xf32>
    %cst_175 = arith.constant dense<0.000000e+00> : vector<16xf32>
    %337 = vector.multi_reduction <add>, %336, %cst_175 [1] : vector<16x32xf32> to vector<16xf32>
    %338 = vector.shape_cast %337 : vector<16xf32> to vector<16x1xf32>
    %cst_176 = arith.constant 3.200000e+01 : f32
    %339 = vector.broadcast %cst_176 : f32 to vector<16x1xf32>
    %340 = arith.divf %338, %339 : vector<16x1xf32>
    %341 = vector.broadcast %333 : vector<16x1xf32> to vector<16x32xf32>
    %342 = arith.subf %325, %341 : vector<16x32xf32>
    %cst_177 = arith.constant 9.99999974E-6 : f32
    %343 = vector.broadcast %cst_177 : f32 to vector<16x1xf32>
    %344 = arith.addf %340, %343 : vector<16x1xf32>
    %345 = math.rsqrt %344 : vector<16x1xf32>
    %346 = vector.broadcast %345 : vector<16x1xf32> to vector<16x32xf32>
    %347 = arith.mulf %342, %346 : vector<16x32xf32>
    %348 = vector.broadcast %327 : vector<1x32xf32> to vector<16x32xf32>
    %349 = arith.mulf %347, %348 : vector<16x32xf32>
    %350 = vector.broadcast %329 : vector<1x32xf32> to vector<16x32xf32>
    %351 = arith.addf %349, %350 : vector<16x32xf32>
    %c0_178 = arith.constant 0 : index
    %c0_179 = arith.constant 0 : index
    %352 = vector.load %arg15[%c0_178, %c0_179] : memref<32x128xf32, #tpu.memory_space<vmem>>, vector<32x128xf32>
    %cst_180 = arith.constant dense<0.000000e+00> : vector<16x128xf32>
    %353 = tpu.matmul %351, %352, %cst_180 {dimension_numbers = #tpu.dot_dimension_numbers<[1], [0], [0], [1], [0, 0, 1, 1], [], []>} : vector<16x32xf32>, vector<32x128xf32>, vector<16x128xf32> -> vector<16x128xf32>
    %c0_181 = arith.constant 0 : index
    %c0_182 = arith.constant 0 : index
    %354 = vector.load %arg16[%c0_181, %c0_182] : memref<1x128xf32, #tpu.memory_space<vmem>>, vector<1x128xf32>
    %355 = vector.broadcast %354 : vector<1x128xf32> to vector<16x128xf32>
    %356 = arith.addf %353, %355 : vector<16x128xf32>
    %c0_183 = arith.constant 0 : index
    %c0_184 = arith.constant 0 : index
    %357 = vector.load %arg17[%c0_183, %c0_184] : memref<16x128xf32, #tpu.memory_space<vmem>>, vector<16x128xf32>
    tpu.vector_store %arg17[%c0_183, %c0_184], %356 {strides = array<i32>} : memref<16x128xf32, #tpu.memory_space<vmem>>, vector<16x128xf32>,
    return
  }
}

</mosaic_0001>

<llo_original>
// kernel: tpu_custom_call.1
$region0: #{tpu_custom_call.1}
  #allocation0 [shape = 'u32[]', space=smem, size = 0x4, offset = 0x4, fixed_abs, tag = 'smem constant byte address 0x4 - core index']
  #allocation1 [shape = 'u32[144,128]{1,0:T(1,128)}', space=vmem, size = 0x12000, scoped, tag = 'internal scratch']
  %s0 = inlined_call_operand.vmem [shape: s32[16,1], index: 0, kind: input, shape index: {}]
  %s1 = inlined_call_operand.vmem [shape: f32[16,32], index: 1, kind: input, shape index: {}]
  %s2 = inlined_call_operand.vmem [shape: f32[64,32], index: 2, kind: input, shape index: {}]
  %s3 = inlined_call_operand.vmem [shape: f32[2,32,96], index: 3, kind: input, shape index: {}]
  %s4 = inlined_call_operand.vmem [shape: f32[2,1,96], index: 4, kind: input, shape index: {}]
  %s5 = inlined_call_operand.vmem [shape: f32[2,4,8,32], index: 5, kind: input, shape index: {}]
  %s6 = inlined_call_operand.vmem [shape: f32[2,1,32], index: 6, kind: input, shape index: {}]
  %s7 = inlined_call_operand.vmem [shape: f32[2,1,32], index: 7, kind: input, shape index: {}]
  %s8 = inlined_call_operand.vmem [shape: f32[2,1,32], index: 8, kind: input, shape index: {}]
  %s9 = inlined_call_operand.vmem [shape: f32[2,1,32], index: 9, kind: input, shape index: {}]
  %s10 = inlined_call_operand.vmem [shape: f32[2,1,32], index: 10, kind: input, shape index: {}]
  %s11 = inlined_call_operand.vmem [shape: f32[2,32,64], index: 11, kind: input, shape index: {}]
  %s12 = inlined_call_operand.vmem [shape: f32[2,1,64], index: 12, kind: input, shape index: {}]
  %s13 = inlined_call_operand.vmem [shape: f32[2,64,32], index: 13, kind: input, shape index: {}]
  %s14 = inlined_call_operand.vmem [shape: f32[2,1,32], index: 14, kind: input, shape index: {}]
  %s15 = inlined_call_operand.vmem [shape: f32[32,128], index: 15, kind: input, shape index: {}]
  %s16 = inlined_call_operand.vmem [shape: f32[1,128], index: 16, kind: input, shape index: {}]
  %s17 = inlined_call_operand.hbm [shape: f32[16,128], index: 17, kind: output, shape index: {}]
  %s18 = sld [smem:[#allocation0]]
  $region78: #{tpu_custom_call.1} parent=0
    _
  %s20 = ssub.s32 1, %s18
  %s21 = scalar_select 0, %s20, %s18
  $region1: #{tpu_custom_call.1} parent=0
    #allocation2 [shape = 'u8[8192]{0}', space=vmem, size = 0x2000, scoped, tag = 'output window, operand 0, single buffered']
    #allocation3 [shape = 's32[1]{0}', space=sflag, size = 0x4, scoped, tag = 'scoped memory for tpu_custom_call.1']
    %22 = vsyncpa [#allocation3], 0
    // Predicated region
    $region2: #{tpu_custom_call.1} parent=1 // pred_check
      _
    $region3: #{tpu_custom_call.1} parent=1 // pred_check_branch
      %24 = sbr.rel (0) target = $region5
    $region4: #{tpu_custom_call.1} parent=1 // pred_region
      _
    $region5: #{tpu_custom_call.1} parent=1 // pred_fallthru
      _
    // Predicated region
    $region6: #{tpu_custom_call.1} parent=1 // pred_check
      _
    $region7: #{tpu_custom_call.1} parent=1 // pred_check_branch
      %26 = sbr.rel (0) target = $region9
    $region8: #{tpu_custom_call.1} parent=1 // pred_region
      _
    $region9: #{tpu_custom_call.1} parent=1 // pred_fallthru
      _
    // Predicated region
    $region10: #{tpu_custom_call.1} parent=1 // pred_check
      _
    $region11: #{tpu_custom_call.1} parent=1 // pred_check_branch
      %28 = sbr.rel (0) target = $region13
    $region12: #{tpu_custom_call.1} parent=1 // pred_region
      _
    $region13: #{tpu_custom_call.1} parent=1 // pred_fallthru
      _
    // Predicated region
    $region14: #{tpu_custom_call.1} parent=1 // pred_check
      _
    $region15: #{tpu_custom_call.1} parent=1 // pred_check_branch
      %30 = sbr.rel (0) target = $region17
    $region16: #{tpu_custom_call.1} parent=1 // pred_region
      _
    $region17: #{tpu_custom_call.1} parent=1 // pred_fallthru
      _
    // Predicated region
    $region18: #{tpu_custom_call.1} parent=1 // pred_check
      _
    $region19: #{tpu_custom_call.1} parent=1 // pred_check_branch
      %32 = sbr.rel (0) target = $region21
    $region20: #{tpu_custom_call.1} parent=1 // pred_region
      _
    $region21: #{tpu_custom_call.1} parent=1 // pred_fallthru
      _
    // Predicated region
    $region22: #{tpu_custom_call.1} parent=1 // pred_check
      _
    $region23: #{tpu_custom_call.1} parent=1 // pred_check_branch
      %34 = sbr.rel (0) target = $region25
    $region24: #{tpu_custom_call.1} parent=1 // pred_region
      _
    $region25: #{tpu_custom_call.1} parent=1 // pred_fallthru
      _
    // Predicated region
    $region26: #{tpu_custom_call.1} parent=1 // pred_check
      _
    $region27: #{tpu_custom_call.1} parent=1 // pred_check_branch
      %36 = sbr.rel (0) target = $region29
    $region28: #{tpu_custom_call.1} parent=1 // pred_region
      _
    $region29: #{tpu_custom_call.1} parent=1 // pred_fallthru
      _
    // Predicated region
    $region30: #{tpu_custom_call.1} parent=1 // pred_check
      _
    $region31: #{tpu_custom_call.1} parent=1 // pred_check_branch
      %38 = sbr.rel (0) target = $region33
    $region32: #{tpu_custom_call.1} parent=1 // pred_region
      _
    $region33: #{tpu_custom_call.1} parent=1 // pred_fallthru
      _
    // Predicated region
    $region34: #{tpu_custom_call.1} parent=1 // pred_check
      _
    $region35: #{tpu_custom_call.1} parent=1 // pred_check_branch
      %40 = sbr.rel (0) target = $region37
    $region36: #{tpu_custom_call.1} parent=1 // pred_region
      _
    $region37: #{tpu_custom_call.1} parent=1 // pred_fallthru
      _
    // Predicated region
    $region38: #{tpu_custom_call.1} parent=1 // pred_check
      _
    $region39: #{tpu_custom_call.1} parent=1 // pred_check_branch
      %42 = sbr.rel (0) target = $region41
    $region40: #{tpu_custom_call.1} parent=1 // pred_region
      _
    $region41: #{tpu_custom_call.1} parent=1 // pred_fallthru
      _
    // Predicated region
    $region42: #{tpu_custom_call.1} parent=1 // pred_check
      _
    $region43: #{tpu_custom_call.1} parent=1 // pred_check_branch
      %44 = sbr.rel (0) target = $region45
    $region44: #{tpu_custom_call.1} parent=1 // pred_region
      _
    $region45: #{tpu_custom_call.1} parent=1 // pred_fallthru
      _
    // Predicated region
    $region46: #{tpu_custom_call.1} parent=1 // pred_check
      _
    $region47: #{tpu_custom_call.1} parent=1 // pred_check_branch
      %46 = sbr.rel (0) target = $region49
    $region48: #{tpu_custom_call.1} parent=1 // pred_region
      _
    $region49: #{tpu_custom_call.1} parent=1 // pred_fallthru
      _
    // Predicated region
    $region50: #{tpu_custom_call.1} parent=1 // pred_check
      _
    $region51: #{tpu_custom_call.1} parent=1 // pred_check_branch
      %48 = sbr.rel (0) target = $region53
    $region52: #{tpu_custom_call.1} parent=1 // pred_region
      _
    $region53: #{tpu_custom_call.1} parent=1 // pred_fallthru
      _
    // Predicated region
    $region54: #{tpu_custom_call.1} parent=1 // pred_check
      _
    $region55: #{tpu_custom_call.1} parent=1 // pred_check_branch
      %50 = sbr.rel (0) target = $region57
    $region56: #{tpu_custom_call.1} parent=1 // pred_region
      _
    $region57: #{tpu_custom_call.1} parent=1 // pred_fallthru
      _
    // Predicated region
    $region58: #{tpu_custom_call.1} parent=1 // pred_check
      _
    $region59: #{tpu_custom_call.1} parent=1 // pred_check_branch
      %52 = sbr.rel (0) target = $region61
    $region60: #{tpu_custom_call.1} parent=1 // pred_region
      _
    $region61: #{tpu_custom_call.1} parent=1 // pred_fallthru
      _
    // Predicated region
    $region62: #{tpu_custom_call.1} parent=1 // pred_check
      _
    $region63: #{tpu_custom_call.1} parent=1 // pred_check_branch
      %54 = sbr.rel (0) target = $region65
    $region64: #{tpu_custom_call.1} parent=1 // pred_region
      _
    $region65: #{tpu_custom_call.1} parent=1 // pred_fallthru
      _
    // Predicated region
    $region66: #{tpu_custom_call.1} parent=1 // pred_check
      _
    $region67: #{tpu_custom_call.1} parent=1 // pred_check_branch
      %56 = sbr.rel (0) target = $region69
    $region68: #{tpu_custom_call.1} parent=1 // pred_region
      _
    $region69: #{tpu_custom_call.1} parent=1 // pred_fallthru
      _
    %v57 = vld [vmem:[%s0] sm:$0xff]
    %v58 = vld [vmem:[%s0 + $0x8] sm:$0xff]
    %v59 = vlaneseq
    %v60 = vand.u32 %v59, 127
    %61 = vset.pattern.permute.xlu0 0
    %62 = vperm.xlu0 %61, %v57
    %v63 = vpop.permute.xlu0 %62
    %64 = vset.pattern.permute.xlu0 0
    %65 = vperm.xlu0 %64, %v58
    %v66 = vpop.permute.xlu0 %65
    %vm67 = vcmp.eq.s32.totalorder %v60, %v63
    %vm68 = vcmp.eq.s32.totalorder %v60, %v66
    %v69 = vsel %vm67, 1, 0
    %v70 = vsel %vm68, 1, 0
    %v71 = vcvt.s32.f32 %v69
    %v72 = vcvt.s32.f32 %v70
    %v73 = vld [vmem:[%s2] sm:$0xff]
    %v74 = vld [vmem:[%s2 + $0x8] sm:$0xff]
    %v75 = vld [vmem:[%s2 + $0x10] sm:$0xff]
    %v76 = vld [vmem:[%s2 + $0x18] sm:$0xff]
    %v77 = vld [vmem:[%s2 + $0x20] sm:$0xff]
    %v78 = vld [vmem:[%s2 + $0x28] sm:$0xff]
    %v79 = vld [vmem:[%s2 + $0x30] sm:$0xff]
    %v80 = vld [vmem:[%s2 + $0x38] sm:$0xff]
    %v81 = vld [vmem:[%s1] sm:$0xff]
    %v82 = vld [vmem:[%s1 + $0x8] sm:$0xff]
    %vm83 = vcmask 523264
    %v85 = vsel %vm83, %v71, 0
    %v88 = vsel %vm83, %v72, 0
    %90 = vmatprep.subr.mxu0 0.0
    %91 = vmatpush1.msra.mxu0 %v73
    %92 = vmatprep.subr.mxu0 0.0
    %93 = vmatpush1.msra.mxu0 %v74
    %94 = vmatprep.subr.mxu0 0.0
    %95 = vmatpush1.msra.mxu0 %v75
    %96 = vmatprep.subr.mxu0 0.0
    %97 = vmatpush1.msra.mxu0 %v76
    %98 = vmatprep.subr.mxu0 0.0
    %99 = vmatpush1.msra.mxu0 %v77
    %100 = vmatprep.subr.mxu0 0.0
    %101 = vmatpush1.msra.mxu0 %v78
    %102 = vmatprep.subr.mxu0 0.0
    %103 = vmatpush1.msra.mxu0 %v79
    %104 = vmatprep.subr.mxu0 0.0
    %105 = vmatpush1.msra.mxu0 %v80
    %106 = vmatprep.subr.mxu0 0.0
    %107 = vmatpush1.msra.mxu0 0.0
    %108 = vmatprep.subr.mxu0 0.0
    %109 = vmatpush1.msra.mxu0 0.0
    %110 = vmatprep.subr.mxu0 0.0
    %111 = vmatpush1.msra.mxu0 0.0
    %112 = vmatprep.subr.mxu0 0.0
    %113 = vmatpush1.msra.mxu0 0.0
    %114 = vmatprep.subr.mxu0 0.0
    %115 = vmatpush1.msra.mxu0 0.0
    %116 = vmatprep.subr.mxu0 0.0
    %117 = vmatpush1.msra.mxu0 0.0
    %118 = vmatprep.subr.mxu0 0.0
    %119 = vmatpush1.msra.mxu0 0.0
    %120 = vmatprep.subr.mxu0 0.0
    %121 = vmatpush1.msra.mxu0 0.0
    %122 = vmatprep.subr.mxu0 0.0
    %123 = vmatpush1.msra.mxu0 0.0
    %124 = vmatprep.subr.mxu0 0.0
    %125 = vmatpush1.msra.mxu0 0.0
    %126 = vmatprep.subr.mxu0 0.0
    %127 = vmatpush1.msra.mxu0 0.0
    %128 = vmatprep.subr.mxu0 0.0
    %129 = vmatpush1.msra.mxu0 0.0
    %130 = vmatprep.subr.mxu0 0.0
    %131 = vmatpush1.msra.mxu0 0.0
    %132 = vmatprep.subr.mxu0 0.0
    %133 = vmatpush1.msra.mxu0 0.0
    %134 = vmatprep.subr.mxu0 0.0
    %135 = vmatpush1.msra.mxu0 0.0
    %136 = vmatprep.subr.mxu0 0.0
    %137 = vmatpush1.msra.mxu0 0.0
    %138 = vmatprep.subr.mxu0 0.0
    %139 = vmatpush1.msra.mxu0 0.0
    %140 = vmatprep.subr.mxu0 0.0
    %141 = vmatpush1.msra.mxu0 0.0
    %142 = vmatprep.subr.mxu0 0.0
    %143 = vmatpush1.msra.mxu0 0.0
    %144 = vmatprep.subr.mxu0 0.0
    %145 = vmatpush1.msra.mxu0 0.0
    %146 = vmatprep.subr.mxu0 0.0
    %147 = vmatpush1.msra.mxu0 0.0
    %148 = vmatprep.subr.mxu0 0.0
    %149 = vmatpush1.msra.mxu0 0.0
    %150 = vmatprep.subr.mxu0 0.0
    %151 = vmatpush1.msra.mxu0 0.0
    %152 = vmatprep.subr.mxu0 0.0
    %153 = vmatpush1.msra.mxu0 0.0
    %154 = vmatprep.mubr.f32.mxu0 0.0
    %155 = vmatmul.mubr.f32.gmra.mrb[0].mxu0 %v85
    %v156 = vpop.f32.mrb[0].mxu0
    %v157 = vadd.f32 %v81, %v156
    %v158 = vpop.f32.mrb[0].mxu0
    %159 = vmatprep.mubr.f32.mxu0 0.0
    %160 = vmatmul.mubr.f32.gmra.mrb[0].mxu0 %v88
    %v161 = vpop.f32.mrb[0].mxu0
    %v162 = vadd.f32 %v82, %v161
    %v163 = vpop.f32.mrb[0].mxu0
    %164 = vdwg.mxu0
    %v165 = vld [vmem:[%s3] sm:$0xff]
    %v166 = vld [vmem:[%s3 + $0x8] sm:$0xff]
    %v167 = vld [vmem:[%s3 + $0x10] sm:$0xff]
    %v168 = vld [vmem:[%s3 + $0x18] sm:$0xff]
    %v169 = vld [vmem:[%s4] sm:$0x1]
    %v171 = vlaneseq
    %v172 = vshrl.u32 %v171, 7
    %v173 = vsub.s32 0, %v172
    %v174 = vrot.slane %v169, %v173
    %vm176 = vcmask 261120
    %v178 = vsel %vm176, %v157, 0
    %v181 = vsel %vm176, %v162, 0
    %183 = vmatprep.subr.mxu0 0.0
    %184 = vmatpush1.msra.mxu0 %v165
    %185 = vmatprep.subr.mxu0 0.0
    %186 = vmatpush1.msra.mxu0 %v166
    %187 = vmatprep.subr.mxu0 0.0
    %188 = vmatpush1.msra.mxu0 %v167
    %189 = vmatprep.subr.mxu0 0.0
    %190 = vmatpush1.msra.mxu0 %v168
    %191 = vmatprep.subr.mxu0 0.0
    %192 = vmatpush1.msra.mxu0 0.0
    %193 = vmatprep.subr.mxu0 0.0
    %194 = vmatpush1.msra.mxu0 0.0
    %195 = vmatprep.subr.mxu0 0.0
    %196 = vmatpush1.msra.mxu0 0.0
    %197 = vmatprep.subr.mxu0 0.0
    %198 = vmatpush1.msra.mxu0 0.0
    %199 = vmatprep.subr.mxu0 0.0
    %200 = vmatpush1.msra.mxu0 0.0
    %201 = vmatprep.subr.mxu0 0.0
    %202 = vmatpush1.msra.mxu0 0.0
    %203 = vmatprep.subr.mxu0 0.0
    %204 = vmatpush1.msra.mxu0 0.0
    %205 = vmatprep.subr.mxu0 0.0
    %206 = vmatpush1.msra.mxu0 0.0
    %207 = vmatprep.subr.mxu0 0.0
    %208 = vmatpush1.msra.mxu0 0.0
    %209 = vmatprep.subr.mxu0 0.0
    %210 = vmatpush1.msra.mxu0 0.0
    %211 = vmatprep.subr.mxu0 0.0
    %212 = vmatpush1.msra.mxu0 0.0
    %213 = vmatprep.subr.mxu0 0.0
    %214 = vmatpush1.msra.mxu0 0.0
    %215 = vmatprep.subr.mxu0 0.0
    %216 = vmatpush1.msra.mxu0 0.0
    %217 = vmatprep.subr.mxu0 0.0
    %218 = vmatpush1.msra.mxu0 0.0
    %219 = vmatprep.subr.mxu0 0.0
    %220 = vmatpush1.msra.mxu0 0.0
    %221 = vmatprep.subr.mxu0 0.0
    %222 = vmatpush1.msra.mxu0 0.0
    %223 = vmatprep.subr.mxu0 0.0
    %224 = vmatpush1.msra.mxu0 0.0
    %225 = vmatprep.subr.mxu0 0.0
    %226 = vmatpush1.msra.mxu0 0.0
    %227 = vmatprep.subr.mxu0 0.0
    %228 = vmatpush1.msra.mxu0 0.0
    %229 = vmatprep.subr.mxu0 0.0
    %230 = vmatpush1.msra.mxu0 0.0
    %231 = vmatprep.subr.mxu0 0.0
    %232 = vmatpush1.msra.mxu0 0.0
    %233 = vmatprep.subr.mxu0 0.0
    %234 = vmatpush1.msra.mxu0 0.0
    %235 = vmatprep.subr.mxu0 0.0
    %236 = vmatpush1.msra.mxu0 0.0
    %237 = vmatprep.subr.mxu0 0.0
    %238 = vmatpush1.msra.mxu0 0.0
    %239 = vmatprep.subr.mxu0 0.0
    %240 = vmatpush1.msra.mxu0 0.0
    %241 = vmatprep.subr.mxu0 0.0
    %242 = vmatpush1.msra.mxu0 0.0
    %243 = vmatprep.subr.mxu0 0.0
    %244 = vmatpush1.msra.mxu0 0.0
    %245 = vmatprep.subr.mxu0 0.0
    %246 = vmatpush1.msra.mxu0 0.0
    %247 = vmatprep.mubr.f32.mxu0 0.0
    %248 = vmatmul.mubr.f32.gmra.mrb[0].mxu0 %v178
    %v249 = vpop.f32.mrb[0].mxu0
    %v250 = vadd.f32 %v174, %v249
    %v251 = vpop.f32.mrb[0].mxu0
    %252 = vmatprep.mubr.f32.mxu0 0.0
    %253 = vmatmul.mubr.f32.gmra.mrb[0].mxu0 %v181
    %v254 = vpop.f32.mrb[0].mxu0
    %v255 = vadd.f32 %v174, %v254
    %v256 = vpop.f32.mrb[0].mxu0
    %257 = vdwg.mxu0
    %259 = vrot.lane.b32.xlu0 %v250, 96
    %v260 = vpop.permute.xlu0 %259
    %vm261 = vcmask 64512
    %v262 = vsel %vm261, %v250, 0
    %v264 = vsel %vm261, %v260, 0
    %266 = vmatprep.subr.mxu0 0.0
    %267 = vmatpush1.xpose.msra.mxu0 %v264
    %268 = vmatprep.subr.mxu0 0.0
    %269 = vmatpush1.xpose.msra.mxu0 0.0
    %270 = vmatprep.subr.mxu0 0.0
    %271 = vmatpush1.xpose.msra.mxu0 0.0
    %272 = vmatprep.subr.mxu0 0.0
    %273 = vmatpush1.xpose.msra.mxu0 0.0
    %274 = vmatprep.subr.mxu0 0.0
    %275 = vmatpush1.xpose.msra.mxu0 0.0
    %276 = vmatprep.subr.mxu0 0.0
    %277 = vmatpush1.xpose.msra.mxu0 0.0
    %278 = vmatprep.subr.mxu0 0.0
    %279 = vmatpush1.xpose.msra.mxu0 0.0
    %280 = vmatprep.subr.mxu0 0.0
    %281 = vmatpush1.xpose.msra.mxu0 0.0
    %282 = vmatprep.subr.mxu0 0.0
    %283 = vmatpush1.xpose.msra.mxu0 0.0
    %284 = vmatprep.subr.mxu0 0.0
    %285 = vmatpush1.xpose.msra.mxu0 0.0
    %286 = vmatprep.subr.mxu0 0.0
    %287 = vmatpush1.xpose.msra.mxu0 0.0
    %288 = vmatprep.subr.mxu0 0.0
    %289 = vmatpush1.xpose.msra.mxu0 0.0
    %290 = vmatprep.subr.mxu0 0.0
    %291 = vmatpush1.xpose.msra.mxu0 0.0
    %292 = vmatprep.subr.mxu0 0.0
    %293 = vmatpush1.xpose.msra.mxu0 0.0
    %294 = vmatprep.subr.mxu0 0.0
    %295 = vmatpush1.xpose.msra.mxu0 0.0
    %296 = vmatprep.subr.mxu0 0.0
    %297 = vmatpush1.xpose.msra.mxu0 0.0
    %298 = vmatprep.subr.mxu0 0.0
    %299 = vmatpush1.xpose.msra.mxu0 0.0
    %300 = vmatprep.subr.mxu0 0.0
    %301 = vmatpush1.xpose.msra.mxu0 0.0
    %302 = vmatprep.subr.mxu0 0.0
    %303 = vmatpush1.xpose.msra.mxu0 0.0
    %304 = vmatprep.subr.mxu0 0.0
    %305 = vmatpush1.xpose.msra.mxu0 0.0
    %306 = vmatprep.subr.mxu0 0.0
    %307 = vmatpush1.xpose.msra.mxu0 0.0
    %308 = vmatprep.subr.mxu0 0.0
    %309 = vmatpush1.xpose.msra.mxu0 0.0
    %310 = vmatprep.subr.mxu0 0.0
    %311 = vmatpush1.xpose.msra.mxu0 0.0
    %312 = vmatprep.subr.mxu0 0.0
    %313 = vmatpush1.xpose.msra.mxu0 0.0
    %314 = vmatprep.subr.mxu0 0.0
    %315 = vmatpush1.xpose.msra.mxu0 0.0
    %316 = vmatprep.subr.mxu0 0.0
    %317 = vmatpush1.xpose.msra.mxu0 0.0
    %318 = vmatprep.subr.mxu0 0.0
    %319 = vmatpush1.xpose.msra.mxu0 0.0
    %320 = vmatprep.subr.mxu0 0.0
    %321 = vmatpush1.xpose.msra.mxu0 0.0
    %322 = vmatprep.subr.mxu0 0.0
    %323 = vmatpush1.xpose.msra.mxu0 0.0
    %324 = vmatprep.subr.mxu0 0.0
    %325 = vmatpush1.xpose.msra.mxu0 0.0
    %326 = vmatprep.subr.mxu0 0.0
    %327 = vmatpush1.xpose.msra.mxu0 0.0
    %328 = vmatprep.subr.mxu0 0.0
    %329 = vmatpush1.xpose.msra.mxu0 0.0
    %330 = vmatprep.mubr.f32.mxu0 0.0
    %331 = vmatmul.mubr.f32.gmra.mrb[0].mxu0 %v262
    %v332 = vpop.f32.mrb[0].mxu0
    %v333 = vadd.f32 0.0, %v332
    %v334 = vpop.f32.mrb[0].mxu0
    %335 = vdwg.mxu0
    %337 = vrot.lane.b32.xlu0 %v255, 96
    %v338 = vpop.permute.xlu0 %337
    %v339 = vsel %vm261, %v255, 0
    %v341 = vsel %vm261, %v338, 0
    %343 = vmatprep.subr.mxu0 0.0
    %344 = vmatpush1.xpose.msra.mxu0 %v341
    %345 = vmatprep.subr.mxu0 0.0
    %346 = vmatpush1.xpose.msra.mxu0 0.0
    %347 = vmatprep.subr.mxu0 0.0
    %348 = vmatpush1.xpose.msra.mxu0 0.0
    %349 = vmatprep.subr.mxu0 0.0
    %350 = vmatpush1.xpose.msra.mxu0 0.0
    %351 = vmatprep.subr.mxu0 0.0
    %352 = vmatpush1.xpose.msra.mxu0 0.0
    %353 = vmatprep.subr.mxu0 0.0
    %354 = vmatpush1.xpose.msra.mxu0 0.0
    %355 = vmatprep.subr.mxu0 0.0
    %356 = vmatpush1.xpose.msra.mxu0 0.0
    %357 = vmatprep.subr.mxu0 0.0
    %358 = vmatpush1.xpose.msra.mxu0 0.0
    %359 = vmatprep.subr.mxu0 0.0
    %360 = vmatpush1.xpose.msra.mxu0 0.0
    %361 = vmatprep.subr.mxu0 0.0
    %362 = vmatpush1.xpose.msra.mxu0 0.0
    %363 = vmatprep.subr.mxu0 0.0
    %364 = vmatpush1.xpose.msra.mxu0 0.0
    %365 = vmatprep.subr.mxu0 0.0
    %366 = vmatpush1.xpose.msra.mxu0 0.0
    %367 = vmatprep.subr.mxu0 0.0
    %368 = vmatpush1.xpose.msra.mxu0 0.0
    %369 = vmatprep.subr.mxu0 0.0
    %370 = vmatpush1.xpose.msra.mxu0 0.0
    %371 = vmatprep.subr.mxu0 0.0
    %372 = vmatpush1.xpose.msra.mxu0 0.0
    %373 = vmatprep.subr.mxu0 0.0
    %374 = vmatpush1.xpose.msra.mxu0 0.0
    %375 = vmatprep.subr.mxu0 0.0
    %376 = vmatpush1.xpose.msra.mxu0 0.0
    %377 = vmatprep.subr.mxu0 0.0
    %378 = vmatpush1.xpose.msra.mxu0 0.0
    %379 = vmatprep.subr.mxu0 0.0
    %380 = vmatpush1.xpose.msra.mxu0 0.0
    %381 = vmatprep.subr.mxu0 0.0
    %382 = vmatpush1.xpose.msra.mxu0 0.0
    %383 = vmatprep.subr.mxu0 0.0
    %384 = vmatpush1.xpose.msra.mxu0 0.0
    %385 = vmatprep.subr.mxu0 0.0
    %386 = vmatpush1.xpose.msra.mxu0 0.0
    %387 = vmatprep.subr.mxu0 0.0
    %388 = vmatpush1.xpose.msra.mxu0 0.0
    %389 = vmatprep.subr.mxu0 0.0
    %390 = vmatpush1.xpose.msra.mxu0 0.0
    %391 = vmatprep.subr.mxu0 0.0
    %392 = vmatpush1.xpose.msra.mxu0 0.0
    %393 = vmatprep.subr.mxu0 0.0
    %394 = vmatpush1.xpose.msra.mxu0 0.0
    %395 = vmatprep.subr.mxu0 0.0
    %396 = vmatpush1.xpose.msra.mxu0 0.0
    %397 = vmatprep.subr.mxu0 0.0
    %398 = vmatpush1.xpose.msra.mxu0 0.0
    %399 = vmatprep.subr.mxu0 0.0
    %400 = vmatpush1.xpose.msra.mxu0 0.0
    %401 = vmatprep.subr.mxu0 0.0
    %402 = vmatpush1.xpose.msra.mxu0 0.0
    %403 = vmatprep.subr.mxu0 0.0
    %404 = vmatpush1.xpose.msra.mxu0 0.0
    %405 = vmatprep.subr.mxu0 0.0
    %406 = vmatpush1.xpose.msra.mxu0 0.0
    %407 = vmatprep.mubr.f32.mxu0 0.0
    %408 = vmatmul.mubr.f32.gmra.mrb[0].mxu0 %v339
    %v409 = vpop.f32.mrb[0].mxu0
    %v410 = vadd.f32 0.0, %v409
    %v411 = vpop.f32.mrb[0].mxu0
    %412 = vdwg.mxu0
    %v413 = vmul.f32 %v333, 0.35355338
    %v414 = vmul.f32 %v410, 0.35355338
    %v415 = vsel %vm261, %v413, -inf
    %416 = vmax.xlane.f32.xlu0 %v415
    %v417 = vpop.xlane.xlu0 %416
    %v418 = vsel %vm261, %v414, -inf
    %419 = vmax.xlane.f32.xlu0 %v418
    %v420 = vpop.xlane.xlu0 %419
    %v421 = vsub.f32 %v413, %v417
    %v422 = vsub.f32 %v414, %v420
    %v423 = vmul.f32 %v421, 1.442695
    %v424 = vpow.pop %v423
    %v425 = vmul.f32 %v422, 1.442695
    %v426 = vpow.pop %v425
    %v427 = vsel %vm261, %v424, 0.0
    %428 = vadd.xlane.f32.xlu0 %v427
    %v429 = vpop.xlane.xlu0 %428
    %v430 = vsel %vm261, %v426, 0.0
    %431 = vadd.xlane.f32.xlu0 %v430
    %v432 = vpop.xlane.xlu0 %431
    %v433 = vrcp.pop %v429
    %v434 = vrcp.pop %v432
    %v435 = vmul.f32 %v424, %v433
    %v436 = vmul.f32 %v426, %v434
    %437 = vrot.lane.b32.xlu0 %v250, 64
    %v438 = vpop.permute.xlu0 %437
    %v441 = vsel %vm261, %v435, 0
    %443 = vmatprep.subr.mxu0 0.0
    %444 = vmatpush1.msra.mxu0 %v438
    %445 = vmatprep.subr.mxu0 0.0
    %446 = vmatpush1.msra.mxu0 0.0
    %447 = vmatprep.subr.mxu0 0.0
    %448 = vmatpush1.msra.mxu0 0.0
    %449 = vmatprep.subr.mxu0 0.0
    %450 = vmatpush1.msra.mxu0 0.0
    %451 = vmatprep.subr.mxu0 0.0
    %452 = vmatpush1.msra.mxu0 0.0
    %453 = vmatprep.subr.mxu0 0.0
    %454 = vmatpush1.msra.mxu0 0.0
    %455 = vmatprep.subr.mxu0 0.0
    %456 = vmatpush1.msra.mxu0 0.0
    %457 = vmatprep.subr.mxu0 0.0
    %458 = vmatpush1.msra.mxu0 0.0
    %459 = vmatprep.subr.mxu0 0.0
    %460 = vmatpush1.msra.mxu0 0.0
    %461 = vmatprep.subr.mxu0 0.0
    %462 = vmatpush1.msra.mxu0 0.0
    %463 = vmatprep.subr.mxu0 0.0
    %464 = vmatpush1.msra.mxu0 0.0
    %465 = vmatprep.subr.mxu0 0.0
    %466 = vmatpush1.msra.mxu0 0.0
    %467 = vmatprep.subr.mxu0 0.0
    %468 = vmatpush1.msra.mxu0 0.0
    %469 = vmatprep.subr.mxu0 0.0
    %470 = vmatpush1.msra.mxu0 0.0
    %471 = vmatprep.subr.mxu0 0.0
    %472 = vmatpush1.msra.mxu0 0.0
    %473 = vmatprep.subr.mxu0 0.0
    %474 = vmatpush1.msra.mxu0 0.0
    %475 = vmatprep.subr.mxu0 0.0
    %476 = vmatpush1.msra.mxu0 0.0
    %477 = vmatprep.subr.mxu0 0.0
    %478 = vmatpush1.msra.mxu0 0.0
    %479 = vmatprep.subr.mxu0 0.0
    %480 = vmatpush1.msra.mxu0 0.0
    %481 = vmatprep.subr.mxu0 0.0
    %482 = vmatpush1.msra.mxu0 0.0
    %483 = vmatprep.subr.mxu0 0.0
    %484 = vmatpush1.msra.mxu0 0.0
    %485 = vmatprep.subr.mxu0 0.0
    %486 = vmatpush1.msra.mxu0 0.0
    %487 = vmatprep.subr.mxu0 0.0
    %488 = vmatpush1.msra.mxu0 0.0
    %489 = vmatprep.subr.mxu0 0.0
    %490 = vmatpush1.msra.mxu0 0.0
    %491 = vmatprep.subr.mxu0 0.0
    %492 = vmatpush1.msra.mxu0 0.0
    %493 = vmatprep.subr.mxu0 0.0
    %494 = vmatpush1.msra.mxu0 0.0
    %495 = vmatprep.subr.mxu0 0.0
    %496 = vmatpush1.msra.mxu0 0.0
    %497 = vmatprep.subr.mxu0 0.0
    %498 = vmatpush1.msra.mxu0 0.0
    %499 = vmatprep.subr.mxu0 0.0
    %500 = vmatpush1.msra.mxu0 0.0
    %501 = vmatprep.subr.mxu0 0.0
    %502 = vmatpush1.msra.mxu0 0.0
    %503 = vmatprep.subr.mxu0 0.0
    %504 = vmatpush1.msra.mxu0 0.0
    %505 = vmatprep.subr.mxu0 0.0
    %506 = vmatpush1.msra.mxu0 0.0
    %507 = vmatprep.mubr.f32.mxu0 0.0
    %508 = vmatmul.mubr.f32.gmra.mrb[0].mxu0 %v441
    %v509 = vpop.f32.mrb[0].mxu0
    %v510 = vadd.f32 0.0, %v509
    %v511 = vpop.f32.mrb[0].mxu0
    %512 = vdwg.mxu0
    %513 = vrot.lane.b32.xlu0 %v255, 64
    %v514 = vpop.permute.xlu0 %513
    %v517 = vsel %vm261, %v436, 0
    %519 = vmatprep.subr.mxu0 0.0
    %520 = vmatpush1.msra.mxu0 %v514
    %521 = vmatprep.subr.mxu0 0.0
    %522 = vmatpush1.msra.mxu0 0.0
    %523 = vmatprep.subr.mxu0 0.0
    %524 = vmatpush1.msra.mxu0 0.0
    %525 = vmatprep.subr.mxu0 0.0
    %526 = vmatpush1.msra.mxu0 0.0
    %527 = vmatprep.subr.mxu0 0.0
    %528 = vmatpush1.msra.mxu0 0.0
    %529 = vmatprep.subr.mxu0 0.0
    %530 = vmatpush1.msra.mxu0 0.0
    %531 = vmatprep.subr.mxu0 0.0
    %532 = vmatpush1.msra.mxu0 0.0
    %533 = vmatprep.subr.mxu0 0.0
    %534 = vmatpush1.msra.mxu0 0.0
    %535 = vmatprep.subr.mxu0 0.0
    %536 = vmatpush1.msra.mxu0 0.0
    %537 = vmatprep.subr.mxu0 0.0
    %538 = vmatpush1.msra.mxu0 0.0
    %539 = vmatprep.subr.mxu0 0.0
    %540 = vmatpush1.msra.mxu0 0.0
    %541 = vmatprep.subr.mxu0 0.0
    %542 = vmatpush1.msra.mxu0 0.0
    %543 = vmatprep.subr.mxu0 0.0
    %544 = vmatpush1.msra.mxu0 0.0
    %545 = vmatprep.subr.mxu0 0.0
    %546 = vmatpush1.msra.mxu0 0.0
    %547 = vmatprep.subr.mxu0 0.0
    %548 = vmatpush1.msra.mxu0 0.0
    %549 = vmatprep.subr.mxu0 0.0
    %550 = vmatpush1.msra.mxu0 0.0
    %551 = vmatprep.subr.mxu0 0.0
    %552 = vmatpush1.msra.mxu0 0.0
    %553 = vmatprep.subr.mxu0 0.0
    %554 = vmatpush1.msra.mxu0 0.0
    %555 = vmatprep.subr.mxu0 0.0
    %556 = vmatpush1.msra.mxu0 0.0
    %557 = vmatprep.subr.mxu0 0.0
    %558 = vmatpush1.msra.mxu0 0.0
    %559 = vmatprep.subr.mxu0 0.0
    %560 = vmatpush1.msra.mxu0 0.0
    %561 = vmatprep.subr.mxu0 0.0
    %562 = vmatpush1.msra.mxu0 0.0
    %563 = vmatprep.subr.mxu0 0.0
    %564 = vmatpush1.msra.mxu0 0.0
    %565 = vmatprep.subr.mxu0 0.0
    %566 = vmatpush1.msra.mxu0 0.0
    %567 = vmatprep.subr.mxu0 0.0
    %568 = vmatpush1.msra.mxu0 0.0
    %569 = vmatprep.subr.mxu0 0.0
    %570 = vmatpush1.msra.mxu0 0.0
    %571 = vmatprep.subr.mxu0 0.0
    %572 = vmatpush1.msra.mxu0 0.0
    %573 = vmatprep.subr.mxu0 0.0
    %574 = vmatpush1.msra.mxu0 0.0
    %575 = vmatprep.subr.mxu0 0.0
    %576 = vmatpush1.msra.mxu0 0.0
    %577 = vmatprep.subr.mxu0 0.0
    %578 = vmatpush1.msra.mxu0 0.0
    %579 = vmatprep.subr.mxu0 0.0
    %580 = vmatpush1.msra.mxu0 0.0
    %581 = vmatprep.subr.mxu0 0.0
    %582 = vmatpush1.msra.mxu0 0.0
    %583 = vmatprep.mubr.f32.mxu0 0.0
    %584 = vmatmul.mubr.f32.gmra.mrb[0].mxu0 %v517
    %v585 = vpop.f32.mrb[0].mxu0
    %v586 = vadd.f32 0.0, %v585
    %v587 = vpop.f32.mrb[0].mxu0
    %588 = vdwg.mxu0
    %v589 = vld [vmem:[%s5] sm:$0xff]
    %590 = vrot.lane.b32.xlu0 %v250, 120
    %v591 = vpop.permute.xlu0 %590
    %592 = vrot.lane.b32.xlu0 %v250, 88
    %v593 = vpop.permute.xlu0 %592
    %v594 = vsel %vm261, %v591, 0
    %v596 = vsel %vm261, %v593, 0
    %598 = vmatprep.subr.mxu0 0.0
    %599 = vmatpush1.xpose.msra.mxu0 %v596
    %600 = vmatprep.subr.mxu0 0.0
    %601 = vmatpush1.xpose.msra.mxu0 0.0
    %602 = vmatprep.subr.mxu0 0.0
    %603 = vmatpush1.xpose.msra.mxu0 0.0
    %604 = vmatprep.subr.mxu0 0.0
    %605 = vmatpush1.xpose.msra.mxu0 0.0
    %606 = vmatprep.subr.mxu0 0.0
    %607 = vmatpush1.xpose.msra.mxu0 0.0
    %608 = vmatprep.subr.mxu0 0.0
    %609 = vmatpush1.xpose.msra.mxu0 0.0
    %610 = vmatprep.subr.mxu0 0.0
    %611 = vmatpush1.xpose.msra.mxu0 0.0
    %612 = vmatprep.subr.mxu0 0.0
    %613 = vmatpush1.xpose.msra.mxu0 0.0
    %614 = vmatprep.subr.mxu0 0.0
    %615 = vmatpush1.xpose.msra.mxu0 0.0
    %616 = vmatprep.subr.mxu0 0.0
    %617 = vmatpush1.xpose.msra.mxu0 0.0
    %618 = vmatprep.subr.mxu0 0.0
    %619 = vmatpush1.xpose.msra.mxu0 0.0
    %620 = vmatprep.subr.mxu0 0.0
    %621 = vmatpush1.xpose.msra.mxu0 0.0
    %622 = vmatprep.subr.mxu0 0.0
    %623 = vmatpush1.xpose.msra.mxu0 0.0
    %624 = vmatprep.subr.mxu0 0.0
    %625 = vmatpush1.xpose.msra.mxu0 0.0
    %626 = vmatprep.subr.mxu0 0.0
    %627 = vmatpush1.xpose.msra.mxu0 0.0
    %628 = vmatprep.subr.mxu0 0.0
    %629 = vmatpush1.xpose.msra.mxu0 0.0
    %630 = vmatprep.subr.mxu0 0.0
    %631 = vmatpush1.xpose.msra.mxu0 0.0
    %632 = vmatprep.subr.mxu0 0.0
    %633 = vmatpush1.xpose.msra.mxu0 0.0
    %634 = vmatprep.subr.mxu0 0.0
    %635 = vmatpush1.xpose.msra.mxu0 0.0
    %636 = vmatprep.subr.mxu0 0.0
    %637 = vmatpush1.xpose.msra.mxu0 0.0
    %638 = vmatprep.subr.mxu0 0.0
    %639 = vmatpush1.xpose.msra.mxu0 0.0
    %640 = vmatprep.subr.mxu0 0.0
    %641 = vmatpush1.xpose.msra.mxu0 0.0
    %642 = vmatprep.subr.mxu0 0.0
    %643 = vmatpush1.xpose.msra.mxu0 0.0
    %644 = vmatprep.subr.mxu0 0.0
    %645 = vmatpush1.xpose.msra.mxu0 0.0
    %646 = vmatprep.subr.mxu0 0.0
    %647 = vmatpush1.xpose.msra.mxu0 0.0
    %648 = vmatprep.subr.mxu0 0.0
    %649 = vmatpush1.xpose.msra.mxu0 0.0
    %650 = vmatprep.subr.mxu0 0.0
    %651 = vmatpush1.xpose.msra.mxu0 0.0
    %652 = vmatprep.subr.mxu0 0.0
    %653 = vmatpush1.xpose.msra.mxu0 0.0
    %654 = vmatprep.subr.mxu0 0.0
    %655 = vmatpush1.xpose.msra.mxu0 0.0
    %656 = vmatprep.subr.mxu0 0.0
    %657 = vmatpush1.xpose.msra.mxu0 0.0
    %658 = vmatprep.subr.mxu0 0.0
    %659 = vmatpush1.xpose.msra.mxu0 0.0
    %660 = vmatprep.subr.mxu0 0.0
    %661 = vmatpush1.xpose.msra.mxu0 0.0
    %662 = vmatprep.mubr.f32.mxu0 0.0
    %663 = vmatmul.mubr.f32.gmra.mrb[0].mxu0 %v594
    %v664 = vpop.f32.mrb[0].mxu0
    %v665 = vadd.f32 0.0, %v664
    %v666 = vpop.f32.mrb[0].mxu0
    %667 = vdwg.mxu0
    %668 = vrot.lane.b32.xlu0 %v255, 120
    %v669 = vpop.permute.xlu0 %668
    %670 = vrot.lane.b32.xlu0 %v255, 88
    %v671 = vpop.permute.xlu0 %670
    %v672 = vsel %vm261, %v669, 0
    %v674 = vsel %vm261, %v671, 0
    %676 = vmatprep.subr.mxu0 0.0
    %677 = vmatpush1.xpose.msra.mxu0 %v674
    %678 = vmatprep.subr.mxu0 0.0
    %679 = vmatpush1.xpose.msra.mxu0 0.0
    %680 = vmatprep.subr.mxu0 0.0
    %681 = vmatpush1.xpose.msra.mxu0 0.0
    %682 = vmatprep.subr.mxu0 0.0
    %683 = vmatpush1.xpose.msra.mxu0 0.0
    %684 = vmatprep.subr.mxu0 0.0
    %685 = vmatpush1.xpose.msra.mxu0 0.0
    %686 = vmatprep.subr.mxu0 0.0
    %687 = vmatpush1.xpose.msra.mxu0 0.0
    %688 = vmatprep.subr.mxu0 0.0
    %689 = vmatpush1.xpose.msra.mxu0 0.0
    %690 = vmatprep.subr.mxu0 0.0
    %691 = vmatpush1.xpose.msra.mxu0 0.0
    %692 = vmatprep.subr.mxu0 0.0
    %693 = vmatpush1.xpose.msra.mxu0 0.0
    %694 = vmatprep.subr.mxu0 0.0
    %695 = vmatpush1.xpose.msra.mxu0 0.0
    %696 = vmatprep.subr.mxu0 0.0
    %697 = vmatpush1.xpose.msra.mxu0 0.0
    %698 = vmatprep.subr.mxu0 0.0
    %699 = vmatpush1.xpose.msra.mxu0 0.0
    %700 = vmatprep.subr.mxu0 0.0
    %701 = vmatpush1.xpose.msra.mxu0 0.0
    %702 = vmatprep.subr.mxu0 0.0
    %703 = vmatpush1.xpose.msra.mxu0 0.0
    %704 = vmatprep.subr.mxu0 0.0
    %705 = vmatpush1.xpose.msra.mxu0 0.0
    %706 = vmatprep.subr.mxu0 0.0
    %707 = vmatpush1.xpose.msra.mxu0 0.0
    %708 = vmatprep.subr.mxu0 0.0
    %709 = vmatpush1.xpose.msra.mxu0 0.0
    %710 = vmatprep.subr.mxu0 0.0
    %711 = vmatpush1.xpose.msra.mxu0 0.0
    %712 = vmatprep.subr.mxu0 0.0
    %713 = vmatpush1.xpose.msra.mxu0 0.0
    %714 = vmatprep.subr.mxu0 0.0
    %715 = vmatpush1.xpose.msra.mxu0 0.0
    %716 = vmatprep.subr.mxu0 0.0
    %717 = vmatpush1.xpose.msra.mxu0 0.0
    %718 = vmatprep.subr.mxu0 0.0
    %719 = vmatpush1.xpose.msra.mxu0 0.0
    %720 = vmatprep.subr.mxu0 0.0
    %721 = vmatpush1.xpose.msra.mxu0 0.0
    %722 = vmatprep.subr.mxu0 0.0
    %723 = vmatpush1.xpose.msra.mxu0 0.0
    %724 = vmatprep.subr.mxu0 0.0
    %725 = vmatpush1.xpose.msra.mxu0 0.0
    %726 = vmatprep.subr.mxu0 0.0
    %727 = vmatpush1.xpose.msra.mxu0 0.0
    %728 = vmatprep.subr.mxu0 0.0
    %729 = vmatpush1.xpose.msra.mxu0 0.0
    %730 = vmatprep.subr.mxu0 0.0
    %731 = vmatpush1.xpose.msra.mxu0 0.0
    %732 = vmatprep.subr.mxu0 0.0
    %733 = vmatpush1.xpose.msra.mxu0 0.0
    %734 = vmatprep.subr.mxu0 0.0
    %735 = vmatpush1.xpose.msra.mxu0 0.0
    %736 = vmatprep.subr.mxu0 0.0
    %737 = vmatpush1.xpose.msra.mxu0 0.0
    %738 = vmatprep.subr.mxu0 0.0
    %739 = vmatpush1.xpose.msra.mxu0 0.0
    %740 = vmatprep.mubr.f32.mxu0 0.0
    %741 = vmatmul.mubr.f32.gmra.mrb[0].mxu0 %v672
    %v742 = vpop.f32.mrb[0].mxu0
    %v743 = vadd.f32 0.0, %v742
    %v744 = vpop.f32.mrb[0].mxu0
    %745 = vdwg.mxu0
    %v746 = vmul.f32 %v665, 0.35355338
    %v747 = vmul.f32 %v743, 0.35355338
    %v748 = vsel %vm261, %v746, -inf
    %749 = vmax.xlane.f32.xlu0 %v748
    %v750 = vpop.xlane.xlu0 %749
    %v751 = vsel %vm261, %v747, -inf
    %752 = vmax.xlane.f32.xlu0 %v751
    %v753 = vpop.xlane.xlu0 %752
    %v754 = vsub.f32 %v746, %v750
    %v755 = vsub.f32 %v747, %v753
    %v756 = vmul.f32 %v754, 1.442695
    %v757 = vpow.pop %v756
    %v758 = vmul.f32 %v755, 1.442695
    %v759 = vpow.pop %v758
    %v760 = vsel %vm261, %v757, 0.0
    %761 = vadd.xlane.f32.xlu0 %v760
    %v762 = vpop.xlane.xlu0 %761
    %v763 = vsel %vm261, %v759, 0.0
    %764 = vadd.xlane.f32.xlu0 %v763
    %v765 = vpop.xlane.xlu0 %764
    %v766 = vrcp.pop %v762
    %v767 = vrcp.pop %v765
    %v768 = vmul.f32 %v757, %v766
    %v769 = vmul.f32 %v759, %v767
    %770 = vrot.lane.b32.xlu0 %v250, 56
    %v771 = vpop.permute.xlu0 %770
    %v774 = vsel %vm261, %v768, 0
    %776 = vmatprep.subr.mxu0 0.0
    %777 = vmatpush1.msra.mxu0 %v771
    %778 = vmatprep.subr.mxu0 0.0
    %779 = vmatpush1.msra.mxu0 0.0
    %780 = vmatprep.subr.mxu0 0.0
    %781 = vmatpush1.msra.mxu0 0.0
    %782 = vmatprep.subr.mxu0 0.0
    %783 = vmatpush1.msra.mxu0 0.0
    %784 = vmatprep.subr.mxu0 0.0
    %785 = vmatpush1.msra.mxu0 0.0
    %786 = vmatprep.subr.mxu0 0.0
    %787 = vmatpush1.msra.mxu0 0.0
    %788 = vmatprep.subr.mxu0 0.0
    %789 = vmatpush1.msra.mxu0 0.0
    %790 = vmatprep.subr.mxu0 0.0
    %791 = vmatpush1.msra.mxu0 0.0
    %792 = vmatprep.subr.mxu0 0.0
    %793 = vmatpush1.msra.mxu0 0.0
    %794 = vmatprep.subr.mxu0 0.0
    %795 = vmatpush1.msra.mxu0 0.0
    %796 = vmatprep.subr.mxu0 0.0
    %797 = vmatpush1.msra.mxu0 0.0
    %798 = vmatprep.subr.mxu0 0.0
    %799 = vmatpush1.msra.mxu0 0.0
    %800 = vmatprep.subr.mxu0 0.0
    %801 = vmatpush1.msra.mxu0 0.0
    %802 = vmatprep.subr.mxu0 0.0
    %803 = vmatpush1.msra.mxu0 0.0
    %804 = vmatprep.subr.mxu0 0.0
    %805 = vmatpush1.msra.mxu0 0.0
    %806 = vmatprep.subr.mxu0 0.0
    %807 = vmatpush1.msra.mxu0 0.0
    %808 = vmatprep.subr.mxu0 0.0
    %809 = vmatpush1.msra.mxu0 0.0
    %810 = vmatprep.subr.mxu0 0.0
    %811 = vmatpush1.msra.mxu0 0.0
    %812 = vmatprep.subr.mxu0 0.0
    %813 = vmatpush1.msra.mxu0 0.0
    %814 = vmatprep.subr.mxu0 0.0
    %815 = vmatpush1.msra.mxu0 0.0
    %816 = vmatprep.subr.mxu0 0.0
    %817 = vmatpush1.msra.mxu0 0.0
    %818 = vmatprep.subr.mxu0 0.0
    %819 = vmatpush1.msra.mxu0 0.0
    %820 = vmatprep.subr.mxu0 0.0
    %821 = vmatpush1.msra.mxu0 0.0
    %822 = vmatprep.subr.mxu0 0.0
    %823 = vmatpush1.msra.mxu0 0.0
    %824 = vmatprep.subr.mxu0 0.0
    %825 = vmatpush1.msra.mxu0 0.0
    %826 = vmatprep.subr.mxu0 0.0
    %827 = vmatpush1.msra.mxu0 0.0
    %828 = vmatprep.subr.mxu0 0.0
    %829 = vmatpush1.msra.mxu0 0.0
    %830 = vmatprep.subr.mxu0 0.0
    %831 = vmatpush1.msra.mxu0 0.0
    %832 = vmatprep.subr.mxu0 0.0
    %833 = vmatpush1.msra.mxu0 0.0
    %834 = vmatprep.subr.mxu0 0.0
    %835 = vmatpush1.msra.mxu0 0.0
    %836 = vmatprep.subr.mxu0 0.0
    %837 = vmatpush1.msra.mxu0 0.0
    %838 = vmatprep.subr.mxu0 0.0
    %839 = vmatpush1.msra.mxu0 0.0
    %840 = vmatprep.mubr.f32.mxu0 0.0
    %841 = vmatmul.mubr.f32.gmra.mrb[0].mxu0 %v774
    %v842 = vpop.f32.mrb[0].mxu0
    %v843 = vadd.f32 0.0, %v842
    %v844 = vpop.f32.mrb[0].mxu0
    %845 = vdwg.mxu0
    %846 = vrot.lane.b32.xlu0 %v255, 56
    %v847 = vpop.permute.xlu0 %846
    %v850 = vsel %vm261, %v769, 0
    %852 = vmatprep.subr.mxu0 0.0
    %853 = vmatpush1.msra.mxu0 %v847
    %854 = vmatprep.subr.mxu0 0.0
    %855 = vmatpush1.msra.mxu0 0.0
    %856 = vmatprep.subr.mxu0 0.0
    %857 = vmatpush1.msra.mxu0 0.0
    %858 = vmatprep.subr.mxu0 0.0
    %859 = vmatpush1.msra.mxu0 0.0
    %860 = vmatprep.subr.mxu0 0.0
    %861 = vmatpush1.msra.mxu0 0.0
    %862 = vmatprep.subr.mxu0 0.0
    %863 = vmatpush1.msra.mxu0 0.0
    %864 = vmatprep.subr.mxu0 0.0
    %865 = vmatpush1.msra.mxu0 0.0
    %866 = vmatprep.subr.mxu0 0.0
    %867 = vmatpush1.msra.mxu0 0.0
    %868 = vmatprep.subr.mxu0 0.0
    %869 = vmatpush1.msra.mxu0 0.0
    %870 = vmatprep.subr.mxu0 0.0
    %871 = vmatpush1.msra.mxu0 0.0
    %872 = vmatprep.subr.mxu0 0.0
    %873 = vmatpush1.msra.mxu0 0.0
    %874 = vmatprep.subr.mxu0 0.0
    %875 = vmatpush1.msra.mxu0 0.0
    %876 = vmatprep.subr.mxu0 0.0
    %877 = vmatpush1.msra.mxu0 0.0
    %878 = vmatprep.subr.mxu0 0.0
    %879 = vmatpush1.msra.mxu0 0.0
    %880 = vmatprep.subr.mxu0 0.0
    %881 = vmatpush1.msra.mxu0 0.0
    %882 = vmatprep.subr.mxu0 0.0
    %883 = vmatpush1.msra.mxu0 0.0
    %884 = vmatprep.subr.mxu0 0.0
    %885 = vmatpush1.msra.mxu0 0.0
    %886 = vmatprep.subr.mxu0 0.0
    %887 = vmatpush1.msra.mxu0 0.0
    %888 = vmatprep.subr.mxu0 0.0
    %889 = vmatpush1.msra.mxu0 0.0
    %890 = vmatprep.subr.mxu0 0.0
    %891 = vmatpush1.msra.mxu0 0.0
    %892 = vmatprep.subr.mxu0 0.0
    %893 = vmatpush1.msra.mxu0 0.0
    %894 = vmatprep.subr.mxu0 0.0
    %895 = vmatpush1.msra.mxu0 0.0
    %896 = vmatprep.subr.mxu0 0.0
    %897 = vmatpush1.msra.mxu0 0.0
    %898 = vmatprep.subr.mxu0 0.0
    %899 = vmatpush1.msra.mxu0 0.0
    %900 = vmatprep.subr.mxu0 0.0
    %901 = vmatpush1.msra.mxu0 0.0
    %902 = vmatprep.subr.mxu0 0.0
    %903 = vmatpush1.msra.mxu0 0.0
    %904 = vmatprep.subr.mxu0 0.0
    %905 = vmatpush1.msra.mxu0 0.0
    %906 = vmatprep.subr.mxu0 0.0
    %907 = vmatpush1.msra.mxu0 0.0
    %908 = vmatprep.subr.mxu0 0.0
    %909 = vmatpush1.msra.mxu0 0.0
    %910 = vmatprep.subr.mxu0 0.0
    %911 = vmatpush1.msra.mxu0 0.0
    %912 = vmatprep.subr.mxu0 0.0
    %913 = vmatpush1.msra.mxu0 0.0
    %914 = vmatprep.subr.mxu0 0.0
    %915 = vmatpush1.msra.mxu0 0.0
    %916 = vmatprep.mubr.f32.mxu0 0.0
    %917 = vmatmul.mubr.f32.gmra.mrb[0].mxu0 %v850
    %v918 = vpop.f32.mrb[0].mxu0
    %v919 = vadd.f32 0.0, %v918
    %v920 = vpop.f32.mrb[0].mxu0
    %921 = vdwg.mxu0
    %s922 = scalar_lea.vmem %s5, 8
    %v923 = vld [vmem:[%s922] sm:$0xff]
    %v925 = vsel %vm261, %v843, 0
    %v928 = vsel %vm261, %v919, 0
    %930 = vmatprep.subr.mxu0 0.0
    %931 = vmatpush1.msra.mxu0 %v923
    %932 = vmatprep.subr.mxu0 0.0
    %933 = vmatpush1.msra.mxu0 0.0
    %934 = vmatprep.subr.mxu0 0.0
    %935 = vmatpush1.msra.mxu0 0.0
    %936 = vmatprep.subr.mxu0 0.0
    %937 = vmatpush1.msra.mxu0 0.0
    %938 = vmatprep.subr.mxu0 0.0
    %939 = vmatpush1.msra.mxu0 0.0
    %940 = vmatprep.subr.mxu0 0.0
    %941 = vmatpush1.msra.mxu0 0.0
    %942 = vmatprep.subr.mxu0 0.0
    %943 = vmatpush1.msra.mxu0 0.0
    %944 = vmatprep.subr.mxu0 0.0
    %945 = vmatpush1.msra.mxu0 0.0
    %946 = vmatprep.subr.mxu0 0.0
    %947 = vmatpush1.msra.mxu0 0.0
    %948 = vmatprep.subr.mxu0 0.0
    %949 = vmatpush1.msra.mxu0 0.0
    %950 = vmatprep.subr.mxu0 0.0
    %951 = vmatpush1.msra.mxu0 0.0
    %952 = vmatprep.subr.mxu0 0.0
    %953 = vmatpush1.msra.mxu0 0.0
    %954 = vmatprep.subr.mxu0 0.0
    %955 = vmatpush1.msra.mxu0 0.0
    %956 = vmatprep.subr.mxu0 0.0
    %957 = vmatpush1.msra.mxu0 0.0
    %958 = vmatprep.subr.mxu0 0.0
    %959 = vmatpush1.msra.mxu0 0.0
    %960 = vmatprep.subr.mxu0 0.0
    %961 = vmatpush1.msra.mxu0 0.0
    %962 = vmatprep.subr.mxu0 0.0
    %963 = vmatpush1.msra.mxu0 0.0
    %964 = vmatprep.subr.mxu0 0.0
    %965 = vmatpush1.msra.mxu0 0.0
    %966 = vmatprep.subr.mxu0 0.0
    %967 = vmatpush1.msra.mxu0 0.0
    %968 = vmatprep.subr.mxu0 0.0
    %969 = vmatpush1.msra.mxu0 0.0
    %970 = vmatprep.subr.mxu0 0.0
    %971 = vmatpush1.msra.mxu0 0.0
    %972 = vmatprep.subr.mxu0 0.0
    %973 = vmatpush1.msra.mxu0 0.0
    %974 = vmatprep.subr.mxu0 0.0
    %975 = vmatpush1.msra.mxu0 0.0
    %976 = vmatprep.subr.mxu0 0.0
    %977 = vmatpush1.msra.mxu0 0.0
    %978 = vmatprep.subr.mxu0 0.0
    %979 = vmatpush1.msra.mxu0 0.0
    %980 = vmatprep.subr.mxu0 0.0
    %981 = vmatpush1.msra.mxu0 0.0
    %982 = vmatprep.subr.mxu0 0.0
    %983 = vmatpush1.msra.mxu0 0.0
    %984 = vmatprep.subr.mxu0 0.0
    %985 = vmatpush1.msra.mxu0 0.0
    %986 = vmatprep.subr.mxu0 0.0
    %987 = vmatpush1.msra.mxu0 0.0
    %988 = vmatprep.subr.mxu0 0.0
    %989 = vmatpush1.msra.mxu0 0.0
    %990 = vmatprep.subr.mxu0 0.0
    %991 = vmatpush1.msra.mxu0 0.0
    %992 = vmatprep.subr.mxu0 0.0
    %993 = vmatpush1.msra.mxu0 0.0
    %994 = vmatprep.mubr.f32.mxu0 0.0
    %995 = vmatmul.mubr.f32.gmra.mrb[0].mxu0 %v925
    %v996 = vpop.f32.mrb[0].mxu0
    %v997 = vadd.f32 0.0, %v996
    %v998 = vpop.f32.mrb[0].mxu0
    %999 = vmatprep.mubr.f32.mxu0 0.0
    %1000 = vmatmul.mubr.f32.gmra.mrb[0].mxu0 %v928
    %v1001 = vpop.f32.mrb[0].mxu0
    %v1002 = vadd.f32 0.0, %v1001
    %v1003 = vpop.f32.mrb[0].mxu0
    %1004 = vdwg.mxu0
    %v1006 = vsel %vm261, %v510, 0
    %v1009 = vsel %vm261, %v586, 0
    %1011 = vmatprep.subr.mxu0 0.0
    %1012 = vmatpush1.msra.mxu0 %v589
    %1013 = vmatprep.subr.mxu0 0.0
    %1014 = vmatpush1.msra.mxu0 0.0
    %1015 = vmatprep.subr.mxu0 0.0
    %1016 = vmatpush1.msra.mxu0 0.0
    %1017 = vmatprep.subr.mxu0 0.0
    %1018 = vmatpush1.msra.mxu0 0.0
    %1019 = vmatprep.subr.mxu0 0.0
    %1020 = vmatpush1.msra.mxu0 0.0
    %1021 = vmatprep.subr.mxu0 0.0
    %1022 = vmatpush1.msra.mxu0 0.0
    %1023 = vmatprep.subr.mxu0 0.0
    %1024 = vmatpush1.msra.mxu0 0.0
    %1025 = vmatprep.subr.mxu0 0.0
    %1026 = vmatpush1.msra.mxu0 0.0
    %1027 = vmatprep.subr.mxu0 0.0
    %1028 = vmatpush1.msra.mxu0 0.0
    %1029 = vmatprep.subr.mxu0 0.0
    %1030 = vmatpush1.msra.mxu0 0.0
    %1031 = vmatprep.subr.mxu0 0.0
    %1032 = vmatpush1.msra.mxu0 0.0
    %1033 = vmatprep.subr.mxu0 0.0
    %1034 = vmatpush1.msra.mxu0 0.0
    %1035 = vmatprep.subr.mxu0 0.0
    %1036 = vmatpush1.msra.mxu0 0.0
    %1037 = vmatprep.subr.mxu0 0.0
    %1038 = vmatpush1.msra.mxu0 0.0
    %1039 = vmatprep.subr.mxu0 0.0
    %1040 = vmatpush1.msra.mxu0 0.0
    %1041 = vmatprep.subr.mxu0 0.0
    %1042 = vmatpush1.msra.mxu0 0.0
    %1043 = vmatprep.subr.mxu0 0.0
    %1044 = vmatpush1.msra.mxu0 0.0
    %1045 = vmatprep.subr.mxu0 0.0
    %1046 = vmatpush1.msra.mxu0 0.0
    %1047 = vmatprep.subr.mxu0 0.0
    %1048 = vmatpush1.msra.mxu0 0.0
    %1049 = vmatprep.subr.mxu0 0.0
    %1050 = vmatpush1.msra.mxu0 0.0
    %1051 = vmatprep.subr.mxu0 0.0
    %1052 = vmatpush1.msra.mxu0 0.0
    %1053 = vmatprep.subr.mxu0 0.0
    %1054 = vmatpush1.msra.mxu0 0.0
    %1055 = vmatprep.subr.mxu0 0.0
    %1056 = vmatpush1.msra.mxu0 0.0
    %1057 = vmatprep.subr.mxu0 0.0
    %1058 = vmatpush1.msra.mxu0 0.0
    %1059 = vmatprep.subr.mxu0 0.0
    %1060 = vmatpush1.msra.mxu0 0.0
    %1061 = vmatprep.subr.mxu0 0.0
    %1062 = vmatpush1.msra.mxu0 0.0
    %1063 = vmatprep.subr.mxu0 0.0
    %1064 = vmatpush1.msra.mxu0 0.0
    %1065 = vmatprep.subr.mxu0 0.0
    %1066 = vmatpush1.msra.mxu0 0.0
    %1067 = vmatprep.subr.mxu0 0.0
    %1068 = vmatpush1.msra.mxu0 0.0
    %1069 = vmatprep.subr.mxu0 0.0
    %1070 = vmatpush1.msra.mxu0 0.0
    %1071 = vmatprep.subr.mxu0 0.0
    %1072 = vmatpush1.msra.mxu0 0.0
    %1073 = vmatprep.subr.mxu0 0.0
    %1074 = vmatpush1.msra.mxu0 0.0
    %1075 = vmatprep.mubr.f32.mxu0 0.0
    %1076 = vmatmul.mubr.f32.gmra.mrb[0].mxu0 %v1006
    %v1077 = vpop.f32.mrb[0].mxu0
    %v1078 = vadd.f32 %v997, %v1077
    %v1079 = vpop.f32.mrb[0].mxu0
    %1080 = vmatprep.mubr.f32.mxu0 0.0
    %1081 = vmatmul.mubr.f32.gmra.mrb[0].mxu0 %v1009
    %v1082 = vpop.f32.mrb[0].mxu0
    %v1083 = vadd.f32 %v1002, %v1082
    %v1084 = vpop.f32.mrb[0].mxu0
    %1085 = vdwg.mxu0
    %1086 = vrot.lane.b32.xlu0 %v250, 112
    %v1087 = vpop.permute.xlu0 %1086
    %1088 = vrot.lane.b32.xlu0 %v250, 80
    %v1089 = vpop.permute.xlu0 %1088
    %v1090 = vsel %vm261, %v1087, 0
    %v1092 = vsel %vm261, %v1089, 0
    %1094 = vmatprep.subr.mxu0 0.0
    %1095 = vmatpush1.xpose.msra.mxu0 %v1092
    %1096 = vmatprep.subr.mxu0 0.0
    %1097 = vmatpush1.xpose.msra.mxu0 0.0
    %1098 = vmatprep.subr.mxu0 0.0
    %1099 = vmatpush1.xpose.msra.mxu0 0.0
    %1100 = vmatprep.subr.mxu0 0.0
    %1101 = vmatpush1.xpose.msra.mxu0 0.0
    %1102 = vmatprep.subr.mxu0 0.0
    %1103 = vmatpush1.xpose.msra.mxu0 0.0
    %1104 = vmatprep.subr.mxu0 0.0
    %1105 = vmatpush1.xpose.msra.mxu0 0.0
    %1106 = vmatprep.subr.mxu0 0.0
    %1107 = vmatpush1.xpose.msra.mxu0 0.0
    %1108 = vmatprep.subr.mxu0 0.0
    %1109 = vmatpush1.xpose.msra.mxu0 0.0
    %1110 = vmatprep.subr.mxu0 0.0
    %1111 = vmatpush1.xpose.msra.mxu0 0.0
    %1112 = vmatprep.subr.mxu0 0.0
    %1113 = vmatpush1.xpose.msra.mxu0 0.0
    %1114 = vmatprep.subr.mxu0 0.0
    %1115 = vmatpush1.xpose.msra.mxu0 0.0
    %1116 = vmatprep.subr.mxu0 0.0
    %1117 = vmatpush1.xpose.msra.mxu0 0.0
    %1118 = vmatprep.subr.mxu0 0.0
    %1119 = vmatpush1.xpose.msra.mxu0 0.0
    %1120 = vmatprep.subr.mxu0 0.0
    %1121 = vmatpush1.xpose.msra.mxu0 0.0
    %1122 = vmatprep.subr.mxu0 0.0
    %1123 = vmatpush1.xpose.msra.mxu0 0.0
    %1124 = vmatprep.subr.mxu0 0.0
    %1125 = vmatpush1.xpose.msra.mxu0 0.0
    %1126 = vmatprep.subr.mxu0 0.0
    %1127 = vmatpush1.xpose.msra.mxu0 0.0
    %1128 = vmatprep.subr.mxu0 0.0
    %1129 = vmatpush1.xpose.msra.mxu0 0.0
    %1130 = vmatprep.subr.mxu0 0.0
    %1131 = vmatpush1.xpose.msra.mxu0 0.0
    %1132 = vmatprep.subr.mxu0 0.0
    %1133 = vmatpush1.xpose.msra.mxu0 0.0
    %1134 = vmatprep.subr.mxu0 0.0
    %1135 = vmatpush1.xpose.msra.mxu0 0.0
    %1136 = vmatprep.subr.mxu0 0.0
    %1137 = vmatpush1.xpose.msra.mxu0 0.0
    %1138 = vmatprep.subr.mxu0 0.0
    %1139 = vmatpush1.xpose.msra.mxu0 0.0
    %1140 = vmatprep.subr.mxu0 0.0
    %1141 = vmatpush1.xpose.msra.mxu0 0.0
    %1142 = vmatprep.subr.mxu0 0.0
    %1143 = vmatpush1.xpose.msra.mxu0 0.0
    %1144 = vmatprep.subr.mxu0 0.0
    %1145 = vmatpush1.xpose.msra.mxu0 0.0
    %1146 = vmatprep.subr.mxu0 0.0
    %1147 = vmatpush1.xpose.msra.mxu0 0.0
    %1148 = vmatprep.subr.mxu0 0.0
    %1149 = vmatpush1.xpose.msra.mxu0 0.0
    %1150 = vmatprep.subr.mxu0 0.0
    %1151 = vmatpush1.xpose.msra.mxu0 0.0
    %1152 = vmatprep.subr.mxu0 0.0
    %1153 = vmatpush1.xpose.msra.mxu0 0.0
    %1154 = vmatprep.subr.mxu0 0.0
    %1155 = vmatpush1.xpose.msra.mxu0 0.0
    %1156 = vmatprep.subr.mxu0 0.0
    %1157 = vmatpush1.xpose.msra.mxu0 0.0
    %1158 = vmatprep.mubr.f32.mxu0 0.0
    %1159 = vmatmul.mubr.f32.gmra.mrb[0].mxu0 %v1090
    %v1160 = vpop.f32.mrb[0].mxu0
    %v1161 = vadd.f32 0.0, %v1160
    %v1162 = vpop.f32.mrb[0].mxu0
    %1163 = vdwg.mxu0
    %1164 = vrot.lane.b32.xlu0 %v255, 112
    %v1165 = vpop.permute.xlu0 %1164
    %1166 = vrot.lane.b32.xlu0 %v255, 80
    %v1167 = vpop.permute.xlu0 %1166
    %v1168 = vsel %vm261, %v1165, 0
    %v1170 = vsel %vm261, %v1167, 0
    %1172 = vmatprep.subr.mxu0 0.0
    %1173 = vmatpush1.xpose.msra.mxu0 %v1170
    %1174 = vmatprep.subr.mxu0 0.0
    %1175 = vmatpush1.xpose.msra.mxu0 0.0
    %1176 = vmatprep.subr.mxu0 0.0
    %1177 = vmatpush1.xpose.msra.mxu0 0.0
    %1178 = vmatprep.subr.mxu0 0.0
    %1179 = vmatpush1.xpose.msra.mxu0 0.0
    %1180 = vmatprep.subr.mxu0 0.0
    %1181 = vmatpush1.xpose.msra.mxu0 0.0
    %1182 = vmatprep.subr.mxu0 0.0
    %1183 = vmatpush1.xpose.msra.mxu0 0.0
    %1184 = vmatprep.subr.mxu0 0.0
    %1185 = vmatpush1.xpose.msra.mxu0 0.0
    %1186 = vmatprep.subr.mxu0 0.0
    %1187 = vmatpush1.xpose.msra.mxu0 0.0
    %1188 = vmatprep.subr.mxu0 0.0
    %1189 = vmatpush1.xpose.msra.mxu0 0.0
    %1190 = vmatprep.subr.mxu0 0.0
    %1191 = vmatpush1.xpose.msra.mxu0 0.0
    %1192 = vmatprep.subr.mxu0 0.0
    %1193 = vmatpush1.xpose.msra.mxu0 0.0
    %1194 = vmatprep.subr.mxu0 0.0
    %1195 = vmatpush1.xpose.msra.mxu0 0.0
    %1196 = vmatprep.subr.mxu0 0.0
    %1197 = vmatpush1.xpose.msra.mxu0 0.0
    %1198 = vmatprep.subr.mxu0 0.0
    %1199 = vmatpush1.xpose.msra.mxu0 0.0
    %1200 = vmatprep.subr.mxu0 0.0
    %1201 = vmatpush1.xpose.msra.mxu0 0.0
    %1202 = vmatprep.subr.mxu0 0.0
    %1203 = vmatpush1.xpose.msra.mxu0 0.0
    %1204 = vmatprep.subr.mxu0 0.0
    %1205 = vmatpush1.xpose.msra.mxu0 0.0
    %1206 = vmatprep.subr.mxu0 0.0
    %1207 = vmatpush1.xpose.msra.mxu0 0.0
    %1208 = vmatprep.subr.mxu0 0.0
    %1209 = vmatpush1.xpose.msra.mxu0 0.0
    %1210 = vmatprep.subr.mxu0 0.0
    %1211 = vmatpush1.xpose.msra.mxu0 0.0
    %1212 = vmatprep.subr.mxu0 0.0
    %1213 = vmatpush1.xpose.msra.mxu0 0.0
    %1214 = vmatprep.subr.mxu0 0.0
    %1215 = vmatpush1.xpose.msra.mxu0 0.0
    %1216 = vmatprep.subr.mxu0 0.0
    %1217 = vmatpush1.xpose.msra.mxu0 0.0
    %1218 = vmatprep.subr.mxu0 0.0
    %1219 = vmatpush1.xpose.msra.mxu0 0.0
    %1220 = vmatprep.subr.mxu0 0.0
    %1221 = vmatpush1.xpose.msra.mxu0 0.0
    %1222 = vmatprep.subr.mxu0 0.0
    %1223 = vmatpush1.xpose.msra.mxu0 0.0
    %1224 = vmatprep.subr.mxu0 0.0
    %1225 = vmatpush1.xpose.msra.mxu0 0.0
    %1226 = vmatprep.subr.mxu0 0.0
    %1227 = vmatpush1.xpose.msra.mxu0 0.0
    %1228 = vmatprep.subr.mxu0 0.0
    %1229 = vmatpush1.xpose.msra.mxu0 0.0
    %1230 = vmatprep.subr.mxu0 0.0
    %1231 = vmatpush1.xpose.msra.mxu0 0.0
    %1232 = vmatprep.subr.mxu0 0.0
    %1233 = vmatpush1.xpose.msra.mxu0 0.0
    %1234 = vmatprep.subr.mxu0 0.0
    %1235 = vmatpush1.xpose.msra.mxu0 0.0
    %1236 = vmatprep.mubr.f32.mxu0 0.0
    %1237 = vmatmul.mubr.f32.gmra.mrb[0].mxu0 %v1168
    %v1238 = vpop.f32.mrb[0].mxu0
    %v1239 = vadd.f32 0.0, %v1238
    %v1240 = vpop.f32.mrb[0].mxu0
    %1241 = vdwg.mxu0
    %v1242 = vmul.f32 %v1161, 0.35355338
    %v1243 = vmul.f32 %v1239, 0.35355338
    %v1244 = vsel %vm261, %v1242, -inf
    %1245 = vmax.xlane.f32.xlu0 %v1244
    %v1246 = vpop.xlane.xlu0 %1245
    %v1247 = vsel %vm261, %v1243, -inf
    %1248 = vmax.xlane.f32.xlu0 %v1247
    %v1249 = vpop.xlane.xlu0 %1248
    %v1250 = vsub.f32 %v1242, %v1246
    %v1251 = vsub.f32 %v1243, %v1249
    %v1252 = vmul.f32 %v1250, 1.442695
    %v1253 = vpow.pop %v1252
    %v1254 = vmul.f32 %v1251, 1.442695
    %v1255 = vpow.pop %v1254
    %v1256 = vsel %vm261, %v1253, 0.0
    %1257 = vadd.xlane.f32.xlu0 %v1256
    %v1258 = vpop.xlane.xlu0 %1257
    %v1259 = vsel %vm261, %v1255, 0.0
    %1260 = vadd.xlane.f32.xlu0 %v1259
    %v1261 = vpop.xlane.xlu0 %1260
    %v1262 = vrcp.pop %v1258
    %v1263 = vrcp.pop %v1261
    %v1264 = vmul.f32 %v1253, %v1262
    %v1265 = vmul.f32 %v1255, %v1263
    %1266 = vrot.lane.b32.xlu0 %v250, 48
    %v1267 = vpop.permute.xlu0 %1266
    %v1270 = vsel %vm261, %v1264, 0
    %1272 = vmatprep.subr.mxu0 0.0
    %1273 = vmatpush1.msra.mxu0 %v1267
    %1274 = vmatprep.subr.mxu0 0.0
    %1275 = vmatpush1.msra.mxu0 0.0
    %1276 = vmatprep.subr.mxu0 0.0
    %1277 = vmatpush1.msra.mxu0 0.0
    %1278 = vmatprep.subr.mxu0 0.0
    %1279 = vmatpush1.msra.mxu0 0.0
    %1280 = vmatprep.subr.mxu0 0.0
    %1281 = vmatpush1.msra.mxu0 0.0
    %1282 = vmatprep.subr.mxu0 0.0
    %1283 = vmatpush1.msra.mxu0 0.0
    %1284 = vmatprep.subr.mxu0 0.0
    %1285 = vmatpush1.msra.mxu0 0.0
    %1286 = vmatprep.subr.mxu0 0.0
    %1287 = vmatpush1.msra.mxu0 0.0
    %1288 = vmatprep.subr.mxu0 0.0
    %1289 = vmatpush1.msra.mxu0 0.0
    %1290 = vmatprep.subr.mxu0 0.0
    %1291 = vmatpush1.msra.mxu0 0.0
    %1292 = vmatprep.subr.mxu0 0.0
    %1293 = vmatpush1.msra.mxu0 0.0
    %1294 = vmatprep.subr.mxu0 0.0
    %1295 = vmatpush1.msra.mxu0 0.0
    %1296 = vmatprep.subr.mxu0 0.0
    %1297 = vmatpush1.msra.mxu0 0.0
    %1298 = vmatprep.subr.mxu0 0.0
    %1299 = vmatpush1.msra.mxu0 0.0
    %1300 = vmatprep.subr.mxu0 0.0
    %1301 = vmatpush1.msra.mxu0 0.0
    %1302 = vmatprep.subr.mxu0 0.0
    %1303 = vmatpush1.msra.mxu0 0.0
    %1304 = vmatprep.subr.mxu0 0.0
    %1305 = vmatpush1.msra.mxu0 0.0
    %1306 = vmatprep.subr.mxu0 0.0
    %1307 = vmatpush1.msra.mxu0 0.0
    %1308 = vmatprep.subr.mxu0 0.0
    %1309 = vmatpush1.msra.mxu0 0.0
    %1310 = vmatprep.subr.mxu0 0.0
    %1311 = vmatpush1.msra.mxu0 0.0
    %1312 = vmatprep.subr.mxu0 0.0
    %1313 = vmatpush1.msra.mxu0 0.0
    %1314 = vmatprep.subr.mxu0 0.0
    %1315 = vmatpush1.msra.mxu0 0.0
    %1316 = vmatprep.subr.mxu0 0.0
    %1317 = vmatpush1.msra.mxu0 0.0
    %1318 = vmatprep.subr.mxu0 0.0
    %1319 = vmatpush1.msra.mxu0 0.0
    %1320 = vmatprep.subr.mxu0 0.0
    %1321 = vmatpush1.msra.mxu0 0.0
    %1322 = vmatprep.subr.mxu0 0.0
    %1323 = vmatpush1.msra.mxu0 0.0
    %1324 = vmatprep.subr.mxu0 0.0
    %1325 = vmatpush1.msra.mxu0 0.0
    %1326 = vmatprep.subr.mxu0 0.0
    %1327 = vmatpush1.msra.mxu0 0.0
    %1328 = vmatprep.subr.mxu0 0.0
    %1329 = vmatpush1.msra.mxu0 0.0
    %1330 = vmatprep.subr.mxu0 0.0
    %1331 = vmatpush1.msra.mxu0 0.0
    %1332 = vmatprep.subr.mxu0 0.0
    %1333 = vmatpush1.msra.mxu0 0.0
    %1334 = vmatprep.subr.mxu0 0.0
    %1335 = vmatpush1.msra.mxu0 0.0
    %1336 = vmatprep.mubr.f32.mxu0 0.0
    %1337 = vmatmul.mubr.f32.gmra.mrb[0].mxu0 %v1270
    %v1338 = vpop.f32.mrb[0].mxu0
    %v1339 = vadd.f32 0.0, %v1338
    %v1340 = vpop.f32.mrb[0].mxu0
    %1341 = vdwg.mxu0
    %1342 = vrot.lane.b32.xlu0 %v255, 48
    %v1343 = vpop.permute.xlu0 %1342
    %v1346 = vsel %vm261, %v1265, 0
    %1348 = vmatprep.subr.mxu0 0.0
    %1349 = vmatpush1.msra.mxu0 %v1343
    %1350 = vmatprep.subr.mxu0 0.0
    %1351 = vmatpush1.msra.mxu0 0.0
    %1352 = vmatprep.subr.mxu0 0.0
    %1353 = vmatpush1.msra.mxu0 0.0
    %1354 = vmatprep.subr.mxu0 0.0
    %1355 = vmatpush1.msra.mxu0 0.0
    %1356 = vmatprep.subr.mxu0 0.0
    %1357 = vmatpush1.msra.mxu0 0.0
    %1358 = vmatprep.subr.mxu0 0.0
    %1359 = vmatpush1.msra.mxu0 0.0
    %1360 = vmatprep.subr.mxu0 0.0
    %1361 = vmatpush1.msra.mxu0 0.0
    %1362 = vmatprep.subr.mxu0 0.0
    %1363 = vmatpush1.msra.mxu0 0.0
    %1364 = vmatprep.subr.mxu0 0.0
    %1365 = vmatpush1.msra.mxu0 0.0
    %1366 = vmatprep.subr.mxu0 0.0
    %1367 = vmatpush1.msra.mxu0 0.0
    %1368 = vmatprep.subr.mxu0 0.0
    %1369 = vmatpush1.msra.mxu0 0.0
    %1370 = vmatprep.subr.mxu0 0.0
    %1371 = vmatpush1.msra.mxu0 0.0
    %1372 = vmatprep.subr.mxu0 0.0
    %1373 = vmatpush1.msra.mxu0 0.0
    %1374 = vmatprep.subr.mxu0 0.0
    %1375 = vmatpush1.msra.mxu0 0.0
    %1376 = vmatprep.subr.mxu0 0.0
    %1377 = vmatpush1.msra.mxu0 0.0
    %1378 = vmatprep.subr.mxu0 0.0
    %1379 = vmatpush1.msra.mxu0 0.0
    %1380 = vmatprep.subr.mxu0 0.0
    %1381 = vmatpush1.msra.mxu0 0.0
    %1382 = vmatprep.subr.mxu0 0.0
    %1383 = vmatpush1.msra.mxu0 0.0
    %1384 = vmatprep.subr.mxu0 0.0
    %1385 = vmatpush1.msra.mxu0 0.0
    %1386 = vmatprep.subr.mxu0 0.0
    %1387 = vmatpush1.msra.mxu0 0.0
    %1388 = vmatprep.subr.mxu0 0.0
    %1389 = vmatpush1.msra.mxu0 0.0
    %1390 = vmatprep.subr.mxu0 0.0
    %1391 = vmatpush1.msra.mxu0 0.0
    %1392 = vmatprep.subr.mxu0 0.0
    %1393 = vmatpush1.msra.mxu0 0.0
    %1394 = vmatprep.subr.mxu0 0.0
    %1395 = vmatpush1.msra.mxu0 0.0
    %1396 = vmatprep.subr.mxu0 0.0
    %1397 = vmatpush1.msra.mxu0 0.0
    %1398 = vmatprep.subr.mxu0 0.0
    %1399 = vmatpush1.msra.mxu0 0.0
    %1400 = vmatprep.subr.mxu0 0.0
    %1401 = vmatpush1.msra.mxu0 0.0
    %1402 = vmatprep.subr.mxu0 0.0
    %1403 = vmatpush1.msra.mxu0 0.0
    %1404 = vmatprep.subr.mxu0 0.0
    %1405 = vmatpush1.msra.mxu0 0.0
    %1406 = vmatprep.subr.mxu0 0.0
    %1407 = vmatpush1.msra.mxu0 0.0
    %1408 = vmatprep.subr.mxu0 0.0
    %1409 = vmatpush1.msra.mxu0 0.0
    %1410 = vmatprep.subr.mxu0 0.0
    %1411 = vmatpush1.msra.mxu0 0.0
    %1412 = vmatprep.mubr.f32.mxu0 0.0
    %1413 = vmatmul.mubr.f32.gmra.mrb[0].mxu0 %v1346
    %v1414 = vpop.f32.mrb[0].mxu0
    %v1415 = vadd.f32 0.0, %v1414
    %v1416 = vpop.f32.mrb[0].mxu0
    %1417 = vdwg.mxu0
    %s1418 = scalar_lea.vmem %s5, 16
    %v1419 = vld [vmem:[%s1418] sm:$0xff]
    %v1421 = vsel %vm261, %v1339, 0
    %v1424 = vsel %vm261, %v1415, 0
    %1426 = vmatprep.subr.mxu0 0.0
    %1427 = vmatpush1.msra.mxu0 %v1419
    %1428 = vmatprep.subr.mxu0 0.0
    %1429 = vmatpush1.msra.mxu0 0.0
    %1430 = vmatprep.subr.mxu0 0.0
    %1431 = vmatpush1.msra.mxu0 0.0
    %1432 = vmatprep.subr.mxu0 0.0
    %1433 = vmatpush1.msra.mxu0 0.0
    %1434 = vmatprep.subr.mxu0 0.0
    %1435 = vmatpush1.msra.mxu0 0.0
    %1436 = vmatprep.subr.mxu0 0.0
    %1437 = vmatpush1.msra.mxu0 0.0
    %1438 = vmatprep.subr.mxu0 0.0
    %1439 = vmatpush1.msra.mxu0 0.0
    %1440 = vmatprep.subr.mxu0 0.0
    %1441 = vmatpush1.msra.mxu0 0.0
    %1442 = vmatprep.subr.mxu0 0.0
    %1443 = vmatpush1.msra.mxu0 0.0
    %1444 = vmatprep.subr.mxu0 0.0
    %1445 = vmatpush1.msra.mxu0 0.0
    %1446 = vmatprep.subr.mxu0 0.0
    %1447 = vmatpush1.msra.mxu0 0.0
    %1448 = vmatprep.subr.mxu0 0.0
    %1449 = vmatpush1.msra.mxu0 0.0
    %1450 = vmatprep.subr.mxu0 0.0
    %1451 = vmatpush1.msra.mxu0 0.0
    %1452 = vmatprep.subr.mxu0 0.0
    %1453 = vmatpush1.msra.mxu0 0.0
    %1454 = vmatprep.subr.mxu0 0.0
    %1455 = vmatpush1.msra.mxu0 0.0
    %1456 = vmatprep.subr.mxu0 0.0
    %1457 = vmatpush1.msra.mxu0 0.0
    %1458 = vmatprep.subr.mxu0 0.0
    %1459 = vmatpush1.msra.mxu0 0.0
    %1460 = vmatprep.subr.mxu0 0.0
    %1461 = vmatpush1.msra.mxu0 0.0
    %1462 = vmatprep.subr.mxu0 0.0
    %1463 = vmatpush1.msra.mxu0 0.0
    %1464 = vmatprep.subr.mxu0 0.0
    %1465 = vmatpush1.msra.mxu0 0.0
    %1466 = vmatprep.subr.mxu0 0.0
    %1467 = vmatpush1.msra.mxu0 0.0
    %1468 = vmatprep.subr.mxu0 0.0
    %1469 = vmatpush1.msra.mxu0 0.0
    %1470 = vmatprep.subr.mxu0 0.0
    %1471 = vmatpush1.msra.mxu0 0.0
    %1472 = vmatprep.subr.mxu0 0.0
    %1473 = vmatpush1.msra.mxu0 0.0
    %1474 = vmatprep.subr.mxu0 0.0
    %1475 = vmatpush1.msra.mxu0 0.0
    %1476 = vmatprep.subr.mxu0 0.0
    %1477 = vmatpush1.msra.mxu0 0.0
    %1478 = vmatprep.subr.mxu0 0.0
    %1479 = vmatpush1.msra.mxu0 0.0
    %1480 = vmatprep.subr.mxu0 0.0
    %1481 = vmatpush1.msra.mxu0 0.0
    %1482 = vmatprep.subr.mxu0 0.0
    %1483 = vmatpush1.msra.mxu0 0.0
    %1484 = vmatprep.subr.mxu0 0.0
    %1485 = vmatpush1.msra.mxu0 0.0
    %1486 = vmatprep.subr.mxu0 0.0
    %1487 = vmatpush1.msra.mxu0 0.0
    %1488 = vmatprep.subr.mxu0 0.0
    %1489 = vmatpush1.msra.mxu0 0.0
    %1490 = vmatprep.mubr.f32.mxu0 0.0
    %1491 = vmatmul.mubr.f32.gmra.mrb[0].mxu0 %v1421
    %v1492 = vpop.f32.mrb[0].mxu0
    %v1493 = vadd.f32 0.0, %v1492
    %v1494 = vpop.f32.mrb[0].mxu0
    %1495 = vmatprep.mubr.f32.mxu0 0.0
    %1496 = vmatmul.mubr.f32.gmra.mrb[0].mxu0 %v1424
    %v1497 = vpop.f32.mrb[0].mxu0
    %v1498 = vadd.f32 0.0, %v1497
    %v1499 = vpop.f32.mrb[0].mxu0
    %1500 = vdwg.mxu0
    %v1501 = vadd.f32 %v1078, %v1493
    %v1502 = vadd.f32 %v1083, %v1498
    %1503 = vrot.lane.b32.xlu0 %v250, 104
    %v1504 = vpop.permute.xlu0 %1503
    %1505 = vrot.lane.b32.xlu0 %v250, 72
    %v1506 = vpop.permute.xlu0 %1505
    %v1507 = vsel %vm261, %v1504, 0
    %v1509 = vsel %vm261, %v1506, 0
    %1511 = vmatprep.subr.mxu0 0.0
    %1512 = vmatpush1.xpose.msra.mxu0 %v1509
    %1513 = vmatprep.subr.mxu0 0.0
    %1514 = vmatpush1.xpose.msra.mxu0 0.0
    %1515 = vmatprep.subr.mxu0 0.0
    %1516 = vmatpush1.xpose.msra.mxu0 0.0
    %1517 = vmatprep.subr.mxu0 0.0
    %1518 = vmatpush1.xpose.msra.mxu0 0.0
    %1519 = vmatprep.subr.mxu0 0.0
    %1520 = vmatpush1.xpose.msra.mxu0 0.0
    %1521 = vmatprep.subr.mxu0 0.0
    %1522 = vmatpush1.xpose.msra.mxu0 0.0
    %1523 = vmatprep.subr.mxu0 0.0
    %1524 = vmatpush1.xpose.msra.mxu0 0.0
    %1525 = vmatprep.subr.mxu0 0.0
    %1526 = vmatpush1.xpose.msra.mxu0 0.0
    %1527 = vmatprep.subr.mxu0 0.0
    %1528 = vmatpush1.xpose.msra.mxu0 0.0
    %1529 = vmatprep.subr.mxu0 0.0
    %1530 = vmatpush1.xpose.msra.mxu0 0.0
    %1531 = vmatprep.subr.mxu0 0.0
    %1532 = vmatpush1.xpose.msra.mxu0 0.0
    %1533 = vmatprep.subr.mxu0 0.0
    %1534 = vmatpush1.xpose.msra.mxu0 0.0
    %1535 = vmatprep.subr.mxu0 0.0
    %1536 = vmatpush1.xpose.msra.mxu0 0.0
    %1537 = vmatprep.subr.mxu0 0.0
    %1538 = vmatpush1.xpose.msra.mxu0 0.0
    %1539 = vmatprep.subr.mxu0 0.0
    %1540 = vmatpush1.xpose.msra.mxu0 0.0
    %1541 = vmatprep.subr.mxu0 0.0
    %1542 = vmatpush1.xpose.msra.mxu0 0.0
    %1543 = vmatprep.subr.mxu0 0.0
    %1544 = vmatpush1.xpose.msra.mxu0 0.0
    %1545 = vmatprep.subr.mxu0 0.0
    %1546 = vmatpush1.xpose.msra.mxu0 0.0
    %1547 = vmatprep.subr.mxu0 0.0
    %1548 = vmatpush1.xpose.msra.mxu0 0.0
    %1549 = vmatprep.subr.mxu0 0.0
    %1550 = vmatpush1.xpose.msra.mxu0 0.0
    %1551 = vmatprep.subr.mxu0 0.0
    %1552 = vmatpush1.xpose.msra.mxu0 0.0
    %1553 = vmatprep.subr.mxu0 0.0
    %1554 = vmatpush1.xpose.msra.mxu0 0.0
    %1555 = vmatprep.subr.mxu0 0.0
    %1556 = vmatpush1.xpose.msra.mxu0 0.0
    %1557 = vmatprep.subr.mxu0 0.0
    %1558 = vmatpush1.xpose.msra.mxu0 0.0
    %1559 = vmatprep.subr.mxu0 0.0
    %1560 = vmatpush1.xpose.msra.mxu0 0.0
    %1561 = vmatprep.subr.mxu0 0.0
    %1562 = vmatpush1.xpose.msra.mxu0 0.0
    %1563 = vmatprep.subr.mxu0 0.0
    %1564 = vmatpush1.xpose.msra.mxu0 0.0
    %1565 = vmatprep.subr.mxu0 0.0
    %1566 = vmatpush1.xpose.msra.mxu0 0.0
    %1567 = vmatprep.subr.mxu0 0.0
    %1568 = vmatpush1.xpose.msra.mxu0 0.0
    %1569 = vmatprep.subr.mxu0 0.0
    %1570 = vmatpush1.xpose.msra.mxu0 0.0
    %1571 = vmatprep.subr.mxu0 0.0
    %1572 = vmatpush1.xpose.msra.mxu0 0.0
    %1573 = vmatprep.subr.mxu0 0.0
    %1574 = vmatpush1.xpose.msra.mxu0 0.0
    %1575 = vmatprep.mubr.f32.mxu0 0.0
    %1576 = vmatmul.mubr.f32.gmra.mrb[0].mxu0 %v1507
    %v1577 = vpop.f32.mrb[0].mxu0
    %v1578 = vadd.f32 0.0, %v1577
    %v1579 = vpop.f32.mrb[0].mxu0
    %1580 = vdwg.mxu0
    %1581 = vrot.lane.b32.xlu0 %v255, 104
    %v1582 = vpop.permute.xlu0 %1581
    %1583 = vrot.lane.b32.xlu0 %v255, 72
    %v1584 = vpop.permute.xlu0 %1583
    %v1585 = vsel %vm261, %v1582, 0
    %v1587 = vsel %vm261, %v1584, 0
    %1589 = vmatprep.subr.mxu0 0.0
    %1590 = vmatpush1.xpose.msra.mxu0 %v1587
    %1591 = vmatprep.subr.mxu0 0.0
    %1592 = vmatpush1.xpose.msra.mxu0 0.0
    %1593 = vmatprep.subr.mxu0 0.0
    %1594 = vmatpush1.xpose.msra.mxu0 0.0
    %1595 = vmatprep.subr.mxu0 0.0
    %1596 = vmatpush1.xpose.msra.mxu0 0.0
    %1597 = vmatprep.subr.mxu0 0.0
    %1598 = vmatpush1.xpose.msra.mxu0 0.0
    %1599 = vmatprep.subr.mxu0 0.0
    %1600 = vmatpush1.xpose.msra.mxu0 0.0
    %1601 = vmatprep.subr.mxu0 0.0
    %1602 = vmatpush1.xpose.msra.mxu0 0.0
    %1603 = vmatprep.subr.mxu0 0.0
    %1604 = vmatpush1.xpose.msra.mxu0 0.0
    %1605 = vmatprep.subr.mxu0 0.0
    %1606 = vmatpush1.xpose.msra.mxu0 0.0
    %1607 = vmatprep.subr.mxu0 0.0
    %1608 = vmatpush1.xpose.msra.mxu0 0.0
    %1609 = vmatprep.subr.mxu0 0.0
    %1610 = vmatpush1.xpose.msra.mxu0 0.0
    %1611 = vmatprep.subr.mxu0 0.0
    %1612 = vmatpush1.xpose.msra.mxu0 0.0
    %1613 = vmatprep.subr.mxu0 0.0
    %1614 = vmatpush1.xpose.msra.mxu0 0.0
    %1615 = vmatprep.subr.mxu0 0.0
    %1616 = vmatpush1.xpose.msra.mxu0 0.0
    %1617 = vmatprep.subr.mxu0 0.0
    %1618 = vmatpush1.xpose.msra.mxu0 0.0
    %1619 = vmatprep.subr.mxu0 0.0
    %1620 = vmatpush1.xpose.msra.mxu0 0.0
    %1621 = vmatprep.subr.mxu0 0.0
    %1622 = vmatpush1.xpose.msra.mxu0 0.0
    %1623 = vmatprep.subr.mxu0 0.0
    %1624 = vmatpush1.xpose.msra.mxu0 0.0
    %1625 = vmatprep.subr.mxu0 0.0
    %1626 = vmatpush1.xpose.msra.mxu0 0.0
    %1627 = vmatprep.subr.mxu0 0.0
    %1628 = vmatpush1.xpose.msra.mxu0 0.0
    %1629 = vmatprep.subr.mxu0 0.0
    %1630 = vmatpush1.xpose.msra.mxu0 0.0
    %1631 = vmatprep.subr.mxu0 0.0
    %1632 = vmatpush1.xpose.msra.mxu0 0.0
    %1633 = vmatprep.subr.mxu0 0.0
    %1634 = vmatpush1.xpose.msra.mxu0 0.0
    %1635 = vmatprep.subr.mxu0 0.0
    %1636 = vmatpush1.xpose.msra.mxu0 0.0
    %1637 = vmatprep.subr.mxu0 0.0
    %1638 = vmatpush1.xpose.msra.mxu0 0.0
    %1639 = vmatprep.subr.mxu0 0.0
    %1640 = vmatpush1.xpose.msra.mxu0 0.0
    %1641 = vmatprep.subr.mxu0 0.0
    %1642 = vmatpush1.xpose.msra.mxu0 0.0
    %1643 = vmatprep.subr.mxu0 0.0
    %1644 = vmatpush1.xpose.msra.mxu0 0.0
    %1645 = vmatprep.subr.mxu0 0.0
    %1646 = vmatpush1.xpose.msra.mxu0 0.0
    %1647 = vmatprep.subr.mxu0 0.0
    %1648 = vmatpush1.xpose.msra.mxu0 0.0
    %1649 = vmatprep.subr.mxu0 0.0
    %1650 = vmatpush1.xpose.msra.mxu0 0.0
    %1651 = vmatprep.subr.mxu0 0.0
    %1652 = vmatpush1.xpose.msra.mxu0 0.0
    %1653 = vmatprep.mubr.f32.mxu0 0.0
    %1654 = vmatmul.mubr.f32.gmra.mrb[0].mxu0 %v1585
    %v1655 = vpop.f32.mrb[0].mxu0
    %v1656 = vadd.f32 0.0, %v1655
    %v1657 = vpop.f32.mrb[0].mxu0
    %1658 = vdwg.mxu0
    %v1659 = vmul.f32 %v1578, 0.35355338
    %v1660 = vmul.f32 %v1656, 0.35355338
    %v1661 = vsel %vm261, %v1659, -inf
    %1662 = vmax.xlane.f32.xlu0 %v1661
    %v1663 = vpop.xlane.xlu0 %1662
    %v1664 = vsel %vm261, %v1660, -inf
    %1665 = vmax.xlane.f32.xlu0 %v1664
    %v1666 = vpop.xlane.xlu0 %1665
    %v1667 = vsub.f32 %v1659, %v1663
    %v1668 = vsub.f32 %v1660, %v1666
    %v1669 = vmul.f32 %v1667, 1.442695
    %v1670 = vpow.pop %v1669
    %v1671 = vmul.f32 %v1668, 1.442695
    %v1672 = vpow.pop %v1671
    %v1673 = vsel %vm261, %v1670, 0.0
    %1674 = vadd.xlane.f32.xlu0 %v1673
    %v1675 = vpop.xlane.xlu0 %1674
    %v1676 = vsel %vm261, %v1672, 0.0
    %1677 = vadd.xlane.f32.xlu0 %v1676
    %v1678 = vpop.xlane.xlu0 %1677
    %v1679 = vrcp.pop %v1675
    %v1680 = vrcp.pop %v1678
    %v1681 = vmul.f32 %v1670, %v1679
    %v1682 = vmul.f32 %v1672, %v1680
    %1683 = vrot.lane.b32.xlu0 %v250, 40
    %v1684 = vpop.permute.xlu0 %1683
    %v1687 = vsel %vm261, %v1681, 0
    %1689 = vmatprep.subr.mxu0 0.0
    %1690 = vmatpush1.msra.mxu0 %v1684
    %1691 = vmatprep.subr.mxu0 0.0
    %1692 = vmatpush1.msra.mxu0 0.0
    %1693 = vmatprep.subr.mxu0 0.0
    %1694 = vmatpush1.msra.mxu0 0.0
    %1695 = vmatprep.subr.mxu0 0.0
    %1696 = vmatpush1.msra.mxu0 0.0
    %1697 = vmatprep.subr.mxu0 0.0
    %1698 = vmatpush1.msra.mxu0 0.0
    %1699 = vmatprep.subr.mxu0 0.0
    %1700 = vmatpush1.msra.mxu0 0.0
    %1701 = vmatprep.subr.mxu0 0.0
    %1702 = vmatpush1.msra.mxu0 0.0
    %1703 = vmatprep.subr.mxu0 0.0
    %1704 = vmatpush1.msra.mxu0 0.0
    %1705 = vmatprep.subr.mxu0 0.0
    %1706 = vmatpush1.msra.mxu0 0.0
    %1707 = vmatprep.subr.mxu0 0.0
    %1708 = vmatpush1.msra.mxu0 0.0
    %1709 = vmatprep.subr.mxu0 0.0
    %1710 = vmatpush1.msra.mxu0 0.0
    %1711 = vmatprep.subr.mxu0 0.0
    %1712 = vmatpush1.msra.mxu0 0.0
    %1713 = vmatprep.subr.mxu0 0.0
    %1714 = vmatpush1.msra.mxu0 0.0
    %1715 = vmatprep.subr.mxu0 0.0
    %1716 = vmatpush1.msra.mxu0 0.0
    %1717 = vmatprep.subr.mxu0 0.0
    %1718 = vmatpush1.msra.mxu0 0.0
    %1719 = vmatprep.subr.mxu0 0.0
    %1720 = vmatpush1.msra.mxu0 0.0
    %1721 = vmatprep.subr.mxu0 0.0
    %1722 = vmatpush1.msra.mxu0 0.0
    %1723 = vmatprep.subr.mxu0 0.0
    %1724 = vmatpush1.msra.mxu0 0.0
    %1725 = vmatprep.subr.mxu0 0.0
    %1726 = vmatpush1.msra.mxu0 0.0
    %1727 = vmatprep.subr.mxu0 0.0
    %1728 = vmatpush1.msra.mxu0 0.0
    %1729 = vmatprep.subr.mxu0 0.0
    %1730 = vmatpush1.msra.mxu0 0.0
    %1731 = vmatprep.subr.mxu0 0.0
    %1732 = vmatpush1.msra.mxu0 0.0
    %1733 = vmatprep.subr.mxu0 0.0
    %1734 = vmatpush1.msra.mxu0 0.0
    %1735 = vmatprep.subr.mxu0 0.0
    %1736 = vmatpush1.msra.mxu0 0.0
    %1737 = vmatprep.subr.mxu0 0.0
    %1738 = vmatpush1.msra.mxu0 0.0
    %1739 = vmatprep.subr.mxu0 0.0
    %1740 = vmatpush1.msra.mxu0 0.0
    %1741 = vmatprep.subr.mxu0 0.0
    %1742 = vmatpush1.msra.mxu0 0.0
    %1743 = vmatprep.subr.mxu0 0.0
    %1744 = vmatpush1.msra.mxu0 0.0
    %1745 = vmatprep.subr.mxu0 0.0
    %1746 = vmatpush1.msra.mxu0 0.0
    %1747 = vmatprep.subr.mxu0 0.0
    %1748 = vmatpush1.msra.mxu0 0.0
    %1749 = vmatprep.subr.mxu0 0.0
    %1750 = vmatpush1.msra.mxu0 0.0
    %1751 = vmatprep.subr.mxu0 0.0
    %1752 = vmatpush1.msra.mxu0 0.0
    %1753 = vmatprep.mubr.f32.mxu0 0.0
    %1754 = vmatmul.mubr.f32.gmra.mrb[0].mxu0 %v1687
    %v1755 = vpop.f32.mrb[0].mxu0
    %v1756 = vadd.f32 0.0, %v1755
    %v1757 = vpop.f32.mrb[0].mxu0
    %1758 = vdwg.mxu0
    %1759 = vrot.lane.b32.xlu0 %v255, 40
    %v1760 = vpop.permute.xlu0 %1759
    %v1763 = vsel %vm261, %v1682, 0
    %1765 = vmatprep.subr.mxu0 0.0
    %1766 = vmatpush1.msra.mxu0 %v1760
    %1767 = vmatprep.subr.mxu0 0.0
    %1768 = vmatpush1.msra.mxu0 0.0
    %1769 = vmatprep.subr.mxu0 0.0
    %1770 = vmatpush1.msra.mxu0 0.0
    %1771 = vmatprep.subr.mxu0 0.0
    %1772 = vmatpush1.msra.mxu0 0.0
    %1773 = vmatprep.subr.mxu0 0.0
    %1774 = vmatpush1.msra.mxu0 0.0
    %1775 = vmatprep.subr.mxu0 0.0
    %1776 = vmatpush1.msra.mxu0 0.0
    %1777 = vmatprep.subr.mxu0 0.0
    %1778 = vmatpush1.msra.mxu0 0.0
    %1779 = vmatprep.subr.mxu0 0.0
    %1780 = vmatpush1.msra.mxu0 0.0
    %1781 = vmatprep.subr.mxu0 0.0
    %1782 = vmatpush1.msra.mxu0 0.0
    %1783 = vmatprep.subr.mxu0 0.0
    %1784 = vmatpush1.msra.mxu0 0.0
    %1785 = vmatprep.subr.mxu0 0.0
    %1786 = vmatpush1.msra.mxu0 0.0
    %1787 = vmatprep.subr.mxu0 0.0
    %1788 = vmatpush1.msra.mxu0 0.0
    %1789 = vmatprep.subr.mxu0 0.0
    %1790 = vmatpush1.msra.mxu0 0.0
    %1791 = vmatprep.subr.mxu0 0.0
    %1792 = vmatpush1.msra.mxu0 0.0
    %1793 = vmatprep.subr.mxu0 0.0
    %1794 = vmatpush1.msra.mxu0 0.0
    %1795 = vmatprep.subr.mxu0 0.0
    %1796 = vmatpush1.msra.mxu0 0.0
    %1797 = vmatprep.subr.mxu0 0.0
    %1798 = vmatpush1.msra.mxu0 0.0
    %1799 = vmatprep.subr.mxu0 0.0
    %1800 = vmatpush1.msra.mxu0 0.0
    %1801 = vmatprep.subr.mxu0 0.0
    %1802 = vmatpush1.msra.mxu0 0.0
    %1803 = vmatprep.subr.mxu0 0.0
    %1804 = vmatpush1.msra.mxu0 0.0
    %1805 = vmatprep.subr.mxu0 0.0
    %1806 = vmatpush1.msra.mxu0 0.0
    %1807 = vmatprep.subr.mxu0 0.0
    %1808 = vmatpush1.msra.mxu0 0.0
    %1809 = vmatprep.subr.mxu0 0.0
    %1810 = vmatpush1.msra.mxu0 0.0
    %1811 = vmatprep.subr.mxu0 0.0
    %1812 = vmatpush1.msra.mxu0 0.0
    %1813 = vmatprep.subr.mxu0 0.0
    %1814 = vmatpush1.msra.mxu0 0.0
    %1815 = vmatprep.subr.mxu0 0.0
    %1816 = vmatpush1.msra.mxu0 0.0
    %1817 = vmatprep.subr.mxu0 0.0
    %1818 = vmatpush1.msra.mxu0 0.0
    %1819 = vmatprep.subr.mxu0 0.0
    %1820 = vmatpush1.msra.mxu0 0.0
    %1821 = vmatprep.subr.mxu0 0.0
    %1822 = vmatpush1.msra.mxu0 0.0
    %1823 = vmatprep.subr.mxu0 0.0
    %1824 = vmatpush1.msra.mxu0 0.0
    %1825 = vmatprep.subr.mxu0 0.0
    %1826 = vmatpush1.msra.mxu0 0.0
    %1827 = vmatprep.subr.mxu0 0.0
    %1828 = vmatpush1.msra.mxu0 0.0
    %1829 = vmatprep.mubr.f32.mxu0 0.0
    %1830 = vmatmul.mubr.f32.gmra.mrb[0].mxu0 %v1763
    %v1831 = vpop.f32.mrb[0].mxu0
    %v1832 = vadd.f32 0.0, %v1831
    %v1833 = vpop.f32.mrb[0].mxu0
    %1834 = vdwg.mxu0
    %s1835 = scalar_lea.vmem %s5, 24
    %v1836 = vld [vmem:[%s1835] sm:$0xff]
    %v1838 = vsel %vm261, %v1756, 0
    %v1841 = vsel %vm261, %v1832, 0
    %1843 = vmatprep.subr.mxu0 0.0
    %1844 = vmatpush1.msra.mxu0 %v1836
    %1845 = vmatprep.subr.mxu0 0.0
    %1846 = vmatpush1.msra.mxu0 0.0
    %1847 = vmatprep.subr.mxu0 0.0
    %1848 = vmatpush1.msra.mxu0 0.0
    %1849 = vmatprep.subr.mxu0 0.0
    %1850 = vmatpush1.msra.mxu0 0.0
    %1851 = vmatprep.subr.mxu0 0.0
    %1852 = vmatpush1.msra.mxu0 0.0
    %1853 = vmatprep.subr.mxu0 0.0
    %1854 = vmatpush1.msra.mxu0 0.0
    %1855 = vmatprep.subr.mxu0 0.0
    %1856 = vmatpush1.msra.mxu0 0.0
    %1857 = vmatprep.subr.mxu0 0.0
    %1858 = vmatpush1.msra.mxu0 0.0
    %1859 = vmatprep.subr.mxu0 0.0
    %1860 = vmatpush1.msra.mxu0 0.0
    %1861 = vmatprep.subr.mxu0 0.0
    %1862 = vmatpush1.msra.mxu0 0.0
    %1863 = vmatprep.subr.mxu0 0.0
    %1864 = vmatpush1.msra.mxu0 0.0
    %1865 = vmatprep.subr.mxu0 0.0
    %1866 = vmatpush1.msra.mxu0 0.0
    %1867 = vmatprep.subr.mxu0 0.0
    %1868 = vmatpush1.msra.mxu0 0.0
    %1869 = vmatprep.subr.mxu0 0.0
    %1870 = vmatpush1.msra.mxu0 0.0
    %1871 = vmatprep.subr.mxu0 0.0
    %1872 = vmatpush1.msra.mxu0 0.0
    %1873 = vmatprep.subr.mxu0 0.0
    %1874 = vmatpush1.msra.mxu0 0.0
    %1875 = vmatprep.subr.mxu0 0.0
    %1876 = vmatpush1.msra.mxu0 0.0
    %1877 = vmatprep.subr.mxu0 0.0
    %1878 = vmatpush1.msra.mxu0 0.0
    %1879 = vmatprep.subr.mxu0 0.0
    %1880 = vmatpush1.msra.mxu0 0.0
    %1881 = vmatprep.subr.mxu0 0.0
    %1882 = vmatpush1.msra.mxu0 0.0
    %1883 = vmatprep.subr.mxu0 0.0
    %1884 = vmatpush1.msra.mxu0 0.0
    %1885 = vmatprep.subr.mxu0 0.0
    %1886 = vmatpush1.msra.mxu0 0.0
    %1887 = vmatprep.subr.mxu0 0.0
    %1888 = vmatpush1.msra.mxu0 0.0
    %1889 = vmatprep.subr.mxu0 0.0
    %1890 = vmatpush1.msra.mxu0 0.0
    %1891 = vmatprep.subr.mxu0 0.0
    %1892 = vmatpush1.msra.mxu0 0.0
    %1893 = vmatprep.subr.mxu0 0.0
    %1894 = vmatpush1.msra.mxu0 0.0
    %1895 = vmatprep.subr.mxu0 0.0
    %1896 = vmatpush1.msra.mxu0 0.0
    %1897 = vmatprep.subr.mxu0 0.0
    %1898 = vmatpush1.msra.mxu0 0.0
    %1899 = vmatprep.subr.mxu0 0.0
    %1900 = vmatpush1.msra.mxu0 0.0
    %1901 = vmatprep.subr.mxu0 0.0
    %1902 = vmatpush1.msra.mxu0 0.0
    %1903 = vmatprep.subr.mxu0 0.0
    %1904 = vmatpush1.msra.mxu0 0.0
    %1905 = vmatprep.subr.mxu0 0.0
    %1906 = vmatpush1.msra.mxu0 0.0
    %1907 = vmatprep.mubr.f32.mxu0 0.0
    %1908 = vmatmul.mubr.f32.gmra.mrb[0].mxu0 %v1838
    %v1909 = vpop.f32.mrb[0].mxu0
    %v1910 = vadd.f32 0.0, %v1909
    %v1911 = vpop.f32.mrb[0].mxu0
    %1912 = vmatprep.mubr.f32.mxu0 0.0
    %1913 = vmatmul.mubr.f32.gmra.mrb[0].mxu0 %v1841
    %v1914 = vpop.f32.mrb[0].mxu0
    %v1915 = vadd.f32 0.0, %v1914
    %v1916 = vpop.f32.mrb[0].mxu0
    %1917 = vdwg.mxu0
    %v1918 = vadd.f32 %v1501, %v1910
    %v1919 = vadd.f32 %v1502, %v1915
    %v1920 = vld [vmem:[%s6] sm:$0x1]
    %v1922 = vlaneseq
    %v1923 = vshrl.u32 %v1922, 7
    %v1924 = vsub.s32 0, %v1923
    %v1925 = vrot.slane %v1920, %v1924
    %v1927 = vadd.f32 %v1918, %v1925
    %v1928 = vadd.f32 %v1919, %v1925
    %v1929 = vadd.f32 %v1927, %v157
    %v1930 = vadd.f32 %v1928, %v162
    %v1931 = vld [vmem:[%s7] sm:$0x1]
    %v1932 = vld [vmem:[%s8] sm:$0x1]
    %v1933 = vsel %vm176, %v1929, 0.0
    %1934 = vadd.xlane.f32.xlu0 %v1933
    %v1935 = vpop.xlane.xlu0 %1934
    %v1936 = vsel %vm176, %v1930, 0.0
    %1937 = vadd.xlane.f32.xlu0 %v1936
    %v1938 = vpop.xlane.xlu0 %1937
    %v1939 = vrcp.pop 32.0
    %v1940 = vmul.f32 %v1935, %v1939
    %v1941 = vmul.f32 %v1938, %v1939
    %v1942 = vsub.f32 %v1929, %v1940
    %v1943 = vsub.f32 %v1930, %v1941
    %v1944 = vmul.f32 %v1942, %v1942
    %v1945 = vmul.f32 %v1943, %v1943
    %v1946 = vsel %vm176, %v1944, 0.0
    %1947 = vadd.xlane.f32.xlu0 %v1946
    %v1948 = vpop.xlane.xlu0 %1947
    %v1949 = vsel %vm176, %v1945, 0.0
    %1950 = vadd.xlane.f32.xlu0 %v1949
    %v1951 = vpop.xlane.xlu0 %1950
    %v1952 = vmul.f32 %v1948, %v1939
    %v1953 = vmul.f32 %v1951, %v1939
    %v1954 = vadd.f32 %v1952, 1e-05
    %v1955 = vadd.f32 %v1953, 1e-05
    %v1956 = vrsqrt.pop %v1954
    %v1957 = vrsqrt.pop %v1955
    %v1958 = vmul.f32 %v1942, %v1956
    %v1959 = vmul.f32 %v1943, %v1957
    %v1961 = vlaneseq
    %v1962 = vshrl.u32 %v1961, 7
    %v1963 = vsub.s32 0, %v1962
    %v1964 = vrot.slane %v1931, %v1963
    %v1966 = vmul.f32 %v1958, %v1964
    %v1967 = vmul.f32 %v1959, %v1964
    %v1969 = vlaneseq
    %v1970 = vshrl.u32 %v1969, 7
    %v1971 = vsub.s32 0, %v1970
    %v1972 = vrot.slane %v1932, %v1971
    %v1974 = vadd.f32 %v1966, %v1972
    %v1975 = vadd.f32 %v1967, %v1972
    %v1976 = vld [vmem:[%s11] sm:$0xff]
    %v1977 = vld [vmem:[%s11 + $0x8] sm:$0xff]
    %v1978 = vld [vmem:[%s11 + $0x10] sm:$0xff]
    %v1979 = vld [vmem:[%s11 + $0x18] sm:$0xff]
    %v1980 = vld [vmem:[%s12] sm:$0x1]
    %v1982 = vlaneseq
    %v1983 = vshrl.u32 %v1982, 7
    %v1984 = vsub.s32 0, %v1983
    %v1985 = vrot.slane %v1980, %v1984
    %v1988 = vsel %vm176, %v1974, 0
    %v1991 = vsel %vm176, %v1975, 0
    %1993 = vmatprep.subr.mxu0 0.0
    %1994 = vmatpush1.msra.mxu0 %v1976
    %1995 = vmatprep.subr.mxu0 0.0
    %1996 = vmatpush1.msra.mxu0 %v1977
    %1997 = vmatprep.subr.mxu0 0.0
    %1998 = vmatpush1.msra.mxu0 %v1978
    %1999 = vmatprep.subr.mxu0 0.0
    %2000 = vmatpush1.msra.mxu0 %v1979
    %2001 = vmatprep.subr.mxu0 0.0
    %2002 = vmatpush1.msra.mxu0 0.0
    %2003 = vmatprep.subr.mxu0 0.0
    %2004 = vmatpush1.msra.mxu0 0.0
    %2005 = vmatprep.subr.mxu0 0.0
    %2006 = vmatpush1.msra.mxu0 0.0
    %2007 = vmatprep.subr.mxu0 0.0
    %2008 = vmatpush1.msra.mxu0 0.0
    %2009 = vmatprep.subr.mxu0 0.0
    %2010 = vmatpush1.msra.mxu0 0.0
    %2011 = vmatprep.subr.mxu0 0.0
    %2012 = vmatpush1.msra.mxu0 0.0
    %2013 = vmatprep.subr.mxu0 0.0
    %2014 = vmatpush1.msra.mxu0 0.0
    %2015 = vmatprep.subr.mxu0 0.0
    %2016 = vmatpush1.msra.mxu0 0.0
    %2017 = vmatprep.subr.mxu0 0.0
    %2018 = vmatpush1.msra.mxu0 0.0
    %2019 = vmatprep.subr.mxu0 0.0
    %2020 = vmatpush1.msra.mxu0 0.0
    %2021 = vmatprep.subr.mxu0 0.0
    %2022 = vmatpush1.msra.mxu0 0.0
    %2023 = vmatprep.subr.mxu0 0.0
    %2024 = vmatpush1.msra.mxu0 0.0
    %2025 = vmatprep.subr.mxu0 0.0
    %2026 = vmatpush1.msra.mxu0 0.0
    %2027 = vmatprep.subr.mxu0 0.0
    %2028 = vmatpush1.msra.mxu0 0.0
    %2029 = vmatprep.subr.mxu0 0.0
    %2030 = vmatpush1.msra.mxu0 0.0
    %2031 = vmatprep.subr.mxu0 0.0
    %2032 = vmatpush1.msra.mxu0 0.0
    %2033 = vmatprep.subr.mxu0 0.0
    %2034 = vmatpush1.msra.mxu0 0.0
    %2035 = vmatprep.subr.mxu0 0.0
    %2036 = vmatpush1.msra.mxu0 0.0
    %2037 = vmatprep.subr.mxu0 0.0
    %2038 = vmatpush1.msra.mxu0 0.0
    %2039 = vmatprep.subr.mxu0 0.0
    %2040 = vmatpush1.msra.mxu0 0.0
    %2041 = vmatprep.subr.mxu0 0.0
    %2042 = vmatpush1.msra.mxu0 0.0
    %2043 = vmatprep.subr.mxu0 0.0
    %2044 = vmatpush1.msra.mxu0 0.0
    %2045 = vmatprep.subr.mxu0 0.0
    %2046 = vmatpush1.msra.mxu0 0.0
    %2047 = vmatprep.subr.mxu0 0.0
    %2048 = vmatpush1.msra.mxu0 0.0
    %2049 = vmatprep.subr.mxu0 0.0
    %2050 = vmatpush1.msra.mxu0 0.0
    %2051 = vmatprep.subr.mxu0 0.0
    %2052 = vmatpush1.msra.mxu0 0.0
    %2053 = vmatprep.subr.mxu0 0.0
    %2054 = vmatpush1.msra.mxu0 0.0
    %2055 = vmatprep.subr.mxu0 0.0
    %2056 = vmatpush1.msra.mxu0 0.0
    %2057 = vmatprep.mubr.f32.mxu0 0.0
    %2058 = vmatmul.mubr.f32.gmra.mrb[0].mxu0 %v1988
    %v2059 = vpop.f32.mrb[0].mxu0
    %v2060 = vadd.f32 %v1985, %v2059
    %v2061 = vpop.f32.mrb[0].mxu0
    %2062 = vmatprep.mubr.f32.mxu0 0.0
    %2063 = vmatmul.mubr.f32.gmra.mrb[0].mxu0 %v1991
    %v2064 = vpop.f32.mrb[0].mxu0
    %v2065 = vadd.f32 %v1985, %v2064
    %v2066 = vpop.f32.mrb[0].mxu0
    %2067 = vdwg.mxu0
    %v2068 = vmax.f32 %v2060, 0.0
    %v2069 = vmax.f32 %v2065, 0.0
    %v2070 = vld [vmem:[%s13] sm:$0xff]
    %v2071 = vld [vmem:[%s13 + $0x8] sm:$0xff]
    %v2072 = vld [vmem:[%s13 + $0x10] sm:$0xff]
    %v2073 = vld [vmem:[%s13 + $0x18] sm:$0xff]
    %v2074 = vld [vmem:[%s13 + $0x20] sm:$0xff]
    %v2075 = vld [vmem:[%s13 + $0x28] sm:$0xff]
    %v2076 = vld [vmem:[%s13 + $0x30] sm:$0xff]
    %v2077 = vld [vmem:[%s13 + $0x38] sm:$0xff]
    %v2078 = vld [vmem:[%s14] sm:$0x1]
    %v2080 = vlaneseq
    %v2081 = vshrl.u32 %v2080, 7
    %v2082 = vsub.s32 0, %v2081
    %v2083 = vrot.slane %v2078, %v2082
    %v2086 = vsel %vm83, %v2068, 0
    %v2089 = vsel %vm83, %v2069, 0
    %2091 = vmatprep.subr.mxu0 0.0
    %2092 = vmatpush1.msra.mxu0 %v2070
    %2093 = vmatprep.subr.mxu0 0.0
    %2094 = vmatpush1.msra.mxu0 %v2071
    %2095 = vmatprep.subr.mxu0 0.0
    %2096 = vmatpush1.msra.mxu0 %v2072
    %2097 = vmatprep.subr.mxu0 0.0
    %2098 = vmatpush1.msra.mxu0 %v2073
    %2099 = vmatprep.subr.mxu0 0.0
    %2100 = vmatpush1.msra.mxu0 %v2074
    %2101 = vmatprep.subr.mxu0 0.0
    %2102 = vmatpush1.msra.mxu0 %v2075
    %2103 = vmatprep.subr.mxu0 0.0
    %2104 = vmatpush1.msra.mxu0 %v2076
    %2105 = vmatprep.subr.mxu0 0.0
    %2106 = vmatpush1.msra.mxu0 %v2077
    %2107 = vmatprep.subr.mxu0 0.0
    %2108 = vmatpush1.msra.mxu0 0.0
    %2109 = vmatprep.subr.mxu0 0.0
    %2110 = vmatpush1.msra.mxu0 0.0
    %2111 = vmatprep.subr.mxu0 0.0
    %2112 = vmatpush1.msra.mxu0 0.0
    %2113 = vmatprep.subr.mxu0 0.0
    %2114 = vmatpush1.msra.mxu0 0.0
    %2115 = vmatprep.subr.mxu0 0.0
    %2116 = vmatpush1.msra.mxu0 0.0
    %2117 = vmatprep.subr.mxu0 0.0
    %2118 = vmatpush1.msra.mxu0 0.0
    %2119 = vmatprep.subr.mxu0 0.0
    %2120 = vmatpush1.msra.mxu0 0.0
    %2121 = vmatprep.subr.mxu0 0.0
    %2122 = vmatpush1.msra.mxu0 0.0
    %2123 = vmatprep.subr.mxu0 0.0
    %2124 = vmatpush1.msra.mxu0 0.0
    %2125 = vmatprep.subr.mxu0 0.0
    %2126 = vmatpush1.msra.mxu0 0.0
    %2127 = vmatprep.subr.mxu0 0.0
    %2128 = vmatpush1.msra.mxu0 0.0
    %2129 = vmatprep.subr.mxu0 0.0
    %2130 = vmatpush1.msra.mxu0 0.0
    %2131 = vmatprep.subr.mxu0 0.0
    %2132 = vmatpush1.msra.mxu0 0.0
    %2133 = vmatprep.subr.mxu0 0.0
    %2134 = vmatpush1.msra.mxu0 0.0
    %2135 = vmatprep.subr.mxu0 0.0
    %2136 = vmatpush1.msra.mxu0 0.0
    %2137 = vmatprep.subr.mxu0 0.0
    %2138 = vmatpush1.msra.mxu0 0.0
    %2139 = vmatprep.subr.mxu0 0.0
    %2140 = vmatpush1.msra.mxu0 0.0
    %2141 = vmatprep.subr.mxu0 0.0
    %2142 = vmatpush1.msra.mxu0 0.0
    %2143 = vmatprep.subr.mxu0 0.0
    %2144 = vmatpush1.msra.mxu0 0.0
    %2145 = vmatprep.subr.mxu0 0.0
    %2146 = vmatpush1.msra.mxu0 0.0
    %2147 = vmatprep.subr.mxu0 0.0
    %2148 = vmatpush1.msra.mxu0 0.0
    %2149 = vmatprep.subr.mxu0 0.0
    %2150 = vmatpush1.msra.mxu0 0.0
    %2151 = vmatprep.subr.mxu0 0.0
    %2152 = vmatpush1.msra.mxu0 0.0
    %2153 = vmatprep.subr.mxu0 0.0
    %2154 = vmatpush1.msra.mxu0 0.0
    %2155 = vmatprep.mubr.f32.mxu0 0.0
    %2156 = vmatmul.mubr.f32.gmra.mrb[0].mxu0 %v2086
    %v2157 = vpop.f32.mrb[0].mxu0
    %v2158 = vadd.f32 %v2083, %v2157
    %v2159 = vpop.f32.mrb[0].mxu0
    %2160 = vmatprep.mubr.f32.mxu0 0.0
    %2161 = vmatmul.mubr.f32.gmra.mrb[0].mxu0 %v2089
    %v2162 = vpop.f32.mrb[0].mxu0
    %v2163 = vadd.f32 %v2083, %v2162
    %v2164 = vpop.f32.mrb[0].mxu0
    %2165 = vdwg.mxu0
    %v2166 = vadd.f32 %v2158, %v1974
    %v2167 = vadd.f32 %v2163, %v1975
    %v2168 = vld [vmem:[%s9] sm:$0x1]
    %v2169 = vld [vmem:[%s10] sm:$0x1]
    %v2170 = vsel %vm176, %v2166, 0.0
    %2171 = vadd.xlane.f32.xlu0 %v2170
    %v2172 = vpop.xlane.xlu0 %2171
    %v2173 = vsel %vm176, %v2167, 0.0
    %2174 = vadd.xlane.f32.xlu0 %v2173
    %v2175 = vpop.xlane.xlu0 %2174
    %v2176 = vmul.f32 %v2172, %v1939
    %v2177 = vmul.f32 %v2175, %v1939
    %v2178 = vsub.f32 %v2166, %v2176
    %v2179 = vsub.f32 %v2167, %v2177
    %v2180 = vmul.f32 %v2178, %v2178
    %v2181 = vmul.f32 %v2179, %v2179
    %v2182 = vsel %vm176, %v2180, 0.0
    %2183 = vadd.xlane.f32.xlu0 %v2182
    %v2184 = vpop.xlane.xlu0 %2183
    %v2185 = vsel %vm176, %v2181, 0.0
    %2186 = vadd.xlane.f32.xlu0 %v2185
    %v2187 = vpop.xlane.xlu0 %2186
    %v2188 = vmul.f32 %v2184, %v1939
    %v2189 = vmul.f32 %v2187, %v1939
    %v2190 = vadd.f32 %v2188, 1e-05
    %v2191 = vadd.f32 %v2189, 1e-05
    %v2192 = vrsqrt.pop %v2190
    %v2193 = vrsqrt.pop %v2191
    %v2194 = vmul.f32 %v2178, %v2192
    %v2195 = vmul.f32 %v2179, %v2193
    %v2197 = vlaneseq
    %v2198 = vshrl.u32 %v2197, 7
    %v2199 = vsub.s32 0, %v2198
    %v2200 = vrot.slane %v2168, %v2199
    %v2202 = vmul.f32 %v2194, %v2200
    %v2203 = vmul.f32 %v2195, %v2200
    %v2205 = vlaneseq
    %v2206 = vshrl.u32 %v2205, 7
    %v2207 = vsub.s32 0, %v2206
    %v2208 = vrot.slane %v2169, %v2207
    %v2210 = vadd.f32 %v2202, %v2208
    %v2211 = vadd.f32 %v2203, %v2208
    %s2212 = scalar_lea.vmem %s3, 32
    %v2213 = vld [vmem:[%s2212] sm:$0xff]
    %v2214 = vld [vmem:[%s2212 + $0x8] sm:$0xff]
    %v2215 = vld [vmem:[%s2212 + $0x10] sm:$0xff]
    %v2216 = vld [vmem:[%s2212 + $0x18] sm:$0xff]
    %s2217 = scalar_lea.vmem %s4, 1
    %v2218 = vld [vmem:[%s2217] sm:$0x1]
    %v2220 = vlaneseq
    %v2221 = vshrl.u32 %v2220, 7
    %v2222 = vsub.s32 0, %v2221
    %v2223 = vrot.slane %v2218, %v2222
    %v2226 = vsel %vm176, %v2210, 0
    %v2229 = vsel %vm176, %v2211, 0
    %2231 = vmatprep.subr.mxu0 0.0
    %2232 = vmatpush1.msra.mxu0 %v2213
    %2233 = vmatprep.subr.mxu0 0.0
    %2234 = vmatpush1.msra.mxu0 %v2214
    %2235 = vmatprep.subr.mxu0 0.0
    %2236 = vmatpush1.msra.mxu0 %v2215
    %2237 = vmatprep.subr.mxu0 0.0
    %2238 = vmatpush1.msra.mxu0 %v2216
    %2239 = vmatprep.subr.mxu0 0.0
    %2240 = vmatpush1.msra.mxu0 0.0
    %2241 = vmatprep.subr.mxu0 0.0
    %2242 = vmatpush1.msra.mxu0 0.0
    %2243 = vmatprep.subr.mxu0 0.0
    %2244 = vmatpush1.msra.mxu0 0.0
    %2245 = vmatprep.subr.mxu0 0.0
    %2246 = vmatpush1.msra.mxu0 0.0
    %2247 = vmatprep.subr.mxu0 0.0
    %2248 = vmatpush1.msra.mxu0 0.0
    %2249 = vmatprep.subr.mxu0 0.0
    %2250 = vmatpush1.msra.mxu0 0.0
    %2251 = vmatprep.subr.mxu0 0.0
    %2252 = vmatpush1.msra.mxu0 0.0
    %2253 = vmatprep.subr.mxu0 0.0
    %2254 = vmatpush1.msra.mxu0 0.0
    %2255 = vmatprep.subr.mxu0 0.0
    %2256 = vmatpush1.msra.mxu0 0.0
    %2257 = vmatprep.subr.mxu0 0.0
    %2258 = vmatpush1.msra.mxu0 0.0
    %2259 = vmatprep.subr.mxu0 0.0
    %2260 = vmatpush1.msra.mxu0 0.0
    %2261 = vmatprep.subr.mxu0 0.0
    %2262 = vmatpush1.msra.mxu0 0.0
    %2263 = vmatprep.subr.mxu0 0.0
    %2264 = vmatpush1.msra.mxu0 0.0
    %2265 = vmatprep.subr.mxu0 0.0
    %2266 = vmatpush1.msra.mxu0 0.0
    %2267 = vmatprep.subr.mxu0 0.0
    %2268 = vmatpush1.msra.mxu0 0.0
    %2269 = vmatprep.subr.mxu0 0.0
    %2270 = vmatpush1.msra.mxu0 0.0
    %2271 = vmatprep.subr.mxu0 0.0
    %2272 = vmatpush1.msra.mxu0 0.0
    %2273 = vmatprep.subr.mxu0 0.0
    %2274 = vmatpush1.msra.mxu0 0.0
    %2275 = vmatprep.subr.mxu0 0.0
    %2276 = vmatpush1.msra.mxu0 0.0
    %2277 = vmatprep.subr.mxu0 0.0
    %2278 = vmatpush1.msra.mxu0 0.0
    %2279 = vmatprep.subr.mxu0 0.0
    %2280 = vmatpush1.msra.mxu0 0.0
    %2281 = vmatprep.subr.mxu0 0.0
    %2282 = vmatpush1.msra.mxu0 0.0
    %2283 = vmatprep.subr.mxu0 0.0
    %2284 = vmatpush1.msra.mxu0 0.0
    %2285 = vmatprep.subr.mxu0 0.0
    %2286 = vmatpush1.msra.mxu0 0.0
    %2287 = vmatprep.subr.mxu0 0.0
    %2288 = vmatpush1.msra.mxu0 0.0
    %2289 = vmatprep.subr.mxu0 0.0
    %2290 = vmatpush1.msra.mxu0 0.0
    %2291 = vmatprep.subr.mxu0 0.0
    %2292 = vmatpush1.msra.mxu0 0.0
    %2293 = vmatprep.subr.mxu0 0.0
    %2294 = vmatpush1.msra.mxu0 0.0
    %2295 = vmatprep.mubr.f32.mxu0 0.0
    %2296 = vmatmul.mubr.f32.gmra.mrb[0].mxu0 %v2226
    %v2297 = vpop.f32.mrb[0].mxu0
    %v2298 = vadd.f32 %v2223, %v2297
    %v2299 = vpop.f32.mrb[0].mxu0
    %2300 = vmatprep.mubr.f32.mxu0 0.0
    %2301 = vmatmul.mubr.f32.gmra.mrb[0].mxu0 %v2229
    %v2302 = vpop.f32.mrb[0].mxu0
    %v2303 = vadd.f32 %v2223, %v2302
    %v2304 = vpop.f32.mrb[0].mxu0
    %2305 = vdwg.mxu0
    %2307 = vrot.lane.b32.xlu0 %v2298, 96
    %v2308 = vpop.permute.xlu0 %2307
    %v2309 = vsel %vm261, %v2298, 0
    %v2311 = vsel %vm261, %v2308, 0
    %2313 = vmatprep.subr.mxu0 0.0
    %2314 = vmatpush1.xpose.msra.mxu0 %v2311
    %2315 = vmatprep.subr.mxu0 0.0
    %2316 = vmatpush1.xpose.msra.mxu0 0.0
    %2317 = vmatprep.subr.mxu0 0.0
    %2318 = vmatpush1.xpose.msra.mxu0 0.0
    %2319 = vmatprep.subr.mxu0 0.0
    %2320 = vmatpush1.xpose.msra.mxu0 0.0
    %2321 = vmatprep.subr.mxu0 0.0
    %2322 = vmatpush1.xpose.msra.mxu0 0.0
    %2323 = vmatprep.subr.mxu0 0.0
    %2324 = vmatpush1.xpose.msra.mxu0 0.0
    %2325 = vmatprep.subr.mxu0 0.0
    %2326 = vmatpush1.xpose.msra.mxu0 0.0
    %2327 = vmatprep.subr.mxu0 0.0
    %2328 = vmatpush1.xpose.msra.mxu0 0.0
    %2329 = vmatprep.subr.mxu0 0.0
    %2330 = vmatpush1.xpose.msra.mxu0 0.0
    %2331 = vmatprep.subr.mxu0 0.0
    %2332 = vmatpush1.xpose.msra.mxu0 0.0
    %2333 = vmatprep.subr.mxu0 0.0
    %2334 = vmatpush1.xpose.msra.mxu0 0.0
    %2335 = vmatprep.subr.mxu0 0.0
    %2336 = vmatpush1.xpose.msra.mxu0 0.0
    %2337 = vmatprep.subr.mxu0 0.0
    %2338 = vmatpush1.xpose.msra.mxu0 0.0
    %2339 = vmatprep.subr.mxu0 0.0
    %2340 = vmatpush1.xpose.msra.mxu0 0.0
    %2341 = vmatprep.subr.mxu0 0.0
    %2342 = vmatpush1.xpose.msra.mxu0 0.0
    %2343 = vmatprep.subr.mxu0 0.0
    %2344 = vmatpush1.xpose.msra.mxu0 0.0
    %2345 = vmatprep.subr.mxu0 0.0
    %2346 = vmatpush1.xpose.msra.mxu0 0.0
    %2347 = vmatprep.subr.mxu0 0.0
    %2348 = vmatpush1.xpose.msra.mxu0 0.0
    %2349 = vmatprep.subr.mxu0 0.0
    %2350 = vmatpush1.xpose.msra.mxu0 0.0
    %2351 = vmatprep.subr.mxu0 0.0
    %2352 = vmatpush1.xpose.msra.mxu0 0.0
    %2353 = vmatprep.subr.mxu0 0.0
    %2354 = vmatpush1.xpose.msra.mxu0 0.0
    %2355 = vmatprep.subr.mxu0 0.0
    %2356 = vmatpush1.xpose.msra.mxu0 0.0
    %2357 = vmatprep.subr.mxu0 0.0
    %2358 = vmatpush1.xpose.msra.mxu0 0.0
    %2359 = vmatprep.subr.mxu0 0.0
    %2360 = vmatpush1.xpose.msra.mxu0 0.0
    %2361 = vmatprep.subr.mxu0 0.0
    %2362 = vmatpush1.xpose.msra.mxu0 0.0
    %2363 = vmatprep.subr.mxu0 0.0
    %2364 = vmatpush1.xpose.msra.mxu0 0.0
    %2365 = vmatprep.subr.mxu0 0.0
    %2366 = vmatpush1.xpose.msra.mxu0 0.0
    %2367 = vmatprep.subr.mxu0 0.0
    %2368 = vmatpush1.xpose.msra.mxu0 0.0
    %2369 = vmatprep.subr.mxu0 0.0
    %2370 = vmatpush1.xpose.msra.mxu0 0.0
    %2371 = vmatprep.subr.mxu0 0.0
    %2372 = vmatpush1.xpose.msra.mxu0 0.0
    %2373 = vmatprep.subr.mxu0 0.0
    %2374 = vmatpush1.xpose.msra.mxu0 0.0
    %2375 = vmatprep.subr.mxu0 0.0
    %2376 = vmatpush1.xpose.msra.mxu0 0.0
    %2377 = vmatprep.mubr.f32.mxu0 0.0
    %2378 = vmatmul.mubr.f32.gmra.mrb[0].mxu0 %v2309
    %v2379 = vpop.f32.mrb[0].mxu0
    %v2380 = vadd.f32 0.0, %v2379
    %v2381 = vpop.f32.mrb[0].mxu0
    %2382 = vdwg.mxu0
    %2384 = vrot.lane.b32.xlu0 %v2303, 96
    %v2385 = vpop.permute.xlu0 %2384
    %v2386 = vsel %vm261, %v2303, 0
    %v2388 = vsel %vm261, %v2385, 0
    %2390 = vmatprep.subr.mxu0 0.0
    %2391 = vmatpush1.xpose.msra.mxu0 %v2388
    %2392 = vmatprep.subr.mxu0 0.0
    %2393 = vmatpush1.xpose.msra.mxu0 0.0
    %2394 = vmatprep.subr.mxu0 0.0
    %2395 = vmatpush1.xpose.msra.mxu0 0.0
    %2396 = vmatprep.subr.mxu0 0.0
    %2397 = vmatpush1.xpose.msra.mxu0 0.0
    %2398 = vmatprep.subr.mxu0 0.0
    %2399 = vmatpush1.xpose.msra.mxu0 0.0
    %2400 = vmatprep.subr.mxu0 0.0
    %2401 = vmatpush1.xpose.msra.mxu0 0.0
    %2402 = vmatprep.subr.mxu0 0.0
    %2403 = vmatpush1.xpose.msra.mxu0 0.0
    %2404 = vmatprep.subr.mxu0 0.0
    %2405 = vmatpush1.xpose.msra.mxu0 0.0
    %2406 = vmatprep.subr.mxu0 0.0
    %2407 = vmatpush1.xpose.msra.mxu0 0.0
    %2408 = vmatprep.subr.mxu0 0.0
    %2409 = vmatpush1.xpose.msra.mxu0 0.0
    %2410 = vmatprep.subr.mxu0 0.0
    %2411 = vmatpush1.xpose.msra.mxu0 0.0
    %2412 = vmatprep.subr.mxu0 0.0
    %2413 = vmatpush1.xpose.msra.mxu0 0.0
    %2414 = vmatprep.subr.mxu0 0.0
    %2415 = vmatpush1.xpose.msra.mxu0 0.0
    %2416 = vmatprep.subr.mxu0 0.0
    %2417 = vmatpush1.xpose.msra.mxu0 0.0
    %2418 = vmatprep.subr.mxu0 0.0
    %2419 = vmatpush1.xpose.msra.mxu0 0.0
    %2420 = vmatprep.subr.mxu0 0.0
    %2421 = vmatpush1.xpose.msra.mxu0 0.0
    %2422 = vmatprep.subr.mxu0 0.0
    %2423 = vmatpush1.xpose.msra.mxu0 0.0
    %2424 = vmatprep.subr.mxu0 0.0
    %2425 = vmatpush1.xpose.msra.mxu0 0.0
    %2426 = vmatprep.subr.mxu0 0.0
    %2427 = vmatpush1.xpose.msra.mxu0 0.0
    %2428 = vmatprep.subr.mxu0 0.0
    %2429 = vmatpush1.xpose.msra.mxu0 0.0
    %2430 = vmatprep.subr.mxu0 0.0
    %2431 = vmatpush1.xpose.msra.mxu0 0.0
    %2432 = vmatprep.subr.mxu0 0.0
    %2433 = vmatpush1.xpose.msra.mxu0 0.0
    %2434 = vmatprep.subr.mxu0 0.0
    %2435 = vmatpush1.xpose.msra.mxu0 0.0
    %2436 = vmatprep.subr.mxu0 0.0
    %2437 = vmatpush1.xpose.msra.mxu0 0.0
    %2438 = vmatprep.subr.mxu0 0.0
    %2439 = vmatpush1.xpose.msra.mxu0 0.0
    %2440 = vmatprep.subr.mxu0 0.0
    %2441 = vmatpush1.xpose.msra.mxu0 0.0
    %2442 = vmatprep.subr.mxu0 0.0
    %2443 = vmatpush1.xpose.msra.mxu0 0.0
    %2444 = vmatprep.subr.mxu0 0.0
    %2445 = vmatpush1.xpose.msra.mxu0 0.0
    %2446 = vmatprep.subr.mxu0 0.0
    %2447 = vmatpush1.xpose.msra.mxu0 0.0
    %2448 = vmatprep.subr.mxu0 0.0
    %2449 = vmatpush1.xpose.msra.mxu0 0.0
    %2450 = vmatprep.subr.mxu0 0.0
    %2451 = vmatpush1.xpose.msra.mxu0 0.0
    %2452 = vmatprep.subr.mxu0 0.0
    %2453 = vmatpush1.xpose.msra.mxu0 0.0
    %2454 = vmatprep.mubr.f32.mxu0 0.0
    %2455 = vmatmul.mubr.f32.gmra.mrb[0].mxu0 %v2386
    %v2456 = vpop.f32.mrb[0].mxu0
    %v2457 = vadd.f32 0.0, %v2456
    %v2458 = vpop.f32.mrb[0].mxu0
    %2459 = vdwg.mxu0
    %v2460 = vmul.f32 %v2380, 0.35355338
    %v2461 = vmul.f32 %v2457, 0.35355338
    %v2462 = vsel %vm261, %v2460, -inf
    %2463 = vmax.xlane.f32.xlu0 %v2462
    %v2464 = vpop.xlane.xlu0 %2463
    %v2465 = vsel %vm261, %v2461, -inf
    %2466 = vmax.xlane.f32.xlu0 %v2465
    %v2467 = vpop.xlane.xlu0 %2466
    %v2468 = vsub.f32 %v2460, %v2464
    %v2469 = vsub.f32 %v2461, %v2467
    %v2470 = vmul.f32 %v2468, 1.442695
    %v2471 = vpow.pop %v2470
    %v2472 = vmul.f32 %v2469, 1.442695
    %v2473 = vpow.pop %v2472
    %v2474 = vsel %vm261, %v2471, 0.0
    %2475 = vadd.xlane.f32.xlu0 %v2474
    %v2476 = vpop.xlane.xlu0 %2475
    %v2477 = vsel %vm261, %v2473, 0.0
    %2478 = vadd.xlane.f32.xlu0 %v2477
    %v2479 = vpop.xlane.xlu0 %2478
    %v2480 = vrcp.pop %v2476
    %v2481 = vrcp.pop %v2479
    %v2482 = vmul.f32 %v2471, %v2480
    %v2483 = vmul.f32 %v2473, %v2481
    %2484 = vrot.lane.b32.xlu0 %v2298, 64
    %v2485 = vpop.permute.xlu0 %2484
    %v2488 = vsel %vm261, %v2482, 0
    %2490 = vmatprep.subr.mxu0 0.0
    %2491 = vmatpush1.msra.mxu0 %v2485
    %2492 = vmatprep.subr.mxu0 0.0
    %2493 = vmatpush1.msra.mxu0 0.0
    %2494 = vmatprep.subr.mxu0 0.0
    %2495 = vmatpush1.msra.mxu0 0.0
    %2496 = vmatprep.subr.mxu0 0.0
    %2497 = vmatpush1.msra.mxu0 0.0
    %2498 = vmatprep.subr.mxu0 0.0
    %2499 = vmatpush1.msra.mxu0 0.0
    %2500 = vmatprep.subr.mxu0 0.0
    %2501 = vmatpush1.msra.mxu0 0.0
    %2502 = vmatprep.subr.mxu0 0.0
    %2503 = vmatpush1.msra.mxu0 0.0
    %2504 = vmatprep.subr.mxu0 0.0
    %2505 = vmatpush1.msra.mxu0 0.0
    %2506 = vmatprep.subr.mxu0 0.0
    %2507 = vmatpush1.msra.mxu0 0.0
    %2508 = vmatprep.subr.mxu0 0.0
    %2509 = vmatpush1.msra.mxu0 0.0
    %2510 = vmatprep.subr.mxu0 0.0
    %2511 = vmatpush1.msra.mxu0 0.0
    %2512 = vmatprep.subr.mxu0 0.0
    %2513 = vmatpush1.msra.mxu0 0.0
    %2514 = vmatprep.subr.mxu0 0.0
    %2515 = vmatpush1.msra.mxu0 0.0
    %2516 = vmatprep.subr.mxu0 0.0
    %2517 = vmatpush1.msra.mxu0 0.0
    %2518 = vmatprep.subr.mxu0 0.0
    %2519 = vmatpush1.msra.mxu0 0.0
    %2520 = vmatprep.subr.mxu0 0.0
    %2521 = vmatpush1.msra.mxu0 0.0
    %2522 = vmatprep.subr.mxu0 0.0
    %2523 = vmatpush1.msra.mxu0 0.0
    %2524 = vmatprep.subr.mxu0 0.0
    %2525 = vmatpush1.msra.mxu0 0.0
    %2526 = vmatprep.subr.mxu0 0.0
    %2527 = vmatpush1.msra.mxu0 0.0
    %2528 = vmatprep.subr.mxu0 0.0
    %2529 = vmatpush1.msra.mxu0 0.0
    %2530 = vmatprep.subr.mxu0 0.0
    %2531 = vmatpush1.msra.mxu0 0.0
    %2532 = vmatprep.subr.mxu0 0.0
    %2533 = vmatpush1.msra.mxu0 0.0
    %2534 = vmatprep.subr.mxu0 0.0
    %2535 = vmatpush1.msra.mxu0 0.0
    %2536 = vmatprep.subr.mxu0 0.0
    %2537 = vmatpush1.msra.mxu0 0.0
    %2538 = vmatprep.subr.mxu0 0.0
    %2539 = vmatpush1.msra.mxu0 0.0
    %2540 = vmatprep.subr.mxu0 0.0
    %2541 = vmatpush1.msra.mxu0 0.0
    %2542 = vmatprep.subr.mxu0 0.0
    %2543 = vmatpush1.msra.mxu0 0.0
    %2544 = vmatprep.subr.mxu0 0.0
    %2545 = vmatpush1.msra.mxu0 0.0
    %2546 = vmatprep.subr.mxu0 0.0
    %2547 = vmatpush1.msra.mxu0 0.0
    %2548 = vmatprep.subr.mxu0 0.0
    %2549 = vmatpush1.msra.mxu0 0.0
    %2550 = vmatprep.subr.mxu0 0.0
    %2551 = vmatpush1.msra.mxu0 0.0
    %2552 = vmatprep.subr.mxu0 0.0
    %2553 = vmatpush1.msra.mxu0 0.0
    %2554 = vmatprep.mubr.f32.mxu0 0.0
    %2555 = vmatmul.mubr.f32.gmra.mrb[0].mxu0 %v2488
    %v2556 = vpop.f32.mrb[0].mxu0
    %v2557 = vadd.f32 0.0, %v2556
    %v2558 = vpop.f32.mrb[0].mxu0
    %2559 = vdwg.mxu0
    %2560 = vrot.lane.b32.xlu0 %v2303, 64
    %v2561 = vpop.permute.xlu0 %2560
    %v2564 = vsel %vm261, %v2483, 0
    %2566 = vmatprep.subr.mxu0 0.0
    %2567 = vmatpush1.msra.mxu0 %v2561
    %2568 = vmatprep.subr.mxu0 0.0
    %2569 = vmatpush1.msra.mxu0 0.0
    %2570 = vmatprep.subr.mxu0 0.0
    %2571 = vmatpush1.msra.mxu0 0.0
    %2572 = vmatprep.subr.mxu0 0.0
    %2573 = vmatpush1.msra.mxu0 0.0
    %2574 = vmatprep.subr.mxu0 0.0
    %2575 = vmatpush1.msra.mxu0 0.0
    %2576 = vmatprep.subr.mxu0 0.0
    %2577 = vmatpush1.msra.mxu0 0.0
    %2578 = vmatprep.subr.mxu0 0.0
    %2579 = vmatpush1.msra.mxu0 0.0
    %2580 = vmatprep.subr.mxu0 0.0
    %2581 = vmatpush1.msra.mxu0 0.0
    %2582 = vmatprep.subr.mxu0 0.0
    %2583 = vmatpush1.msra.mxu0 0.0
    %2584 = vmatprep.subr.mxu0 0.0
    %2585 = vmatpush1.msra.mxu0 0.0
    %2586 = vmatprep.subr.mxu0 0.0
    %2587 = vmatpush1.msra.mxu0 0.0
    %2588 = vmatprep.subr.mxu0 0.0
    %2589 = vmatpush1.msra.mxu0 0.0
    %2590 = vmatprep.subr.mxu0 0.0
    %2591 = vmatpush1.msra.mxu0 0.0
    %2592 = vmatprep.subr.mxu0 0.0
    %2593 = vmatpush1.msra.mxu0 0.0
    %2594 = vmatprep.subr.mxu0 0.0
    %2595 = vmatpush1.msra.mxu0 0.0
    %2596 = vmatprep.subr.mxu0 0.0
    %2597 = vmatpush1.msra.mxu0 0.0
    %2598 = vmatprep.subr.mxu0 0.0
    %2599 = vmatpush1.msra.mxu0 0.0
    %2600 = vmatprep.subr.mxu0 0.0
    %2601 = vmatpush1.msra.mxu0 0.0
    %2602 = vmatprep.subr.mxu0 0.0
    %2603 = vmatpush1.msra.mxu0 0.0
    %2604 = vmatprep.subr.mxu0 0.0
    %2605 = vmatpush1.msra.mxu0 0.0
    %2606 = vmatprep.subr.mxu0 0.0
    %2607 = vmatpush1.msra.mxu0 0.0
    %2608 = vmatprep.subr.mxu0 0.0
    %2609 = vmatpush1.msra.mxu0 0.0
    %2610 = vmatprep.subr.mxu0 0.0
    %2611 = vmatpush1.msra.mxu0 0.0
    %2612 = vmatprep.subr.mxu0 0.0
    %2613 = vmatpush1.msra.mxu0 0.0
    %2614 = vmatprep.subr.mxu0 0.0
    %2615 = vmatpush1.msra.mxu0 0.0
    %2616 = vmatprep.subr.mxu0 0.0
    %2617 = vmatpush1.msra.mxu0 0.0
    %2618 = vmatprep.subr.mxu0 0.0
    %2619 = vmatpush1.msra.mxu0 0.0
    %2620 = vmatprep.subr.mxu0 0.0
    %2621 = vmatpush1.msra.mxu0 0.0
    %2622 = vmatprep.subr.mxu0 0.0
    %2623 = vmatpush1.msra.mxu0 0.0
    %2624 = vmatprep.subr.mxu0 0.0
    %2625 = vmatpush1.msra.mxu0 0.0
    %2626 = vmatprep.subr.mxu0 0.0
    %2627 = vmatpush1.msra.mxu0 0.0
    %2628 = vmatprep.subr.mxu0 0.0
    %2629 = vmatpush1.msra.mxu0 0.0
    %2630 = vmatprep.mubr.f32.mxu0 0.0
    %2631 = vmatmul.mubr.f32.gmra.mrb[0].mxu0 %v2564
    %v2632 = vpop.f32.mrb[0].mxu0
    %v2633 = vadd.f32 0.0, %v2632
    %v2634 = vpop.f32.mrb[0].mxu0
    %2635 = vdwg.mxu0
    %s2636 = scalar_lea.vmem %s5, 32
    %v2637 = vld [vmem:[%s2636] sm:$0xff]
    %2638 = vrot.lane.b32.xlu0 %v2298, 120
    %v2639 = vpop.permute.xlu0 %2638
    %2640 = vrot.lane.b32.xlu0 %v2298, 88
    %v2641 = vpop.permute.xlu0 %2640
    %v2642 = vsel %vm261, %v2639, 0
    %v2644 = vsel %vm261, %v2641, 0
    %2646 = vmatprep.subr.mxu0 0.0
    %2647 = vmatpush1.xpose.msra.mxu0 %v2644
    %2648 = vmatprep.subr.mxu0 0.0
    %2649 = vmatpush1.xpose.msra.mxu0 0.0
    %2650 = vmatprep.subr.mxu0 0.0
    %2651 = vmatpush1.xpose.msra.mxu0 0.0
    %2652 = vmatprep.subr.mxu0 0.0
    %2653 = vmatpush1.xpose.msra.mxu0 0.0
    %2654 = vmatprep.subr.mxu0 0.0
    %2655 = vmatpush1.xpose.msra.mxu0 0.0
    %2656 = vmatprep.subr.mxu0 0.0
    %2657 = vmatpush1.xpose.msra.mxu0 0.0
    %2658 = vmatprep.subr.mxu0 0.0
    %2659 = vmatpush1.xpose.msra.mxu0 0.0
    %2660 = vmatprep.subr.mxu0 0.0
    %2661 = vmatpush1.xpose.msra.mxu0 0.0
    %2662 = vmatprep.subr.mxu0 0.0
    %2663 = vmatpush1.xpose.msra.mxu0 0.0
    %2664 = vmatprep.subr.mxu0 0.0
    %2665 = vmatpush1.xpose.msra.mxu0 0.0
    %2666 = vmatprep.subr.mxu0 0.0
    %2667 = vmatpush1.xpose.msra.mxu0 0.0
    %2668 = vmatprep.subr.mxu0 0.0
    %2669 = vmatpush1.xpose.msra.mxu0 0.0
    %2670 = vmatprep.subr.mxu0 0.0
    %2671 = vmatpush1.xpose.msra.mxu0 0.0
    %2672 = vmatprep.subr.mxu0 0.0
    %2673 = vmatpush1.xpose.msra.mxu0 0.0
    %2674 = vmatprep.subr.mxu0 0.0
    %2675 = vmatpush1.xpose.msra.mxu0 0.0
    %2676 = vmatprep.subr.mxu0 0.0
    %2677 = vmatpush1.xpose.msra.mxu0 0.0
    %2678 = vmatprep.subr.mxu0 0.0
    %2679 = vmatpush1.xpose.msra.mxu0 0.0
    %2680 = vmatprep.subr.mxu0 0.0
    %2681 = vmatpush1.xpose.msra.mxu0 0.0
    %2682 = vmatprep.subr.mxu0 0.0
    %2683 = vmatpush1.xpose.msra.mxu0 0.0
    %2684 = vmatprep.subr.mxu0 0.0
    %2685 = vmatpush1.xpose.msra.mxu0 0.0
    %2686 = vmatprep.subr.mxu0 0.0
    %2687 = vmatpush1.xpose.msra.mxu0 0.0
    %2688 = vmatprep.subr.mxu0 0.0
    %2689 = vmatpush1.xpose.msra.mxu0 0.0
    %2690 = vmatprep.subr.mxu0 0.0
    %2691 = vmatpush1.xpose.msra.mxu0 0.0
    %2692 = vmatprep.subr.mxu0 0.0
    %2693 = vmatpush1.xpose.msra.mxu0 0.0
    %2694 = vmatprep.subr.mxu0 0.0
    %2695 = vmatpush1.xpose.msra.mxu0 0.0
    %2696 = vmatprep.subr.mxu0 0.0
    %2697 = vmatpush1.xpose.msra.mxu0 0.0
    %2698 = vmatprep.subr.mxu0 0.0
    %2699 = vmatpush1.xpose.msra.mxu0 0.0
    %2700 = vmatprep.subr.mxu0 0.0
    %2701 = vmatpush1.xpose.msra.mxu0 0.0
    %2702 = vmatprep.subr.mxu0 0.0
    %2703 = vmatpush1.xpose.msra.mxu0 0.0
    %2704 = vmatprep.subr.mxu0 0.0
    %2705 = vmatpush1.xpose.msra.mxu0 0.0
    %2706 = vmatprep.subr.mxu0 0.0
    %2707 = vmatpush1.xpose.msra.mxu0 0.0
    %2708 = vmatprep.subr.mxu0 0.0
    %2709 = vmatpush1.xpose.msra.mxu0 0.0
    %2710 = vmatprep.mubr.f32.mxu0 0.0
    %2711 = vmatmul.mubr.f32.gmra.mrb[0].mxu0 %v2642
    %v2712 = vpop.f32.mrb[0].mxu0
    %v2713 = vadd.f32 0.0, %v2712
    %v2714 = vpop.f32.mrb[0].mxu0
    %2715 = vdwg.mxu0
    %2716 = vrot.lane.b32.xlu0 %v2303, 120
    %v2717 = vpop.permute.xlu0 %2716
    %2718 = vrot.lane.b32.xlu0 %v2303, 88
    %v2719 = vpop.permute.xlu0 %2718
    %v2720 = vsel %vm261, %v2717, 0
    %v2722 = vsel %vm261, %v2719, 0
    %2724 = vmatprep.subr.mxu0 0.0
    %2725 = vmatpush1.xpose.msra.mxu0 %v2722
    %2726 = vmatprep.subr.mxu0 0.0
    %2727 = vmatpush1.xpose.msra.mxu0 0.0
    %2728 = vmatprep.subr.mxu0 0.0
    %2729 = vmatpush1.xpose.msra.mxu0 0.0
    %2730 = vmatprep.subr.mxu0 0.0
    %2731 = vmatpush1.xpose.msra.mxu0 0.0
    %2732 = vmatprep.subr.mxu0 0.0
    %2733 = vmatpush1.xpose.msra.mxu0 0.0
    %2734 = vmatprep.subr.mxu0 0.0
    %2735 = vmatpush1.xpose.msra.mxu0 0.0
    %2736 = vmatprep.subr.mxu0 0.0
    %2737 = vmatpush1.xpose.msra.mxu0 0.0
    %2738 = vmatprep.subr.mxu0 0.0
    %2739 = vmatpush1.xpose.msra.mxu0 0.0
    %2740 = vmatprep.subr.mxu0 0.0
    %2741 = vmatpush1.xpose.msra.mxu0 0.0
    %2742 = vmatprep.subr.mxu0 0.0
    %2743 = vmatpush1.xpose.msra.mxu0 0.0
    %2744 = vmatprep.subr.mxu0 0.0
    %2745 = vmatpush1.xpose.msra.mxu0 0.0
    %2746 = vmatprep.subr.mxu0 0.0
    %2747 = vmatpush1.xpose.msra.mxu0 0.0
    %2748 = vmatprep.subr.mxu0 0.0
    %2749 = vmatpush1.xpose.msra.mxu0 0.0
    %2750 = vmatprep.subr.mxu0 0.0
    %2751 = vmatpush1.xpose.msra.mxu0 0.0
    %2752 = vmatprep.subr.mxu0 0.0
    %2753 = vmatpush1.xpose.msra.mxu0 0.0
    %2754 = vmatprep.subr.mxu0 0.0
    %2755 = vmatpush1.xpose.msra.mxu0 0.0
    %2756 = vmatprep.subr.mxu0 0.0
    %2757 = vmatpush1.xpose.msra.mxu0 0.0
    %2758 = vmatprep.subr.mxu0 0.0
    %2759 = vmatpush1.xpose.msra.mxu0 0.0
    %2760 = vmatprep.subr.mxu0 0.0
    %2761 = vmatpush1.xpose.msra.mxu0 0.0
    %2762 = vmatprep.subr.mxu0 0.0
    %2763 = vmatpush1.xpose.msra.mxu0 0.0
    %2764 = vmatprep.subr.mxu0 0.0
    %2765 = vmatpush1.xpose.msra.mxu0 0.0
    %2766 = vmatprep.subr.mxu0 0.0
    %2767 = vmatpush1.xpose.msra.mxu0 0.0
    %2768 = vmatprep.subr.mxu0 0.0
    %2769 = vmatpush1.xpose.msra.mxu0 0.0
    %2770 = vmatprep.subr.mxu0 0.0
    %2771 = vmatpush1.xpose.msra.mxu0 0.0
    %2772 = vmatprep.subr.mxu0 0.0
    %2773 = vmatpush1.xpose.msra.mxu0 0.0
    %2774 = vmatprep.subr.mxu0 0.0
    %2775 = vmatpush1.xpose.msra.mxu0 0.0
    %2776 = vmatprep.subr.mxu0 0.0
    %2777 = vmatpush1.xpose.msra.mxu0 0.0
    %2778 = vmatprep.subr.mxu0 0.0
    %2779 = vmatpush1.xpose.msra.mxu0 0.0
    %2780 = vmatprep.subr.mxu0 0.0
    %2781 = vmatpush1.xpose.msra.mxu0 0.0
    %2782 = vmatprep.subr.mxu0 0.0
    %2783 = vmatpush1.xpose.msra.mxu0 0.0
    %2784 = vmatprep.subr.mxu0 0.0
    %2785 = vmatpush1.xpose.msra.mxu0 0.0
    %2786 = vmatprep.subr.mxu0 0.0
    %2787 = vmatpush1.xpose.msra.mxu0 0.0
    %2788 = vmatprep.mubr.f32.mxu0 0.0
    %2789 = vmatmul.mubr.f32.gmra.mrb[0].mxu0 %v2720
    %v2790 = vpop.f32.mrb[0].mxu0
    %v2791 = vadd.f32 0.0, %v2790
    %v2792 = vpop.f32.mrb[0].mxu0
    %2793 = vdwg.mxu0
    %v2794 = vmul.f32 %v2713, 0.35355338
    %v2795 = vmul.f32 %v2791, 0.35355338
    %v2796 = vsel %vm261, %v2794, -inf
    %2797 = vmax.xlane.f32.xlu0 %v2796
    %v2798 = vpop.xlane.xlu0 %2797
    %v2799 = vsel %vm261, %v2795, -inf
    %2800 = vmax.xlane.f32.xlu0 %v2799
    %v2801 = vpop.xlane.xlu0 %2800
    %v2802 = vsub.f32 %v2794, %v2798
    %v2803 = vsub.f32 %v2795, %v2801
    %v2804 = vmul.f32 %v2802, 1.442695
    %v2805 = vpow.pop %v2804
    %v2806 = vmul.f32 %v2803, 1.442695
    %v2807 = vpow.pop %v2806
    %v2808 = vsel %vm261, %v2805, 0.0
    %2809 = vadd.xlane.f32.xlu0 %v2808
    %v2810 = vpop.xlane.xlu0 %2809
    %v2811 = vsel %vm261, %v2807, 0.0
    %2812 = vadd.xlane.f32.xlu0 %v2811
    %v2813 = vpop.xlane.xlu0 %2812
    %v2814 = vrcp.pop %v2810
    %v2815 = vrcp.pop %v2813
    %v2816 = vmul.f32 %v2805, %v2814
    %v2817 = vmul.f32 %v2807, %v2815
    %2818 = vrot.lane.b32.xlu0 %v2298, 56
    %v2819 = vpop.permute.xlu0 %2818
    %v2822 = vsel %vm261, %v2816, 0
    %2824 = vmatprep.subr.mxu0 0.0
    %2825 = vmatpush1.msra.mxu0 %v2819
    %2826 = vmatprep.subr.mxu0 0.0
    %2827 = vmatpush1.msra.mxu0 0.0
    %2828 = vmatprep.subr.mxu0 0.0
    %2829 = vmatpush1.msra.mxu0 0.0
    %2830 = vmatprep.subr.mxu0 0.0
    %2831 = vmatpush1.msra.mxu0 0.0
    %2832 = vmatprep.subr.mxu0 0.0
    %2833 = vmatpush1.msra.mxu0 0.0
    %2834 = vmatprep.subr.mxu0 0.0
    %2835 = vmatpush1.msra.mxu0 0.0
    %2836 = vmatprep.subr.mxu0 0.0
    %2837 = vmatpush1.msra.mxu0 0.0
    %2838 = vmatprep.subr.mxu0 0.0
    %2839 = vmatpush1.msra.mxu0 0.0
    %2840 = vmatprep.subr.mxu0 0.0
    %2841 = vmatpush1.msra.mxu0 0.0
    %2842 = vmatprep.subr.mxu0 0.0
    %2843 = vmatpush1.msra.mxu0 0.0
    %2844 = vmatprep.subr.mxu0 0.0
    %2845 = vmatpush1.msra.mxu0 0.0
    %2846 = vmatprep.subr.mxu0 0.0
    %2847 = vmatpush1.msra.mxu0 0.0
    %2848 = vmatprep.subr.mxu0 0.0
    %2849 = vmatpush1.msra.mxu0 0.0
    %2850 = vmatprep.subr.mxu0 0.0
    %2851 = vmatpush1.msra.mxu0 0.0
    %2852 = vmatprep.subr.mxu0 0.0
    %2853 = vmatpush1.msra.mxu0 0.0
    %2854 = vmatprep.subr.mxu0 0.0
    %2855 = vmatpush1.msra.mxu0 0.0
    %2856 = vmatprep.subr.mxu0 0.0
    %2857 = vmatpush1.msra.mxu0 0.0
    %2858 = vmatprep.subr.mxu0 0.0
    %2859 = vmatpush1.msra.mxu0 0.0
    %2860 = vmatprep.subr.mxu0 0.0
    %2861 = vmatpush1.msra.mxu0 0.0
    %2862 = vmatprep.subr.mxu0 0.0
    %2863 = vmatpush1.msra.mxu0 0.0
    %2864 = vmatprep.subr.mxu0 0.0
    %2865 = vmatpush1.msra.mxu0 0.0
    %2866 = vmatprep.subr.mxu0 0.0
    %2867 = vmatpush1.msra.mxu0 0.0
    %2868 = vmatprep.subr.mxu0 0.0
    %2869 = vmatpush1.msra.mxu0 0.0
    %2870 = vmatprep.subr.mxu0 0.0
    %2871 = vmatpush1.msra.mxu0 0.0
    %2872 = vmatprep.subr.mxu0 0.0
    %2873 = vmatpush1.msra.mxu0 0.0
    %2874 = vmatprep.subr.mxu0 0.0
    %2875 = vmatpush1.msra.mxu0 0.0
    %2876 = vmatprep.subr.mxu0 0.0
    %2877 = vmatpush1.msra.mxu0 0.0
    %2878 = vmatprep.subr.mxu0 0.0
    %2879 = vmatpush1.msra.mxu0 0.0
    %2880 = vmatprep.subr.mxu0 0.0
    %2881 = vmatpush1.msra.mxu0 0.0
    %2882 = vmatprep.subr.mxu0 0.0
    %2883 = vmatpush1.msra.mxu0 0.0
    %2884 = vmatprep.subr.mxu0 0.0
    %2885 = vmatpush1.msra.mxu0 0.0
    %2886 = vmatprep.subr.mxu0 0.0
    %2887 = vmatpush1.msra.mxu0 0.0
    %2888 = vmatprep.mubr.f32.mxu0 0.0
    %2889 = vmatmul.mubr.f32.gmra.mrb[0].mxu0 %v2822
    %v2890 = vpop.f32.mrb[0].mxu0
    %v2891 = vadd.f32 0.0, %v2890
    %v2892 = vpop.f32.mrb[0].mxu0
    %2893 = vdwg.mxu0
    %2894 = vrot.lane.b32.xlu0 %v2303, 56
    %v2895 = vpop.permute.xlu0 %2894
    %v2898 = vsel %vm261, %v2817, 0
    %2900 = vmatprep.subr.mxu0 0.0
    %2901 = vmatpush1.msra.mxu0 %v2895
    %2902 = vmatprep.subr.mxu0 0.0
    %2903 = vmatpush1.msra.mxu0 0.0
    %2904 = vmatprep.subr.mxu0 0.0
    %2905 = vmatpush1.msra.mxu0 0.0
    %2906 = vmatprep.subr.mxu0 0.0
    %2907 = vmatpush1.msra.mxu0 0.0
    %2908 = vmatprep.subr.mxu0 0.0
    %2909 = vmatpush1.msra.mxu0 0.0
    %2910 = vmatprep.subr.mxu0 0.0
    %2911 = vmatpush1.msra.mxu0 0.0
    %2912 = vmatprep.subr.mxu0 0.0
    %2913 = vmatpush1.msra.mxu0 0.0
    %2914 = vmatprep.subr.mxu0 0.0
    %2915 = vmatpush1.msra.mxu0 0.0
    %2916 = vmatprep.subr.mxu0 0.0
    %2917 = vmatpush1.msra.mxu0 0.0
    %2918 = vmatprep.subr.mxu0 0.0
    %2919 = vmatpush1.msra.mxu0 0.0
    %2920 = vmatprep.subr.mxu0 0.0
    %2921 = vmatpush1.msra.mxu0 0.0
    %2922 = vmatprep.subr.mxu0 0.0
    %2923 = vmatpush1.msra.mxu0 0.0
    %2924 = vmatprep.subr.mxu0 0.0
    %2925 = vmatpush1.msra.mxu0 0.0
    %2926 = vmatprep.subr.mxu0 0.0
    %2927 = vmatpush1.msra.mxu0 0.0
    %2928 = vmatprep.subr.mxu0 0.0
    %2929 = vmatpush1.msra.mxu0 0.0
    %2930 = vmatprep.subr.mxu0 0.0
    %2931 = vmatpush1.msra.mxu0 0.0
    %2932 = vmatprep.subr.mxu0 0.0
    %2933 = vmatpush1.msra.mxu0 0.0
    %2934 = vmatprep.subr.mxu0 0.0
    %2935 = vmatpush1.msra.mxu0 0.0
    %2936 = vmatprep.subr.mxu0 0.0
    %2937 = vmatpush1.msra.mxu0 0.0
    %2938 = vmatprep.subr.mxu0 0.0
    %2939 = vmatpush1.msra.mxu0 0.0
    %2940 = vmatprep.subr.mxu0 0.0
    %2941 = vmatpush1.msra.mxu0 0.0
    %2942 = vmatprep.subr.mxu0 0.0
    %2943 = vmatpush1.msra.mxu0 0.0
    %2944 = vmatprep.subr.mxu0 0.0
    %2945 = vmatpush1.msra.mxu0 0.0
    %2946 = vmatprep.subr.mxu0 0.0
    %2947 = vmatpush1.msra.mxu0 0.0
    %2948 = vmatprep.subr.mxu0 0.0
    %2949 = vmatpush1.msra.mxu0 0.0
    %2950 = vmatprep.subr.mxu0 0.0
    %2951 = vmatpush1.msra.mxu0 0.0
    %2952 = vmatprep.subr.mxu0 0.0
    %2953 = vmatpush1.msra.mxu0 0.0
    %2954 = vmatprep.subr.mxu0 0.0
    %2955 = vmatpush1.msra.mxu0 0.0
    %2956 = vmatprep.subr.mxu0 0.0
    %2957 = vmatpush1.msra.mxu0 0.0
    %2958 = vmatprep.subr.mxu0 0.0
    %2959 = vmatpush1.msra.mxu0 0.0
    %2960 = vmatprep.subr.mxu0 0.0
    %2961 = vmatpush1.msra.mxu0 0.0
    %2962 = vmatprep.subr.mxu0 0.0
    %2963 = vmatpush1.msra.mxu0 0.0
    %2964 = vmatprep.mubr.f32.mxu0 0.0
    %2965 = vmatmul.mubr.f32.gmra.mrb[0].mxu0 %v2898
    %v2966 = vpop.f32.mrb[0].mxu0
    %v2967 = vadd.f32 0.0, %v2966
    %v2968 = vpop.f32.mrb[0].mxu0
    %2969 = vdwg.mxu0
    %s2970 = scalar_lea.vmem %s5, 40
    %v2971 = vld [vmem:[%s2970] sm:$0xff]
    %v2973 = vsel %vm261, %v2891, 0
    %v2976 = vsel %vm261, %v2967, 0
    %2978 = vmatprep.subr.mxu0 0.0
    %2979 = vmatpush1.msra.mxu0 %v2971
    %2980 = vmatprep.subr.mxu0 0.0
    %2981 = vmatpush1.msra.mxu0 0.0
    %2982 = vmatprep.subr.mxu0 0.0
    %2983 = vmatpush1.msra.mxu0 0.0
    %2984 = vmatprep.subr.mxu0 0.0
    %2985 = vmatpush1.msra.mxu0 0.0
    %2986 = vmatprep.subr.mxu0 0.0
    %2987 = vmatpush1.msra.mxu0 0.0
    %2988 = vmatprep.subr.mxu0 0.0
    %2989 = vmatpush1.msra.mxu0 0.0
    %2990 = vmatprep.subr.mxu0 0.0
    %2991 = vmatpush1.msra.mxu0 0.0
    %2992 = vmatprep.subr.mxu0 0.0
    %2993 = vmatpush1.msra.mxu0 0.0
    %2994 = vmatprep.subr.mxu0 0.0
    %2995 = vmatpush1.msra.mxu0 0.0
    %2996 = vmatprep.subr.mxu0 0.0
    %2997 = vmatpush1.msra.mxu0 0.0
    %2998 = vmatprep.subr.mxu0 0.0
    %2999 = vmatpush1.msra.mxu0 0.0
    %3000 = vmatprep.subr.mxu0 0.0
    %3001 = vmatpush1.msra.mxu0 0.0
    %3002 = vmatprep.subr.mxu0 0.0
    %3003 = vmatpush1.msra.mxu0 0.0
    %3004 = vmatprep.subr.mxu0 0.0
    %3005 = vmatpush1.msra.mxu0 0.0
    %3006 = vmatprep.subr.mxu0 0.0
    %3007 = vmatpush1.msra.mxu0 0.0
    %3008 = vmatprep.subr.mxu0 0.0
    %3009 = vmatpush1.msra.mxu0 0.0
    %3010 = vmatprep.subr.mxu0 0.0
    %3011 = vmatpush1.msra.mxu0 0.0
    %3012 = vmatprep.subr.mxu0 0.0
    %3013 = vmatpush1.msra.mxu0 0.0
    %3014 = vmatprep.subr.mxu0 0.0
    %3015 = vmatpush1.msra.mxu0 0.0
    %3016 = vmatprep.subr.mxu0 0.0
    %3017 = vmatpush1.msra.mxu0 0.0
    %3018 = vmatprep.subr.mxu0 0.0
    %3019 = vmatpush1.msra.mxu0 0.0
    %3020 = vmatprep.subr.mxu0 0.0
    %3021 = vmatpush1.msra.mxu0 0.0
    %3022 = vmatprep.subr.mxu0 0.0
    %3023 = vmatpush1.msra.mxu0 0.0
    %3024 = vmatprep.subr.mxu0 0.0
    %3025 = vmatpush1.msra.mxu0 0.0
    %3026 = vmatprep.subr.mxu0 0.0
    %3027 = vmatpush1.msra.mxu0 0.0
    %3028 = vmatprep.subr.mxu0 0.0
    %3029 = vmatpush1.msra.mxu0 0.0
    %3030 = vmatprep.subr.mxu0 0.0
    %3031 = vmatpush1.msra.mxu0 0.0
    %3032 = vmatprep.subr.mxu0 0.0
    %3033 = vmatpush1.msra.mxu0 0.0
    %3034 = vmatprep.subr.mxu0 0.0
    %3035 = vmatpush1.msra.mxu0 0.0
    %3036 = vmatprep.subr.mxu0 0.0
    %3037 = vmatpush1.msra.mxu0 0.0
    %3038 = vmatprep.subr.mxu0 0.0
    %3039 = vmatpush1.msra.mxu0 0.0
    %3040 = vmatprep.subr.mxu0 0.0
    %3041 = vmatpush1.msra.mxu0 0.0
    %3042 = vmatprep.mubr.f32.mxu0 0.0
    %3043 = vmatmul.mubr.f32.gmra.mrb[0].mxu0 %v2973
    %v3044 = vpop.f32.mrb[0].mxu0
    %v3045 = vadd.f32 0.0, %v3044
    %v3046 = vpop.f32.mrb[0].mxu0
    %3047 = vmatprep.mubr.f32.mxu0 0.0
    %3048 = vmatmul.mubr.f32.gmra.mrb[0].mxu0 %v2976
    %v3049 = vpop.f32.mrb[0].mxu0
    %v3050 = vadd.f32 0.0, %v3049
    %v3051 = vpop.f32.mrb[0].mxu0
    %3052 = vdwg.mxu0
    %v3054 = vsel %vm261, %v2557, 0
    %v3057 = vsel %vm261, %v2633, 0
    %3059 = vmatprep.subr.mxu0 0.0
    %3060 = vmatpush1.msra.mxu0 %v2637
    %3061 = vmatprep.subr.mxu0 0.0
    %3062 = vmatpush1.msra.mxu0 0.0
    %3063 = vmatprep.subr.mxu0 0.0
    %3064 = vmatpush1.msra.mxu0 0.0
    %3065 = vmatprep.subr.mxu0 0.0
    %3066 = vmatpush1.msra.mxu0 0.0
    %3067 = vmatprep.subr.mxu0 0.0
    %3068 = vmatpush1.msra.mxu0 0.0
    %3069 = vmatprep.subr.mxu0 0.0
    %3070 = vmatpush1.msra.mxu0 0.0
    %3071 = vmatprep.subr.mxu0 0.0
    %3072 = vmatpush1.msra.mxu0 0.0
    %3073 = vmatprep.subr.mxu0 0.0
    %3074 = vmatpush1.msra.mxu0 0.0
    %3075 = vmatprep.subr.mxu0 0.0
    %3076 = vmatpush1.msra.mxu0 0.0
    %3077 = vmatprep.subr.mxu0 0.0
    %3078 = vmatpush1.msra.mxu0 0.0
    %3079 = vmatprep.subr.mxu0 0.0
    %3080 = vmatpush1.msra.mxu0 0.0
    %3081 = vmatprep.subr.mxu0 0.0
    %3082 = vmatpush1.msra.mxu0 0.0
    %3083 = vmatprep.subr.mxu0 0.0
    %3084 = vmatpush1.msra.mxu0 0.0
    %3085 = vmatprep.subr.mxu0 0.0
    %3086 = vmatpush1.msra.mxu0 0.0
    %3087 = vmatprep.subr.mxu0 0.0
    %3088 = vmatpush1.msra.mxu0 0.0
    %3089 = vmatprep.subr.mxu0 0.0
    %3090 = vmatpush1.msra.mxu0 0.0
    %3091 = vmatprep.subr.mxu0 0.0
    %3092 = vmatpush1.msra.mxu0 0.0
    %3093 = vmatprep.subr.mxu0 0.0
    %3094 = vmatpush1.msra.mxu0 0.0
    %3095 = vmatprep.subr.mxu0 0.0
    %3096 = vmatpush1.msra.mxu0 0.0
    %3097 = vmatprep.subr.mxu0 0.0
    %3098 = vmatpush1.msra.mxu0 0.0
    %3099 = vmatprep.subr.mxu0 0.0
    %3100 = vmatpush1.msra.mxu0 0.0
    %3101 = vmatprep.subr.mxu0 0.0
    %3102 = vmatpush1.msra.mxu0 0.0
    %3103 = vmatprep.subr.mxu0 0.0
    %3104 = vmatpush1.msra.mxu0 0.0
    %3105 = vmatprep.subr.mxu0 0.0
    %3106 = vmatpush1.msra.mxu0 0.0
    %3107 = vmatprep.subr.mxu0 0.0
    %3108 = vmatpush1.msra.mxu0 0.0
    %3109 = vmatprep.subr.mxu0 0.0
    %3110 = vmatpush1.msra.mxu0 0.0
    %3111 = vmatprep.subr.mxu0 0.0
    %3112 = vmatpush1.msra.mxu0 0.0
    %3113 = vmatprep.subr.mxu0 0.0
    %3114 = vmatpush1.msra.mxu0 0.0
    %3115 = vmatprep.subr.mxu0 0.0
    %3116 = vmatpush1.msra.mxu0 0.0
    %3117 = vmatprep.subr.mxu0 0.0
    %3118 = vmatpush1.msra.mxu0 0.0
    %3119 = vmatprep.subr.mxu0 0.0
    %3120 = vmatpush1.msra.mxu0 0.0
    %3121 = vmatprep.subr.mxu0 0.0
    %3122 = vmatpush1.msra.mxu0 0.0
    %3123 = vmatprep.mubr.f32.mxu0 0.0
    %3124 = vmatmul.mubr.f32.gmra.mrb[0].mxu0 %v3054
    %v3125 = vpop.f32.mrb[0].mxu0
    %v3126 = vadd.f32 %v3045, %v3125
    %v3127 = vpop.f32.mrb[0].mxu0
    %3128 = vmatprep.mubr.f32.mxu0 0.0
    %3129 = vmatmul.mubr.f32.gmra.mrb[0].mxu0 %v3057
    %v3130 = vpop.f32.mrb[0].mxu0
    %v3131 = vadd.f32 %v3050, %v3130
    %v3132 = vpop.f32.mrb[0].mxu0
    %3133 = vdwg.mxu0
    %3134 = vrot.lane.b32.xlu0 %v2298, 112
    %v3135 = vpop.permute.xlu0 %3134
    %3136 = vrot.lane.b32.xlu0 %v2298, 80
    %v3137 = vpop.permute.xlu0 %3136
    %v3138 = vsel %vm261, %v3135, 0
    %v3140 = vsel %vm261, %v3137, 0
    %3142 = vmatprep.subr.mxu0 0.0
    %3143 = vmatpush1.xpose.msra.mxu0 %v3140
    %3144 = vmatprep.subr.mxu0 0.0
    %3145 = vmatpush1.xpose.msra.mxu0 0.0
    %3146 = vmatprep.subr.mxu0 0.0
    %3147 = vmatpush1.xpose.msra.mxu0 0.0
    %3148 = vmatprep.subr.mxu0 0.0
    %3149 = vmatpush1.xpose.msra.mxu0 0.0
    %3150 = vmatprep.subr.mxu0 0.0
    %3151 = vmatpush1.xpose.msra.mxu0 0.0
    %3152 = vmatprep.subr.mxu0 0.0
    %3153 = vmatpush1.xpose.msra.mxu0 0.0
    %3154 = vmatprep.subr.mxu0 0.0
    %3155 = vmatpush1.xpose.msra.mxu0 0.0
    %3156 = vmatprep.subr.mxu0 0.0
    %3157 = vmatpush1.xpose.msra.mxu0 0.0
    %3158 = vmatprep.subr.mxu0 0.0
    %3159 = vmatpush1.xpose.msra.mxu0 0.0
    %3160 = vmatprep.subr.mxu0 0.0
    %3161 = vmatpush1.xpose.msra.mxu0 0.0
    %3162 = vmatprep.subr.mxu0 0.0
    %3163 = vmatpush1.xpose.msra.mxu0 0.0
    %3164 = vmatprep.subr.mxu0 0.0
    %3165 = vmatpush1.xpose.msra.mxu0 0.0
    %3166 = vmatprep.subr.mxu0 0.0
    %3167 = vmatpush1.xpose.msra.mxu0 0.0
    %3168 = vmatprep.subr.mxu0 0.0
    %3169 = vmatpush1.xpose.msra.mxu0 0.0
    %3170 = vmatprep.subr.mxu0 0.0
    %3171 = vmatpush1.xpose.msra.mxu0 0.0
    %3172 = vmatprep.subr.mxu0 0.0
    %3173 = vmatpush1.xpose.msra.mxu0 0.0
    %3174 = vmatprep.subr.mxu0 0.0
    %3175 = vmatpush1.xpose.msra.mxu0 0.0
    %3176 = vmatprep.subr.mxu0 0.0
    %3177 = vmatpush1.xpose.msra.mxu0 0.0
    %3178 = vmatprep.subr.mxu0 0.0
    %3179 = vmatpush1.xpose.msra.mxu0 0.0
    %3180 = vmatprep.subr.mxu0 0.0
    %3181 = vmatpush1.xpose.msra.mxu0 0.0
    %3182 = vmatprep.subr.mxu0 0.0
    %3183 = vmatpush1.xpose.msra.mxu0 0.0
    %3184 = vmatprep.subr.mxu0 0.0
    %3185 = vmatpush1.xpose.msra.mxu0 0.0
    %3186 = vmatprep.subr.mxu0 0.0
    %3187 = vmatpush1.xpose.msra.mxu0 0.0
    %3188 = vmatprep.subr.mxu0 0.0
    %3189 = vmatpush1.xpose.msra.mxu0 0.0
    %3190 = vmatprep.subr.mxu0 0.0
    %3191 = vmatpush1.xpose.msra.mxu0 0.0
    %3192 = vmatprep.subr.mxu0 0.0
    %3193 = vmatpush1.xpose.msra.mxu0 0.0
    %3194 = vmatprep.subr.mxu0 0.0
    %3195 = vmatpush1.xpose.msra.mxu0 0.0
    %3196 = vmatprep.subr.mxu0 0.0
    %3197 = vmatpush1.xpose.msra.mxu0 0.0
    %3198 = vmatprep.subr.mxu0 0.0
    %3199 = vmatpush1.xpose.msra.mxu0 0.0
    %3200 = vmatprep.subr.mxu0 0.0
    %3201 = vmatpush1.xpose.msra.mxu0 0.0
    %3202 = vmatprep.subr.mxu0 0.0
    %3203 = vmatpush1.xpose.msra.mxu0 0.0
    %3204 = vmatprep.subr.mxu0 0.0
    %3205 = vmatpush1.xpose.msra.mxu0 0.0
    %3206 = vmatprep.mubr.f32.mxu0 0.0
    %3207 = vmatmul.mubr.f32.gmra.mrb[0].mxu0 %v3138
    %v3208 = vpop.f32.mrb[0].mxu0
    %v3209 = vadd.f32 0.0, %v3208
    %v3210 = vpop.f32.mrb[0].mxu0
    %3211 = vdwg.mxu0
    %3212 = vrot.lane.b32.xlu0 %v2303, 112
    %v3213 = vpop.permute.xlu0 %3212
    %3214 = vrot.lane.b32.xlu0 %v2303, 80
    %v3215 = vpop.permute.xlu0 %3214
    %v3216 = vsel %vm261, %v3213, 0
    %v3218 = vsel %vm261, %v3215, 0
    %3220 = vmatprep.subr.mxu0 0.0
    %3221 = vmatpush1.xpose.msra.mxu0 %v3218
    %3222 = vmatprep.subr.mxu0 0.0
    %3223 = vmatpush1.xpose.msra.mxu0 0.0
    %3224 = vmatprep.subr.mxu0 0.0
    %3225 = vmatpush1.xpose.msra.mxu0 0.0
    %3226 = vmatprep.subr.mxu0 0.0
    %3227 = vmatpush1.xpose.msra.mxu0 0.0
    %3228 = vmatprep.subr.mxu0 0.0
    %3229 = vmatpush1.xpose.msra.mxu0 0.0
    %3230 = vmatprep.subr.mxu0 0.0
    %3231 = vmatpush1.xpose.msra.mxu0 0.0
    %3232 = vmatprep.subr.mxu0 0.0
    %3233 = vmatpush1.xpose.msra.mxu0 0.0
    %3234 = vmatprep.subr.mxu0 0.0
    %3235 = vmatpush1.xpose.msra.mxu0 0.0
    %3236 = vmatprep.subr.mxu0 0.0
    %3237 = vmatpush1.xpose.msra.mxu0 0.0
    %3238 = vmatprep.subr.mxu0 0.0
    %3239 = vmatpush1.xpose.msra.mxu0 0.0
    %3240 = vmatprep.subr.mxu0 0.0
    %3241 = vmatpush1.xpose.msra.mxu0 0.0
    %3242 = vmatprep.subr.mxu0 0.0
    %3243 = vmatpush1.xpose.msra.mxu0 0.0
    %3244 = vmatprep.subr.mxu0 0.0
    %3245 = vmatpush1.xpose.msra.mxu0 0.0
    %3246 = vmatprep.subr.mxu0 0.0
    %3247 = vmatpush1.xpose.msra.mxu0 0.0
    %3248 = vmatprep.subr.mxu0 0.0
    %3249 = vmatpush1.xpose.msra.mxu0 0.0
    %3250 = vmatprep.subr.mxu0 0.0
    %3251 = vmatpush1.xpose.msra.mxu0 0.0
    %3252 = vmatprep.subr.mxu0 0.0
    %3253 = vmatpush1.xpose.msra.mxu0 0.0
    %3254 = vmatprep.subr.mxu0 0.0
    %3255 = vmatpush1.xpose.msra.mxu0 0.0
    %3256 = vmatprep.subr.mxu0 0.0
    %3257 = vmatpush1.xpose.msra.mxu0 0.0
    %3258 = vmatprep.subr.mxu0 0.0
    %3259 = vmatpush1.xpose.msra.mxu0 0.0
    %3260 = vmatprep.subr.mxu0 0.0
    %3261 = vmatpush1.xpose.msra.mxu0 0.0
    %3262 = vmatprep.subr.mxu0 0.0
    %3263 = vmatpush1.xpose.msra.mxu0 0.0
    %3264 = vmatprep.subr.mxu0 0.0
    %3265 = vmatpush1.xpose.msra.mxu0 0.0
    %3266 = vmatprep.subr.mxu0 0.0
    %3267 = vmatpush1.xpose.msra.mxu0 0.0
    %3268 = vmatprep.subr.mxu0 0.0
    %3269 = vmatpush1.xpose.msra.mxu0 0.0
    %3270 = vmatprep.subr.mxu0 0.0
    %3271 = vmatpush1.xpose.msra.mxu0 0.0
    %3272 = vmatprep.subr.mxu0 0.0
    %3273 = vmatpush1.xpose.msra.mxu0 0.0
    %3274 = vmatprep.subr.mxu0 0.0
    %3275 = vmatpush1.xpose.msra.mxu0 0.0
    %3276 = vmatprep.subr.mxu0 0.0
    %3277 = vmatpush1.xpose.msra.mxu0 0.0
    %3278 = vmatprep.subr.mxu0 0.0
    %3279 = vmatpush1.xpose.msra.mxu0 0.0
    %3280 = vmatprep.subr.mxu0 0.0
    %3281 = vmatpush1.xpose.msra.mxu0 0.0
    %3282 = vmatprep.subr.mxu0 0.0
    %3283 = vmatpush1.xpose.msra.mxu0 0.0
    %3284 = vmatprep.mubr.f32.mxu0 0.0
    %3285 = vmatmul.mubr.f32.gmra.mrb[0].mxu0 %v3216
    %v3286 = vpop.f32.mrb[0].mxu0
    %v3287 = vadd.f32 0.0, %v3286
    %v3288 = vpop.f32.mrb[0].mxu0
    %3289 = vdwg.mxu0
    %v3290 = vmul.f32 %v3209, 0.35355338
    %v3291 = vmul.f32 %v3287, 0.35355338
    %v3292 = vsel %vm261, %v3290, -inf
    %3293 = vmax.xlane.f32.xlu0 %v3292
    %v3294 = vpop.xlane.xlu0 %3293
    %v3295 = vsel %vm261, %v3291, -inf
    %3296 = vmax.xlane.f32.xlu0 %v3295
    %v3297 = vpop.xlane.xlu0 %3296
    %v3298 = vsub.f32 %v3290, %v3294
    %v3299 = vsub.f32 %v3291, %v3297
    %v3300 = vmul.f32 %v3298, 1.442695
    %v3301 = vpow.pop %v3300
    %v3302 = vmul.f32 %v3299, 1.442695
    %v3303 = vpow.pop %v3302
    %v3304 = vsel %vm261, %v3301, 0.0
    %3305 = vadd.xlane.f32.xlu0 %v3304
    %v3306 = vpop.xlane.xlu0 %3305
    %v3307 = vsel %vm261, %v3303, 0.0
    %3308 = vadd.xlane.f32.xlu0 %v3307
    %v3309 = vpop.xlane.xlu0 %3308
    %v3310 = vrcp.pop %v3306
    %v3311 = vrcp.pop %v3309
    %v3312 = vmul.f32 %v3301, %v3310
    %v3313 = vmul.f32 %v3303, %v3311
    %3314 = vrot.lane.b32.xlu0 %v2298, 48
    %v3315 = vpop.permute.xlu0 %3314
    %v3318 = vsel %vm261, %v3312, 0
    %3320 = vmatprep.subr.mxu0 0.0
    %3321 = vmatpush1.msra.mxu0 %v3315
    %3322 = vmatprep.subr.mxu0 0.0
    %3323 = vmatpush1.msra.mxu0 0.0
    %3324 = vmatprep.subr.mxu0 0.0
    %3325 = vmatpush1.msra.mxu0 0.0
    %3326 = vmatprep.subr.mxu0 0.0
    %3327 = vmatpush1.msra.mxu0 0.0
    %3328 = vmatprep.subr.mxu0 0.0
    %3329 = vmatpush1.msra.mxu0 0.0
    %3330 = vmatprep.subr.mxu0 0.0
    %3331 = vmatpush1.msra.mxu0 0.0
    %3332 = vmatprep.subr.mxu0 0.0
    %3333 = vmatpush1.msra.mxu0 0.0
    %3334 = vmatprep.subr.mxu0 0.0
    %3335 = vmatpush1.msra.mxu0 0.0
    %3336 = vmatprep.subr.mxu0 0.0
    %3337 = vmatpush1.msra.mxu0 0.0
    %3338 = vmatprep.subr.mxu0 0.0
    %3339 = vmatpush1.msra.mxu0 0.0
    %3340 = vmatprep.subr.mxu0 0.0
    %3341 = vmatpush1.msra.mxu0 0.0
    %3342 = vmatprep.subr.mxu0 0.0
    %3343 = vmatpush1.msra.mxu0 0.0
    %3344 = vmatprep.subr.mxu0 0.0
    %3345 = vmatpush1.msra.mxu0 0.0
    %3346 = vmatprep.subr.mxu0 0.0
    %3347 = vmatpush1.msra.mxu0 0.0
    %3348 = vmatprep.subr.mxu0 0.0
    %3349 = vmatpush1.msra.mxu0 0.0
    %3350 = vmatprep.subr.mxu0 0.0
    %3351 = vmatpush1.msra.mxu0 0.0
    %3352 = vmatprep.subr.mxu0 0.0
    %3353 = vmatpush1.msra.mxu0 0.0
    %3354 = vmatprep.subr.mxu0 0.0
    %3355 = vmatpush1.msra.mxu0 0.0
    %3356 = vmatprep.subr.mxu0 0.0
    %3357 = vmatpush1.msra.mxu0 0.0
    %3358 = vmatprep.subr.mxu0 0.0
    %3359 = vmatpush1.msra.mxu0 0.0
    %3360 = vmatprep.subr.mxu0 0.0
    %3361 = vmatpush1.msra.mxu0 0.0
    %3362 = vmatprep.subr.mxu0 0.0
    %3363 = vmatpush1.msra.mxu0 0.0
    %3364 = vmatprep.subr.mxu0 0.0
    %3365 = vmatpush1.msra.mxu0 0.0
    %3366 = vmatprep.subr.mxu0 0.0
    %3367 = vmatpush1.msra.mxu0 0.0
    %3368 = vmatprep.subr.mxu0 0.0
    %3369 = vmatpush1.msra.mxu0 0.0
    %3370 = vmatprep.subr.mxu0 0.0
    %3371 = vmatpush1.msra.mxu0 0.0
    %3372 = vmatprep.subr.mxu0 0.0
    %3373 = vmatpush1.msra.mxu0 0.0
    %3374 = vmatprep.subr.mxu0 0.0
    %3375 = vmatpush1.msra.mxu0 0.0
    %3376 = vmatprep.subr.mxu0 0.0
    %3377 = vmatpush1.msra.mxu0 0.0
    %3378 = vmatprep.subr.mxu0 0.0
    %3379 = vmatpush1.msra.mxu0 0.0
    %3380 = vmatprep.subr.mxu0 0.0
    %3381 = vmatpush1.msra.mxu0 0.0
    %3382 = vmatprep.subr.mxu0 0.0
    %3383 = vmatpush1.msra.mxu0 0.0
    %3384 = vmatprep.mubr.f32.mxu0 0.0
    %3385 = vmatmul.mubr.f32.gmra.mrb[0].mxu0 %v3318
    %v3386 = vpop.f32.mrb[0].mxu0
    %v3387 = vadd.f32 0.0, %v3386
    %v3388 = vpop.f32.mrb[0].mxu0
    %3389 = vdwg.mxu0
    %3390 = vrot.lane.b32.xlu0 %v2303, 48
    %v3391 = vpop.permute.xlu0 %3390
    %v3394 = vsel %vm261, %v3313, 0
    %3396 = vmatprep.subr.mxu0 0.0
    %3397 = vmatpush1.msra.mxu0 %v3391
    %3398 = vmatprep.subr.mxu0 0.0
    %3399 = vmatpush1.msra.mxu0 0.0
    %3400 = vmatprep.subr.mxu0 0.0
    %3401 = vmatpush1.msra.mxu0 0.0
    %3402 = vmatprep.subr.mxu0 0.0
    %3403 = vmatpush1.msra.mxu0 0.0
    %3404 = vmatprep.subr.mxu0 0.0
    %3405 = vmatpush1.msra.mxu0 0.0
    %3406 = vmatprep.subr.mxu0 0.0
    %3407 = vmatpush1.msra.mxu0 0.0
    %3408 = vmatprep.subr.mxu0 0.0
    %3409 = vmatpush1.msra.mxu0 0.0
    %3410 = vmatprep.subr.mxu0 0.0
    %3411 = vmatpush1.msra.mxu0 0.0
    %3412 = vmatprep.subr.mxu0 0.0
    %3413 = vmatpush1.msra.mxu0 0.0
    %3414 = vmatprep.subr.mxu0 0.0
    %3415 = vmatpush1.msra.mxu0 0.0
    %3416 = vmatprep.subr.mxu0 0.0
    %3417 = vmatpush1.msra.mxu0 0.0
    %3418 = vmatprep.subr.mxu0 0.0
    %3419 = vmatpush1.msra.mxu0 0.0
    %3420 = vmatprep.subr.mxu0 0.0
    %3421 = vmatpush1.msra.mxu0 0.0
    %3422 = vmatprep.subr.mxu0 0.0
    %3423 = vmatpush1.msra.mxu0 0.0
    %3424 = vmatprep.subr.mxu0 0.0
    %3425 = vmatpush1.msra.mxu0 0.0
    %3426 = vmatprep.subr.mxu0 0.0
    %3427 = vmatpush1.msra.mxu0 0.0
    %3428 = vmatprep.subr.mxu0 0.0
    %3429 = vmatpush1.msra.mxu0 0.0
    %3430 = vmatprep.subr.mxu0 0.0
    %3431 = vmatpush1.msra.mxu0 0.0
    %3432 = vmatprep.subr.mxu0 0.0
    %3433 = vmatpush1.msra.mxu0 0.0
    %3434 = vmatprep.subr.mxu0 0.0
    %3435 = vmatpush1.msra.mxu0 0.0
    %3436 = vmatprep.subr.mxu0 0.0
    %3437 = vmatpush1.msra.mxu0 0.0
    %3438 = vmatprep.subr.mxu0 0.0
    %3439 = vmatpush1.msra.mxu0 0.0
    %3440 = vmatprep.subr.mxu0 0.0
    %3441 = vmatpush1.msra.mxu0 0.0
    %3442 = vmatprep.subr.mxu0 0.0
    %3443 = vmatpush1.msra.mxu0 0.0
    %3444 = vmatprep.subr.mxu0 0.0
    %3445 = vmatpush1.msra.mxu0 0.0
    %3446 = vmatprep.subr.mxu0 0.0
    %3447 = vmatpush1.msra.mxu0 0.0
    %3448 = vmatprep.subr.mxu0 0.0
    %3449 = vmatpush1.msra.mxu0 0.0
    %3450 = vmatprep.subr.mxu0 0.0
    %3451 = vmatpush1.msra.mxu0 0.0
    %3452 = vmatprep.subr.mxu0 0.0
    %3453 = vmatpush1.msra.mxu0 0.0
    %3454 = vmatprep.subr.mxu0 0.0
    %3455 = vmatpush1.msra.mxu0 0.0
    %3456 = vmatprep.subr.mxu0 0.0
    %3457 = vmatpush1.msra.mxu0 0.0
    %3458 = vmatprep.subr.mxu0 0.0
    %3459 = vmatpush1.msra.mxu0 0.0
    %3460 = vmatprep.mubr.f32.mxu0 0.0
    %3461 = vmatmul.mubr.f32.gmra.mrb[0].mxu0 %v3394
    %v3462 = vpop.f32.mrb[0].mxu0
    %v3463 = vadd.f32 0.0, %v3462
    %v3464 = vpop.f32.mrb[0].mxu0
    %3465 = vdwg.mxu0
    %s3466 = scalar_lea.vmem %s5, 48
    %v3467 = vld [vmem:[%s3466] sm:$0xff]
    %v3469 = vsel %vm261, %v3387, 0
    %v3472 = vsel %vm261, %v3463, 0
    %3474 = vmatprep.subr.mxu0 0.0
    %3475 = vmatpush1.msra.mxu0 %v3467
    %3476 = vmatprep.subr.mxu0 0.0
    %3477 = vmatpush1.msra.mxu0 0.0
    %3478 = vmatprep.subr.mxu0 0.0
    %3479 = vmatpush1.msra.mxu0 0.0
    %3480 = vmatprep.subr.mxu0 0.0
    %3481 = vmatpush1.msra.mxu0 0.0
    %3482 = vmatprep.subr.mxu0 0.0
    %3483 = vmatpush1.msra.mxu0 0.0
    %3484 = vmatprep.subr.mxu0 0.0
    %3485 = vmatpush1.msra.mxu0 0.0
    %3486 = vmatprep.subr.mxu0 0.0
    %3487 = vmatpush1.msra.mxu0 0.0
    %3488 = vmatprep.subr.mxu0 0.0
    %3489 = vmatpush1.msra.mxu0 0.0
    %3490 = vmatprep.subr.mxu0 0.0
    %3491 = vmatpush1.msra.mxu0 0.0
    %3492 = vmatprep.subr.mxu0 0.0
    %3493 = vmatpush1.msra.mxu0 0.0
    %3494 = vmatprep.subr.mxu0 0.0
    %3495 = vmatpush1.msra.mxu0 0.0
    %3496 = vmatprep.subr.mxu0 0.0
    %3497 = vmatpush1.msra.mxu0 0.0
    %3498 = vmatprep.subr.mxu0 0.0
    %3499 = vmatpush1.msra.mxu0 0.0
    %3500 = vmatprep.subr.mxu0 0.0
    %3501 = vmatpush1.msra.mxu0 0.0
    %3502 = vmatprep.subr.mxu0 0.0
    %3503 = vmatpush1.msra.mxu0 0.0
    %3504 = vmatprep.subr.mxu0 0.0
    %3505 = vmatpush1.msra.mxu0 0.0
    %3506 = vmatprep.subr.mxu0 0.0
    %3507 = vmatpush1.msra.mxu0 0.0
    %3508 = vmatprep.subr.mxu0 0.0
    %3509 = vmatpush1.msra.mxu0 0.0
    %3510 = vmatprep.subr.mxu0 0.0
    %3511 = vmatpush1.msra.mxu0 0.0
    %3512 = vmatprep.subr.mxu0 0.0
    %3513 = vmatpush1.msra.mxu0 0.0
    %3514 = vmatprep.subr.mxu0 0.0
    %3515 = vmatpush1.msra.mxu0 0.0
    %3516 = vmatprep.subr.mxu0 0.0
    %3517 = vmatpush1.msra.mxu0 0.0
    %3518 = vmatprep.subr.mxu0 0.0
    %3519 = vmatpush1.msra.mxu0 0.0
    %3520 = vmatprep.subr.mxu0 0.0
    %3521 = vmatpush1.msra.mxu0 0.0
    %3522 = vmatprep.subr.mxu0 0.0
    %3523 = vmatpush1.msra.mxu0 0.0
    %3524 = vmatprep.subr.mxu0 0.0
    %3525 = vmatpush1.msra.mxu0 0.0
    %3526 = vmatprep.subr.mxu0 0.0
    %3527 = vmatpush1.msra.mxu0 0.0
    %3528 = vmatprep.subr.mxu0 0.0
    %3529 = vmatpush1.msra.mxu0 0.0
    %3530 = vmatprep.subr.mxu0 0.0
    %3531 = vmatpush1.msra.mxu0 0.0
    %3532 = vmatprep.subr.mxu0 0.0
    %3533 = vmatpush1.msra.mxu0 0.0
    %3534 = vmatprep.subr.mxu0 0.0
    %3535 = vmatpush1.msra.mxu0 0.0
    %3536 = vmatprep.subr.mxu0 0.0
    %3537 = vmatpush1.msra.mxu0 0.0
    %3538 = vmatprep.mubr.f32.mxu0 0.0
    %3539 = vmatmul.mubr.f32.gmra.mrb[0].mxu0 %v3469
    %v3540 = vpop.f32.mrb[0].mxu0
    %v3541 = vadd.f32 0.0, %v3540
    %v3542 = vpop.f32.mrb[0].mxu0
    %3543 = vmatprep.mubr.f32.mxu0 0.0
    %3544 = vmatmul.mubr.f32.gmra.mrb[0].mxu0 %v3472
    %v3545 = vpop.f32.mrb[0].mxu0
    %v3546 = vadd.f32 0.0, %v3545
    %v3547 = vpop.f32.mrb[0].mxu0
    %3548 = vdwg.mxu0
    %v3549 = vadd.f32 %v3126, %v3541
    %v3550 = vadd.f32 %v3131, %v3546
    %3551 = vrot.lane.b32.xlu0 %v2298, 104
    %v3552 = vpop.permute.xlu0 %3551
    %3553 = vrot.lane.b32.xlu0 %v2298, 72
    %v3554 = vpop.permute.xlu0 %3553
    %v3555 = vsel %vm261, %v3552, 0
    %v3557 = vsel %vm261, %v3554, 0
    %3559 = vmatprep.subr.mxu0 0.0
    %3560 = vmatpush1.xpose.msra.mxu0 %v3557
    %3561 = vmatprep.subr.mxu0 0.0
    %3562 = vmatpush1.xpose.msra.mxu0 0.0
    %3563 = vmatprep.subr.mxu0 0.0
    %3564 = vmatpush1.xpose.msra.mxu0 0.0
    %3565 = vmatprep.subr.mxu0 0.0
    %3566 = vmatpush1.xpose.msra.mxu0 0.0
    %3567 = vmatprep.subr.mxu0 0.0
    %3568 = vmatpush1.xpose.msra.mxu0 0.0
    %3569 = vmatprep.subr.mxu0 0.0
    %3570 = vmatpush1.xpose.msra.mxu0 0.0
    %3571 = vmatprep.subr.mxu0 0.0
    %3572 = vmatpush1.xpose.msra.mxu0 0.0
    %3573 = vmatprep.subr.mxu0 0.0
    %3574 = vmatpush1.xpose.msra.mxu0 0.0
    %3575 = vmatprep.subr.mxu0 0.0
    %3576 = vmatpush1.xpose.msra.mxu0 0.0
    %3577 = vmatprep.subr.mxu0 0.0
    %3578 = vmatpush1.xpose.msra.mxu0 0.0
    %3579 = vmatprep.subr.mxu0 0.0
    %3580 = vmatpush1.xpose.msra.mxu0 0.0
    %3581 = vmatprep.subr.mxu0 0.0
    %3582 = vmatpush1.xpose.msra.mxu0 0.0
    %3583 = vmatprep.subr.mxu0 0.0
    %3584 = vmatpush1.xpose.msra.mxu0 0.0
    %3585 = vmatprep.subr.mxu0 0.0
    %3586 = vmatpush1.xpose.msra.mxu0 0.0
    %3587 = vmatprep.subr.mxu0 0.0
    %3588 = vmatpush1.xpose.msra.mxu0 0.0
    %3589 = vmatprep.subr.mxu0 0.0
    %3590 = vmatpush1.xpose.msra.mxu0 0.0
    %3591 = vmatprep.subr.mxu0 0.0
    %3592 = vmatpush1.xpose.msra.mxu0 0.0
    %3593 = vmatprep.subr.mxu0 0.0
    %3594 = vmatpush1.xpose.msra.mxu0 0.0
    %3595 = vmatprep.subr.mxu0 0.0
    %3596 = vmatpush1.xpose.msra.mxu0 0.0
    %3597 = vmatprep.subr.mxu0 0.0
    %3598 = vmatpush1.xpose.msra.mxu0 0.0
    %3599 = vmatprep.subr.mxu0 0.0
    %3600 = vmatpush1.xpose.msra.mxu0 0.0
    %3601 = vmatprep.subr.mxu0 0.0
    %3602 = vmatpush1.xpose.msra.mxu0 0.0
    %3603 = vmatprep.subr.mxu0 0.0
    %3604 = vmatpush1.xpose.msra.mxu0 0.0
    %3605 = vmatprep.subr.mxu0 0.0
    %3606 = vmatpush1.xpose.msra.mxu0 0.0
    %3607 = vmatprep.subr.mxu0 0.0
    %3608 = vmatpush1.xpose.msra.mxu0 0.0
    %3609 = vmatprep.subr.mxu0 0.0
    %3610 = vmatpush1.xpose.msra.mxu0 0.0
    %3611 = vmatprep.subr.mxu0 0.0
    %3612 = vmatpush1.xpose.msra.mxu0 0.0
    %3613 = vmatprep.subr.mxu0 0.0
    %3614 = vmatpush1.xpose.msra.mxu0 0.0
    %3615 = vmatprep.subr.mxu0 0.0
    %3616 = vmatpush1.xpose.msra.mxu0 0.0
    %3617 = vmatprep.subr.mxu0 0.0
    %3618 = vmatpush1.xpose.msra.mxu0 0.0
    %3619 = vmatprep.subr.mxu0 0.0
    %3620 = vmatpush1.xpose.msra.mxu0 0.0
    %3621 = vmatprep.subr.mxu0 0.0
    %3622 = vmatpush1.xpose.msra.mxu0 0.0
    %3623 = vmatprep.mubr.f32.mxu0 0.0
    %3624 = vmatmul.mubr.f32.gmra.mrb[0].mxu0 %v3555
    %v3625 = vpop.f32.mrb[0].mxu0
    %v3626 = vadd.f32 0.0, %v3625
    %v3627 = vpop.f32.mrb[0].mxu0
    %3628 = vdwg.mxu0
    %3629 = vrot.lane.b32.xlu0 %v2303, 104
    %v3630 = vpop.permute.xlu0 %3629
    %3631 = vrot.lane.b32.xlu0 %v2303, 72
    %v3632 = vpop.permute.xlu0 %3631
    %v3633 = vsel %vm261, %v3630, 0
    %v3635 = vsel %vm261, %v3632, 0
    %3637 = vmatprep.subr.mxu0 0.0
    %3638 = vmatpush1.xpose.msra.mxu0 %v3635
    %3639 = vmatprep.subr.mxu0 0.0
    %3640 = vmatpush1.xpose.msra.mxu0 0.0
    %3641 = vmatprep.subr.mxu0 0.0
    %3642 = vmatpush1.xpose.msra.mxu0 0.0
    %3643 = vmatprep.subr.mxu0 0.0
    %3644 = vmatpush1.xpose.msra.mxu0 0.0
    %3645 = vmatprep.subr.mxu0 0.0
    %3646 = vmatpush1.xpose.msra.mxu0 0.0
    %3647 = vmatprep.subr.mxu0 0.0
    %3648 = vmatpush1.xpose.msra.mxu0 0.0
    %3649 = vmatprep.subr.mxu0 0.0
    %3650 = vmatpush1.xpose.msra.mxu0 0.0
    %3651 = vmatprep.subr.mxu0 0.0
    %3652 = vmatpush1.xpose.msra.mxu0 0.0
    %3653 = vmatprep.subr.mxu0 0.0
    %3654 = vmatpush1.xpose.msra.mxu0 0.0
    %3655 = vmatprep.subr.mxu0 0.0
    %3656 = vmatpush1.xpose.msra.mxu0 0.0
    %3657 = vmatprep.subr.mxu0 0.0
    %3658 = vmatpush1.xpose.msra.mxu0 0.0
    %3659 = vmatprep.subr.mxu0 0.0
    %3660 = vmatpush1.xpose.msra.mxu0 0.0
    %3661 = vmatprep.subr.mxu0 0.0
    %3662 = vmatpush1.xpose.msra.mxu0 0.0
    %3663 = vmatprep.subr.mxu0 0.0
    %3664 = vmatpush1.xpose.msra.mxu0 0.0
    %3665 = vmatprep.subr.mxu0 0.0
    %3666 = vmatpush1.xpose.msra.mxu0 0.0
    %3667 = vmatprep.subr.mxu0 0.0
    %3668 = vmatpush1.xpose.msra.mxu0 0.0
    %3669 = vmatprep.subr.mxu0 0.0
    %3670 = vmatpush1.xpose.msra.mxu0 0.0
    %3671 = vmatprep.subr.mxu0 0.0
    %3672 = vmatpush1.xpose.msra.mxu0 0.0
    %3673 = vmatprep.subr.mxu0 0.0
    %3674 = vmatpush1.xpose.msra.mxu0 0.0
    %3675 = vmatprep.subr.mxu0 0.0
    %3676 = vmatpush1.xpose.msra.mxu0 0.0
    %3677 = vmatprep.subr.mxu0 0.0
    %3678 = vmatpush1.xpose.msra.mxu0 0.0
    %3679 = vmatprep.subr.mxu0 0.0
    %3680 = vmatpush1.xpose.msra.mxu0 0.0
    %3681 = vmatprep.subr.mxu0 0.0
    %3682 = vmatpush1.xpose.msra.mxu0 0.0
    %3683 = vmatprep.subr.mxu0 0.0
    %3684 = vmatpush1.xpose.msra.mxu0 0.0
    %3685 = vmatprep.subr.mxu0 0.0
    %3686 = vmatpush1.xpose.msra.mxu0 0.0
    %3687 = vmatprep.subr.mxu0 0.0
    %3688 = vmatpush1.xpose.msra.mxu0 0.0
    %3689 = vmatprep.subr.mxu0 0.0
    %3690 = vmatpush1.xpose.msra.mxu0 0.0
    %3691 = vmatprep.subr.mxu0 0.0
    %3692 = vmatpush1.xpose.msra.mxu0 0.0
    %3693 = vmatprep.subr.mxu0 0.0
    %3694 = vmatpush1.xpose.msra.mxu0 0.0
    %3695 = vmatprep.subr.mxu0 0.0
    %3696 = vmatpush1.xpose.msra.mxu0 0.0
    %3697 = vmatprep.subr.mxu0 0.0
    %3698 = vmatpush1.xpose.msra.mxu0 0.0
    %3699 = vmatprep.subr.mxu0 0.0
    %3700 = vmatpush1.xpose.msra.mxu0 0.0
    %3701 = vmatprep.mubr.f32.mxu0 0.0
    %3702 = vmatmul.mubr.f32.gmra.mrb[0].mxu0 %v3633
    %v3703 = vpop.f32.mrb[0].mxu0
    %v3704 = vadd.f32 0.0, %v3703
    %v3705 = vpop.f32.mrb[0].mxu0
    %3706 = vdwg.mxu0
    %v3707 = vmul.f32 %v3626, 0.35355338
    %v3708 = vmul.f32 %v3704, 0.35355338
    %v3709 = vsel %vm261, %v3707, -inf
    %3710 = vmax.xlane.f32.xlu0 %v3709
    %v3711 = vpop.xlane.xlu0 %3710
    %v3712 = vsel %vm261, %v3708, -inf
    %3713 = vmax.xlane.f32.xlu0 %v3712
    %v3714 = vpop.xlane.xlu0 %3713
    %v3715 = vsub.f32 %v3707, %v3711
    %v3716 = vsub.f32 %v3708, %v3714
    %v3717 = vmul.f32 %v3715, 1.442695
    %v3718 = vpow.pop %v3717
    %v3719 = vmul.f32 %v3716, 1.442695
    %v3720 = vpow.pop %v3719
    %v3721 = vsel %vm261, %v3718, 0.0
    %3722 = vadd.xlane.f32.xlu0 %v3721
    %v3723 = vpop.xlane.xlu0 %3722
    %v3724 = vsel %vm261, %v3720, 0.0
    %3725 = vadd.xlane.f32.xlu0 %v3724
    %v3726 = vpop.xlane.xlu0 %3725
    %v3727 = vrcp.pop %v3723
    %v3728 = vrcp.pop %v3726
    %v3729 = vmul.f32 %v3718, %v3727
    %v3730 = vmul.f32 %v3720, %v3728
    %3731 = vrot.lane.b32.xlu0 %v2298, 40
    %v3732 = vpop.permute.xlu0 %3731
    %v3735 = vsel %vm261, %v3729, 0
    %3737 = vmatprep.subr.mxu0 0.0
    %3738 = vmatpush1.msra.mxu0 %v3732
    %3739 = vmatprep.subr.mxu0 0.0
    %3740 = vmatpush1.msra.mxu0 0.0
    %3741 = vmatprep.subr.mxu0 0.0
    %3742 = vmatpush1.msra.mxu0 0.0
    %3743 = vmatprep.subr.mxu0 0.0
    %3744 = vmatpush1.msra.mxu0 0.0
    %3745 = vmatprep.subr.mxu0 0.0
    %3746 = vmatpush1.msra.mxu0 0.0
    %3747 = vmatprep.subr.mxu0 0.0
    %3748 = vmatpush1.msra.mxu0 0.0
    %3749 = vmatprep.subr.mxu0 0.0
    %3750 = vmatpush1.msra.mxu0 0.0
    %3751 = vmatprep.subr.mxu0 0.0
    %3752 = vmatpush1.msra.mxu0 0.0
    %3753 = vmatprep.subr.mxu0 0.0
    %3754 = vmatpush1.msra.mxu0 0.0
    %3755 = vmatprep.subr.mxu0 0.0
    %3756 = vmatpush1.msra.mxu0 0.0
    %3757 = vmatprep.subr.mxu0 0.0
    %3758 = vmatpush1.msra.mxu0 0.0
    %3759 = vmatprep.subr.mxu0 0.0
    %3760 = vmatpush1.msra.mxu0 0.0
    %3761 = vmatprep.subr.mxu0 0.0
    %3762 = vmatpush1.msra.mxu0 0.0
    %3763 = vmatprep.subr.mxu0 0.0
    %3764 = vmatpush1.msra.mxu0 0.0
    %3765 = vmatprep.subr.mxu0 0.0
    %3766 = vmatpush1.msra.mxu0 0.0
    %3767 = vmatprep.subr.mxu0 0.0
    %3768 = vmatpush1.msra.mxu0 0.0
    %3769 = vmatprep.subr.mxu0 0.0
    %3770 = vmatpush1.msra.mxu0 0.0
    %3771 = vmatprep.subr.mxu0 0.0
    %3772 = vmatpush1.msra.mxu0 0.0
    %3773 = vmatprep.subr.mxu0 0.0
    %3774 = vmatpush1.msra.mxu0 0.0
    %3775 = vmatprep.subr.mxu0 0.0
    %3776 = vmatpush1.msra.mxu0 0.0
    %3777 = vmatprep.subr.mxu0 0.0
    %3778 = vmatpush1.msra.mxu0 0.0
    %3779 = vmatprep.subr.mxu0 0.0
    %3780 = vmatpush1.msra.mxu0 0.0
    %3781 = vmatprep.subr.mxu0 0.0
    %3782 = vmatpush1.msra.mxu0 0.0
    %3783 = vmatprep.subr.mxu0 0.0
    %3784 = vmatpush1.msra.mxu0 0.0
    %3785 = vmatprep.subr.mxu0 0.0
    %3786 = vmatpush1.msra.mxu0 0.0
    %3787 = vmatprep.subr.mxu0 0.0
    %3788 = vmatpush1.msra.mxu0 0.0
    %3789 = vmatprep.subr.mxu0 0.0
    %3790 = vmatpush1.msra.mxu0 0.0
    %3791 = vmatprep.subr.mxu0 0.0
    %3792 = vmatpush1.msra.mxu0 0.0
    %3793 = vmatprep.subr.mxu0 0.0
    %3794 = vmatpush1.msra.mxu0 0.0
    %3795 = vmatprep.subr.mxu0 0.0
    %3796 = vmatpush1.msra.mxu0 0.0
    %3797 = vmatprep.subr.mxu0 0.0
    %3798 = vmatpush1.msra.mxu0 0.0
    %3799 = vmatprep.subr.mxu0 0.0
    %3800 = vmatpush1.msra.mxu0 0.0
    %3801 = vmatprep.mubr.f32.mxu0 0.0
    %3802 = vmatmul.mubr.f32.gmra.mrb[0].mxu0 %v3735
    %v3803 = vpop.f32.mrb[0].mxu0
    %v3804 = vadd.f32 0.0, %v3803
    %v3805 = vpop.f32.mrb[0].mxu0
    %3806 = vdwg.mxu0
    %3807 = vrot.lane.b32.xlu0 %v2303, 40
    %v3808 = vpop.permute.xlu0 %3807
    %v3811 = vsel %vm261, %v3730, 0
    %3813 = vmatprep.subr.mxu0 0.0
    %3814 = vmatpush1.msra.mxu0 %v3808
    %3815 = vmatprep.subr.mxu0 0.0
    %3816 = vmatpush1.msra.mxu0 0.0
    %3817 = vmatprep.subr.mxu0 0.0
    %3818 = vmatpush1.msra.mxu0 0.0
    %3819 = vmatprep.subr.mxu0 0.0
    %3820 = vmatpush1.msra.mxu0 0.0
    %3821 = vmatprep.subr.mxu0 0.0
    %3822 = vmatpush1.msra.mxu0 0.0
    %3823 = vmatprep.subr.mxu0 0.0
    %3824 = vmatpush1.msra.mxu0 0.0
    %3825 = vmatprep.subr.mxu0 0.0
    %3826 = vmatpush1.msra.mxu0 0.0
    %3827 = vmatprep.subr.mxu0 0.0
    %3828 = vmatpush1.msra.mxu0 0.0
    %3829 = vmatprep.subr.mxu0 0.0
    %3830 = vmatpush1.msra.mxu0 0.0
    %3831 = vmatprep.subr.mxu0 0.0
    %3832 = vmatpush1.msra.mxu0 0.0
    %3833 = vmatprep.subr.mxu0 0.0
    %3834 = vmatpush1.msra.mxu0 0.0
    %3835 = vmatprep.subr.mxu0 0.0
    %3836 = vmatpush1.msra.mxu0 0.0
    %3837 = vmatprep.subr.mxu0 0.0
    %3838 = vmatpush1.msra.mxu0 0.0
    %3839 = vmatprep.subr.mxu0 0.0
    %3840 = vmatpush1.msra.mxu0 0.0
    %3841 = vmatprep.subr.mxu0 0.0
    %3842 = vmatpush1.msra.mxu0 0.0
    %3843 = vmatprep.subr.mxu0 0.0
    %3844 = vmatpush1.msra.mxu0 0.0
    %3845 = vmatprep.subr.mxu0 0.0
    %3846 = vmatpush1.msra.mxu0 0.0
    %3847 = vmatprep.subr.mxu0 0.0
    %3848 = vmatpush1.msra.mxu0 0.0
    %3849 = vmatprep.subr.mxu0 0.0
    %3850 = vmatpush1.msra.mxu0 0.0
    %3851 = vmatprep.subr.mxu0 0.0
    %3852 = vmatpush1.msra.mxu0 0.0
    %3853 = vmatprep.subr.mxu0 0.0
    %3854 = vmatpush1.msra.mxu0 0.0
    %3855 = vmatprep.subr.mxu0 0.0
    %3856 = vmatpush1.msra.mxu0 0.0
    %3857 = vmatprep.subr.mxu0 0.0
    %3858 = vmatpush1.msra.mxu0 0.0
    %3859 = vmatprep.subr.mxu0 0.0
    %3860 = vmatpush1.msra.mxu0 0.0
    %3861 = vmatprep.subr.mxu0 0.0
    %3862 = vmatpush1.msra.mxu0 0.0
    %3863 = vmatprep.subr.mxu0 0.0
    %3864 = vmatpush1.msra.mxu0 0.0
    %3865 = vmatprep.subr.mxu0 0.0
    %3866 = vmatpush1.msra.mxu0 0.0
    %3867 = vmatprep.subr.mxu0 0.0
    %3868 = vmatpush1.msra.mxu0 0.0
    %3869 = vmatprep.subr.mxu0 0.0
    %3870 = vmatpush1.msra.mxu0 0.0
    %3871 = vmatprep.subr.mxu0 0.0
    %3872 = vmatpush1.msra.mxu0 0.0
    %3873 = vmatprep.subr.mxu0 0.0
    %3874 = vmatpush1.msra.mxu0 0.0
    %3875 = vmatprep.subr.mxu0 0.0
    %3876 = vmatpush1.msra.mxu0 0.0
    %3877 = vmatprep.mubr.f32.mxu0 0.0
    %3878 = vmatmul.mubr.f32.gmra.mrb[0].mxu0 %v3811
    %v3879 = vpop.f32.mrb[0].mxu0
    %v3880 = vadd.f32 0.0, %v3879
    %v3881 = vpop.f32.mrb[0].mxu0
    %3882 = vdwg.mxu0
    %s3883 = scalar_lea.vmem %s5, 56
    %v3884 = vld [vmem:[%s3883] sm:$0xff]
    %v3886 = vsel %vm261, %v3804, 0
    %v3889 = vsel %vm261, %v3880, 0
    %3891 = vmatprep.subr.mxu0 0.0
    %3892 = vmatpush1.msra.mxu0 %v3884
    %3893 = vmatprep.subr.mxu0 0.0
    %3894 = vmatpush1.msra.mxu0 0.0
    %3895 = vmatprep.subr.mxu0 0.0
    %3896 = vmatpush1.msra.mxu0 0.0
    %3897 = vmatprep.subr.mxu0 0.0
    %3898 = vmatpush1.msra.mxu0 0.0
    %3899 = vmatprep.subr.mxu0 0.0
    %3900 = vmatpush1.msra.mxu0 0.0
    %3901 = vmatprep.subr.mxu0 0.0
    %3902 = vmatpush1.msra.mxu0 0.0
    %3903 = vmatprep.subr.mxu0 0.0
    %3904 = vmatpush1.msra.mxu0 0.0
    %3905 = vmatprep.subr.mxu0 0.0
    %3906 = vmatpush1.msra.mxu0 0.0
    %3907 = vmatprep.subr.mxu0 0.0
    %3908 = vmatpush1.msra.mxu0 0.0
    %3909 = vmatprep.subr.mxu0 0.0
    %3910 = vmatpush1.msra.mxu0 0.0
    %3911 = vmatprep.subr.mxu0 0.0
    %3912 = vmatpush1.msra.mxu0 0.0
    %3913 = vmatprep.subr.mxu0 0.0
    %3914 = vmatpush1.msra.mxu0 0.0
    %3915 = vmatprep.subr.mxu0 0.0
    %3916 = vmatpush1.msra.mxu0 0.0
    %3917 = vmatprep.subr.mxu0 0.0
    %3918 = vmatpush1.msra.mxu0 0.0
    %3919 = vmatprep.subr.mxu0 0.0
    %3920 = vmatpush1.msra.mxu0 0.0
    %3921 = vmatprep.subr.mxu0 0.0
    %3922 = vmatpush1.msra.mxu0 0.0
    %3923 = vmatprep.subr.mxu0 0.0
    %3924 = vmatpush1.msra.mxu0 0.0
    %3925 = vmatprep.subr.mxu0 0.0
    %3926 = vmatpush1.msra.mxu0 0.0
    %3927 = vmatprep.subr.mxu0 0.0
    %3928 = vmatpush1.msra.mxu0 0.0
    %3929 = vmatprep.subr.mxu0 0.0
    %3930 = vmatpush1.msra.mxu0 0.0
    %3931 = vmatprep.subr.mxu0 0.0
    %3932 = vmatpush1.msra.mxu0 0.0
    %3933 = vmatprep.subr.mxu0 0.0
    %3934 = vmatpush1.msra.mxu0 0.0
    %3935 = vmatprep.subr.mxu0 0.0
    %3936 = vmatpush1.msra.mxu0 0.0
    %3937 = vmatprep.subr.mxu0 0.0
    %3938 = vmatpush1.msra.mxu0 0.0
    %3939 = vmatprep.subr.mxu0 0.0
    %3940 = vmatpush1.msra.mxu0 0.0
    %3941 = vmatprep.subr.mxu0 0.0
    %3942 = vmatpush1.msra.mxu0 0.0
    %3943 = vmatprep.subr.mxu0 0.0
    %3944 = vmatpush1.msra.mxu0 0.0
    %3945 = vmatprep.subr.mxu0 0.0
    %3946 = vmatpush1.msra.mxu0 0.0
    %3947 = vmatprep.subr.mxu0 0.0
    %3948 = vmatpush1.msra.mxu0 0.0
    %3949 = vmatprep.subr.mxu0 0.0
    %3950 = vmatpush1.msra.mxu0 0.0
    %3951 = vmatprep.subr.mxu0 0.0
    %3952 = vmatpush1.msra.mxu0 0.0
    %3953 = vmatprep.subr.mxu0 0.0
    %3954 = vmatpush1.msra.mxu0 0.0
    %3955 = vmatprep.mubr.f32.mxu0 0.0
    %3956 = vmatmul.mubr.f32.gmra.mrb[0].mxu0 %v3886
    %v3957 = vpop.f32.mrb[0].mxu0
    %v3958 = vadd.f32 0.0, %v3957
    %v3959 = vpop.f32.mrb[0].mxu0
    %3960 = vmatprep.mubr.f32.mxu0 0.0
    %3961 = vmatmul.mubr.f32.gmra.mrb[0].mxu0 %v3889
    %v3962 = vpop.f32.mrb[0].mxu0
    %v3963 = vadd.f32 0.0, %v3962
    %v3964 = vpop.f32.mrb[0].mxu0
    %3965 = vdwg.mxu0
    %v3966 = vadd.f32 %v3549, %v3958
    %v3967 = vadd.f32 %v3550, %v3963
    %s3968 = scalar_lea.vmem %s6, 1
    %v3969 = vld [vmem:[%s3968] sm:$0x1]
    %v3971 = vlaneseq
    %v3972 = vshrl.u32 %v3971, 7
    %v3973 = vsub.s32 0, %v3972
    %v3974 = vrot.slane %v3969, %v3973
    %v3976 = vadd.f32 %v3966, %v3974
    %v3977 = vadd.f32 %v3967, %v3974
    %v3978 = vadd.f32 %v3976, %v2210
    %v3979 = vadd.f32 %v3977, %v2211
    %s3980 = scalar_lea.vmem %s7, 1
    %v3981 = vld [vmem:[%s3980] sm:$0x1]
    %s3982 = scalar_lea.vmem %s8, 1
    %v3983 = vld [vmem:[%s3982] sm:$0x1]
    %v3984 = vsel %vm176, %v3978, 0.0
    %3985 = vadd.xlane.f32.xlu0 %v3984
    %v3986 = vpop.xlane.xlu0 %3985
    %v3987 = vsel %vm176, %v3979, 0.0
    %3988 = vadd.xlane.f32.xlu0 %v3987
    %v3989 = vpop.xlane.xlu0 %3988
    %v3990 = vmul.f32 %v3986, %v1939
    %v3991 = vmul.f32 %v3989, %v1939
    %v3992 = vsub.f32 %v3978, %v3990
    %v3993 = vsub.f32 %v3979, %v3991
    %v3994 = vmul.f32 %v3992, %v3992
    %v3995 = vmul.f32 %v3993, %v3993
    %v3996 = vsel %vm176, %v3994, 0.0
    %3997 = vadd.xlane.f32.xlu0 %v3996
    %v3998 = vpop.xlane.xlu0 %3997
    %v3999 = vsel %vm176, %v3995, 0.0
    %4000 = vadd.xlane.f32.xlu0 %v3999
    %v4001 = vpop.xlane.xlu0 %4000
    %v4002 = vmul.f32 %v3998, %v1939
    %v4003 = vmul.f32 %v4001, %v1939
    %v4004 = vadd.f32 %v4002, 1e-05
    %v4005 = vadd.f32 %v4003, 1e-05
    %v4006 = vrsqrt.pop %v4004
    %v4007 = vrsqrt.pop %v4005
    %v4008 = vmul.f32 %v3992, %v4006
    %v4009 = vmul.f32 %v3993, %v4007
    %v4011 = vlaneseq
    %v4012 = vshrl.u32 %v4011, 7
    %v4013 = vsub.s32 0, %v4012
    %v4014 = vrot.slane %v3981, %v4013
    %v4016 = vmul.f32 %v4008, %v4014
    %v4017 = vmul.f32 %v4009, %v4014
    %v4019 = vlaneseq
    %v4020 = vshrl.u32 %v4019, 7
    %v4021 = vsub.s32 0, %v4020
    %v4022 = vrot.slane %v3983, %v4021
    %v4024 = vadd.f32 %v4016, %v4022
    %v4025 = vadd.f32 %v4017, %v4022
    %s4026 = scalar_lea.vmem %s11, 32
    %v4027 = vld [vmem:[%s4026] sm:$0xff]
    %v4028 = vld [vmem:[%s4026 + $0x8] sm:$0xff]
    %v4029 = vld [vmem:[%s4026 + $0x10] sm:$0xff]
    %v4030 = vld [vmem:[%s4026 + $0x18] sm:$0xff]
    %s4031 = scalar_lea.vmem %s12, 1
    %v4032 = vld [vmem:[%s4031] sm:$0x1]
    %v4034 = vlaneseq
    %v4035 = vshrl.u32 %v4034, 7
    %v4036 = vsub.s32 0, %v4035
    %v4037 = vrot.slane %v4032, %v4036
    %v4040 = vsel %vm176, %v4024, 0
    %v4043 = vsel %vm176, %v4025, 0
    %4045 = vmatprep.subr.mxu0 0.0
    %4046 = vmatpush1.msra.mxu0 %v4027
    %4047 = vmatprep.subr.mxu0 0.0
    %4048 = vmatpush1.msra.mxu0 %v4028
    %4049 = vmatprep.subr.mxu0 0.0
    %4050 = vmatpush1.msra.mxu0 %v4029
    %4051 = vmatprep.subr.mxu0 0.0
    %4052 = vmatpush1.msra.mxu0 %v4030
    %4053 = vmatprep.subr.mxu0 0.0
    %4054 = vmatpush1.msra.mxu0 0.0
    %4055 = vmatprep.subr.mxu0 0.0
    %4056 = vmatpush1.msra.mxu0 0.0
    %4057 = vmatprep.subr.mxu0 0.0
    %4058 = vmatpush1.msra.mxu0 0.0
    %4059 = vmatprep.subr.mxu0 0.0
    %4060 = vmatpush1.msra.mxu0 0.0
    %4061 = vmatprep.subr.mxu0 0.0
    %4062 = vmatpush1.msra.mxu0 0.0
    %4063 = vmatprep.subr.mxu0 0.0
    %4064 = vmatpush1.msra.mxu0 0.0
    %4065 = vmatprep.subr.mxu0 0.0
    %4066 = vmatpush1.msra.mxu0 0.0
    %4067 = vmatprep.subr.mxu0 0.0
    %4068 = vmatpush1.msra.mxu0 0.0
    %4069 = vmatprep.subr.mxu0 0.0
    %4070 = vmatpush1.msra.mxu0 0.0
    %4071 = vmatprep.subr.mxu0 0.0
    %4072 = vmatpush1.msra.mxu0 0.0
    %4073 = vmatprep.subr.mxu0 0.0
    %4074 = vmatpush1.msra.mxu0 0.0
    %4075 = vmatprep.subr.mxu0 0.0
    %4076 = vmatpush1.msra.mxu0 0.0
    %4077 = vmatprep.subr.mxu0 0.0
    %4078 = vmatpush1.msra.mxu0 0.0
    %4079 = vmatprep.subr.mxu0 0.0
    %4080 = vmatpush1.msra.mxu0 0.0
    %4081 = vmatprep.subr.mxu0 0.0
    %4082 = vmatpush1.msra.mxu0 0.0
    %4083 = vmatprep.subr.mxu0 0.0
    %4084 = vmatpush1.msra.mxu0 0.0
    %4085 = vmatprep.subr.mxu0 0.0
    %4086 = vmatpush1.msra.mxu0 0.0
    %4087 = vmatprep.subr.mxu0 0.0
    %4088 = vmatpush1.msra.mxu0 0.0
    %4089 = vmatprep.subr.mxu0 0.0
    %4090 = vmatpush1.msra.mxu0 0.0
    %4091 = vmatprep.subr.mxu0 0.0
    %4092 = vmatpush1.msra.mxu0 0.0
    %4093 = vmatprep.subr.mxu0 0.0
    %4094 = vmatpush1.msra.mxu0 0.0
    %4095 = vmatprep.subr.mxu0 0.0
    %4096 = vmatpush1.msra.mxu0 0.0
    %4097 = vmatprep.subr.mxu0 0.0
    %4098 = vmatpush1.msra.mxu0 0.0
    %4099 = vmatprep.subr.mxu0 0.0
    %4100 = vmatpush1.msra.mxu0 0.0
    %4101 = vmatprep.subr.mxu0 0.0
    %4102 = vmatpush1.msra.mxu0 0.0
    %4103 = vmatprep.subr.mxu0 0.0
    %4104 = vmatpush1.msra.mxu0 0.0
    %4105 = vmatprep.subr.mxu0 0.0
    %4106 = vmatpush1.msra.mxu0 0.0
    %4107 = vmatprep.subr.mxu0 0.0
    %4108 = vmatpush1.msra.mxu0 0.0
    %4109 = vmatprep.mubr.f32.mxu0 0.0
    %4110 = vmatmul.mubr.f32.gmra.mrb[0].mxu0 %v4040
    %v4111 = vpop.f32.mrb[0].mxu0
    %v4112 = vadd.f32 %v4037, %v4111
    %v4113 = vpop.f32.mrb[0].mxu0
    %4114 = vmatprep.mubr.f32.mxu0 0.0
    %4115 = vmatmul.mubr.f32.gmra.mrb[0].mxu0 %v4043
    %v4116 = vpop.f32.mrb[0].mxu0
    %v4117 = vadd.f32 %v4037, %v4116
    %v4118 = vpop.f32.mrb[0].mxu0
    %4119 = vdwg.mxu0
    %v4120 = vmax.f32 %v4112, 0.0
    %v4121 = vmax.f32 %v4117, 0.0
    %s4122 = scalar_lea.vmem %s13, 64
    %v4123 = vld [vmem:[%s4122] sm:$0xff]
    %v4124 = vld [vmem:[%s4122 + $0x8] sm:$0xff]
    %v4125 = vld [vmem:[%s4122 + $0x10] sm:$0xff]
    %v4126 = vld [vmem:[%s4122 + $0x18] sm:$0xff]
    %v4127 = vld [vmem:[%s4122 + $0x20] sm:$0xff]
    %v4128 = vld [vmem:[%s4122 + $0x28] sm:$0xff]
    %v4129 = vld [vmem:[%s4122 + $0x30] sm:$0xff]
    %v4130 = vld [vmem:[%s4122 + $0x38] sm:$0xff]
    %s4131 = scalar_lea.vmem %s14, 1
    %v4132 = vld [vmem:[%s4131] sm:$0x1]
    %v4134 = vlaneseq
    %v4135 = vshrl.u32 %v4134, 7
    %v4136 = vsub.s32 0, %v4135
    %v4137 = vrot.slane %v4132, %v4136
    %v4140 = vsel %vm83, %v4120, 0
    %v4143 = vsel %vm83, %v4121, 0
    %4145 = vmatprep.subr.mxu0 0.0
    %4146 = vmatpush1.msra.mxu0 %v4123
    %4147 = vmatprep.subr.mxu0 0.0
    %4148 = vmatpush1.msra.mxu0 %v4124
    %4149 = vmatprep.subr.mxu0 0.0
    %4150 = vmatpush1.msra.mxu0 %v4125
    %4151 = vmatprep.subr.mxu0 0.0
    %4152 = vmatpush1.msra.mxu0 %v4126
    %4153 = vmatprep.subr.mxu0 0.0
    %4154 = vmatpush1.msra.mxu0 %v4127
    %4155 = vmatprep.subr.mxu0 0.0
    %4156 = vmatpush1.msra.mxu0 %v4128
    %4157 = vmatprep.subr.mxu0 0.0
    %4158 = vmatpush1.msra.mxu0 %v4129
    %4159 = vmatprep.subr.mxu0 0.0
    %4160 = vmatpush1.msra.mxu0 %v4130
    %4161 = vmatprep.subr.mxu0 0.0
    %4162 = vmatpush1.msra.mxu0 0.0
    %4163 = vmatprep.subr.mxu0 0.0
    %4164 = vmatpush1.msra.mxu0 0.0
    %4165 = vmatprep.subr.mxu0 0.0
    %4166 = vmatpush1.msra.mxu0 0.0
    %4167 = vmatprep.subr.mxu0 0.0
    %4168 = vmatpush1.msra.mxu0 0.0
    %4169 = vmatprep.subr.mxu0 0.0
    %4170 = vmatpush1.msra.mxu0 0.0
    %4171 = vmatprep.subr.mxu0 0.0
    %4172 = vmatpush1.msra.mxu0 0.0
    %4173 = vmatprep.subr.mxu0 0.0
    %4174 = vmatpush1.msra.mxu0 0.0
    %4175 = vmatprep.subr.mxu0 0.0
    %4176 = vmatpush1.msra.mxu0 0.0
    %4177 = vmatprep.subr.mxu0 0.0
    %4178 = vmatpush1.msra.mxu0 0.0
    %4179 = vmatprep.subr.mxu0 0.0
    %4180 = vmatpush1.msra.mxu0 0.0
    %4181 = vmatprep.subr.mxu0 0.0
    %4182 = vmatpush1.msra.mxu0 0.0
    %4183 = vmatprep.subr.mxu0 0.0
    %4184 = vmatpush1.msra.mxu0 0.0
    %4185 = vmatprep.subr.mxu0 0.0
    %4186 = vmatpush1.msra.mxu0 0.0
    %4187 = vmatprep.subr.mxu0 0.0
    %4188 = vmatpush1.msra.mxu0 0.0
    %4189 = vmatprep.subr.mxu0 0.0
    %4190 = vmatpush1.msra.mxu0 0.0
    %4191 = vmatprep.subr.mxu0 0.0
    %4192 = vmatpush1.msra.mxu0 0.0
    %4193 = vmatprep.subr.mxu0 0.0
    %4194 = vmatpush1.msra.mxu0 0.0
    %4195 = vmatprep.subr.mxu0 0.0
    %4196 = vmatpush1.msra.mxu0 0.0
    %4197 = vmatprep.subr.mxu0 0.0
    %4198 = vmatpush1.msra.mxu0 0.0
    %4199 = vmatprep.subr.mxu0 0.0
    %4200 = vmatpush1.msra.mxu0 0.0
    %4201 = vmatprep.subr.mxu0 0.0
    %4202 = vmatpush1.msra.mxu0 0.0
    %4203 = vmatprep.subr.mxu0 0.0
    %4204 = vmatpush1.msra.mxu0 0.0
    %4205 = vmatprep.subr.mxu0 0.0
    %4206 = vmatpush1.msra.mxu0 0.0
    %4207 = vmatprep.subr.mxu0 0.0
    %4208 = vmatpush1.msra.mxu0 0.0
    %4209 = vmatprep.mubr.f32.mxu0 0.0
    %4210 = vmatmul.mubr.f32.gmra.mrb[0].mxu0 %v4140
    %v4211 = vpop.f32.mrb[0].mxu0
    %v4212 = vadd.f32 %v4137, %v4211
    %v4213 = vpop.f32.mrb[0].mxu0
    %4214 = vmatprep.mubr.f32.mxu0 0.0
    %4215 = vmatmul.mubr.f32.gmra.mrb[0].mxu0 %v4143
    %v4216 = vpop.f32.mrb[0].mxu0
    %v4217 = vadd.f32 %v4137, %v4216
    %v4218 = vpop.f32.mrb[0].mxu0
    %4219 = vdwg.mxu0
    %v4220 = vadd.f32 %v4212, %v4024
    %v4221 = vadd.f32 %v4217, %v4025
    %s4222 = scalar_lea.vmem %s9, 1
    %v4223 = vld [vmem:[%s4222] sm:$0x1]
    %s4224 = scalar_lea.vmem %s10, 1
    %v4225 = vld [vmem:[%s4224] sm:$0x1]
    %v4226 = vsel %vm176, %v4220, 0.0
    %4227 = vadd.xlane.f32.xlu0 %v4226
    %v4228 = vpop.xlane.xlu0 %4227
    %v4229 = vsel %vm176, %v4221, 0.0
    %4230 = vadd.xlane.f32.xlu0 %v4229
    %v4231 = vpop.xlane.xlu0 %4230
    %v4232 = vmul.f32 %v4228, %v1939
    %v4233 = vmul.f32 %v4231, %v1939
    %v4234 = vsub.f32 %v4220, %v4232
    %v4235 = vsub.f32 %v4221, %v4233
    %v4236 = vmul.f32 %v4234, %v4234
    %v4237 = vmul.f32 %v4235, %v4235
    %v4238 = vsel %vm176, %v4236, 0.0
    %4239 = vadd.xlane.f32.xlu0 %v4238
    %v4240 = vpop.xlane.xlu0 %4239
    %v4241 = vsel %vm176, %v4237, 0.0
    %4242 = vadd.xlane.f32.xlu0 %v4241
    %v4243 = vpop.xlane.xlu0 %4242
    %v4244 = vmul.f32 %v4240, %v1939
    %v4245 = vmul.f32 %v4243, %v1939
    %v4246 = vadd.f32 %v4244, 1e-05
    %v4247 = vadd.f32 %v4245, 1e-05
    %v4248 = vrsqrt.pop %v4246
    %v4249 = vrsqrt.pop %v4247
    %v4250 = vmul.f32 %v4234, %v4248
    %v4251 = vmul.f32 %v4235, %v4249
    %v4253 = vlaneseq
    %v4254 = vshrl.u32 %v4253, 7
    %v4255 = vsub.s32 0, %v4254
    %v4256 = vrot.slane %v4223, %v4255
    %v4258 = vmul.f32 %v4250, %v4256
    %v4259 = vmul.f32 %v4251, %v4256
    %v4261 = vlaneseq
    %v4262 = vshrl.u32 %v4261, 7
    %v4263 = vsub.s32 0, %v4262
    %v4264 = vrot.slane %v4225, %v4263
    %v4266 = vadd.f32 %v4258, %v4264
    %v4267 = vadd.f32 %v4259, %v4264
    %v4268 = vld [vmem:[%s15] sm:$0xff]
    %v4269 = vld [vmem:[%s15 + $0x8] sm:$0xff]
    %v4270 = vld [vmem:[%s15 + $0x10] sm:$0xff]
    %v4271 = vld [vmem:[%s15 + $0x18] sm:$0xff]
    %v4272 = vld [vmem:[%s16] sm:$0x1]
    %v4274 = vlaneseq
    %v4275 = vshrl.u32 %v4274, 7
    %v4276 = vsub.s32 0, %v4275
    %v4277 = vrot.slane %v4272, %v4276
    %v4280 = vsel %vm176, %v4266, 0
    %v4283 = vsel %vm176, %v4267, 0
    %4285 = vmatprep.subr.mxu0 0.0
    %4286 = vmatpush1.msra.mxu0 %v4268
    %4287 = vmatprep.subr.mxu0 0.0
    %4288 = vmatpush1.msra.mxu0 %v4269
    %4289 = vmatprep.subr.mxu0 0.0
    %4290 = vmatpush1.msra.mxu0 %v4270
    %4291 = vmatprep.subr.mxu0 0.0
    %4292 = vmatpush1.msra.mxu0 %v4271
    %4293 = vmatprep.subr.mxu0 0.0
    %4294 = vmatpush1.msra.mxu0 0.0
    %4295 = vmatprep.subr.mxu0 0.0
    %4296 = vmatpush1.msra.mxu0 0.0
    %4297 = vmatprep.subr.mxu0 0.0
    %4298 = vmatpush1.msra.mxu0 0.0
    %4299 = vmatprep.subr.mxu0 0.0
    %4300 = vmatpush1.msra.mxu0 0.0
    %4301 = vmatprep.subr.mxu0 0.0
    %4302 = vmatpush1.msra.mxu0 0.0
    %4303 = vmatprep.subr.mxu0 0.0
    %4304 = vmatpush1.msra.mxu0 0.0
    %4305 = vmatprep.subr.mxu0 0.0
    %4306 = vmatpush1.msra.mxu0 0.0
    %4307 = vmatprep.subr.mxu0 0.0
    %4308 = vmatpush1.msra.mxu0 0.0
    %4309 = vmatprep.subr.mxu0 0.0
    %4310 = vmatpush1.msra.mxu0 0.0
    %4311 = vmatprep.subr.mxu0 0.0
    %4312 = vmatpush1.msra.mxu0 0.0
    %4313 = vmatprep.subr.mxu0 0.0
    %4314 = vmatpush1.msra.mxu0 0.0
    %4315 = vmatprep.subr.mxu0 0.0
    %4316 = vmatpush1.msra.mxu0 0.0
    %4317 = vmatprep.subr.mxu0 0.0
    %4318 = vmatpush1.msra.mxu0 0.0
    %4319 = vmatprep.subr.mxu0 0.0
    %4320 = vmatpush1.msra.mxu0 0.0
    %4321 = vmatprep.subr.mxu0 0.0
    %4322 = vmatpush1.msra.mxu0 0.0
    %4323 = vmatprep.subr.mxu0 0.0
    %4324 = vmatpush1.msra.mxu0 0.0
    %4325 = vmatprep.subr.mxu0 0.0
    %4326 = vmatpush1.msra.mxu0 0.0
    %4327 = vmatprep.subr.mxu0 0.0
    %4328 = vmatpush1.msra.mxu0 0.0
    %4329 = vmatprep.subr.mxu0 0.0
    %4330 = vmatpush1.msra.mxu0 0.0
    %4331 = vmatprep.subr.mxu0 0.0
    %4332 = vmatpush1.msra.mxu0 0.0
    %4333 = vmatprep.subr.mxu0 0.0
    %4334 = vmatpush1.msra.mxu0 0.0
    %4335 = vmatprep.subr.mxu0 0.0
    %4336 = vmatpush1.msra.mxu0 0.0
    %4337 = vmatprep.subr.mxu0 0.0
    %4338 = vmatpush1.msra.mxu0 0.0
    %4339 = vmatprep.subr.mxu0 0.0
    %4340 = vmatpush1.msra.mxu0 0.0
    %4341 = vmatprep.subr.mxu0 0.0
    %4342 = vmatpush1.msra.mxu0 0.0
    %4343 = vmatprep.subr.mxu0 0.0
    %4344 = vmatpush1.msra.mxu0 0.0
    %4345 = vmatprep.subr.mxu0 0.0
    %4346 = vmatpush1.msra.mxu0 0.0
    %4347 = vmatprep.subr.mxu0 0.0
    %4348 = vmatpush1.msra.mxu0 0.0
    %4349 = vmatprep.mubr.f32.mxu0 0.0
    %4350 = vmatmul.mubr.f32.gmra.mrb[0].mxu0 %v4280
    %v4351 = vpop.f32.mrb[0].mxu0
    %v4352 = vadd.f32 %v4277, %v4351
    %v4353 = vpop.f32.mrb[0].mxu0
    %4354 = vmatprep.mubr.f32.mxu0 0.0
    %4355 = vmatmul.mubr.f32.gmra.mrb[0].mxu0 %v4283
    %v4356 = vpop.f32.mrb[0].mxu0
    %v4357 = vadd.f32 %v4277, %v4356
    %v4358 = vpop.f32.mrb[0].mxu0
    %4359 = vdwg.mxu0
    %4360 = vst [vmem:[#allocation2] sm:$0xff] %v4352
    %4361 = vst [vmem:[#allocation2 + $0x8] sm:$0xff] %v4357
    // Predicated region
    $region70: #{tpu_custom_call.1} parent=1 // pred_check
      _
    $region71: #{tpu_custom_call.1} parent=1 // pred_check_branch
      %4363 = sbr.rel (0) target = $region73
    $region72: #{tpu_custom_call.1} parent=1 // pred_region
      %s4365 = ssub.s32 256, 256
      %4366 = vsyncadd [#allocation3], %s4365
      %s4367 = sshll.u32 [#allocation2], 4
      %s4368 = int_to_ptr.vmem [resolvable:$true] %s4367
      %4373 = dma.vmem_to_hbm [thread:$0]  %s4368, 256, %s17, [#allocation3], 128, 128, 8
    $region73: #{tpu_custom_call.1} parent=1 // pred_fallthru
      _
    // Predicated region
    $region74: #{tpu_custom_call.1} parent=1 // pred_check
      _
    $region75: #{tpu_custom_call.1} parent=1 // pred_check_branch
      %4375 = sbr.rel (0) target = $region77
    $region76: #{tpu_custom_call.1} parent=1 // pred_region
      %4376 = dma.done [#allocation3], 256
    $region77: #{tpu_custom_call.1} parent=1 // pred_fallthru
      _
    %4377 = vsyncpa [#allocation3], 1

</llo_original>
